<compile_context>
chip_gen: v6e
topology: v6e:2x2x1
jax: 0.10.0
libtpu: 0.0.40
codegen_flags: <defaults>
</compile_context>

<pallas_src>
import jax
import jax.numpy as jnp
from jax.experimental import pallas as pl
from jax.experimental.pallas import tpu as pltpu

N_LAYERS = 2
HIDDEN = 256          # multiple of 128; fills the 256-wide MXU on v6e/v7x


def _round_up(x, m):
    return ((x + m - 1) // m) * m


def _pick_batch_tile(B, batch_tile):
    """Pick the per-step batch tile.

    - tiny / non-multiple-of-8 batches that fit one tile -> a single
      full-batch block (always a legal block shape, no padding needed);
    - otherwise a multiple-of-8 tile, aiming for >= 2 grid steps so the
      "parallel" batch axis can feed both v7x TensorCores.  Ragged last
      blocks are handled by Pallas (masked writes / padded reads) and the
      per-row computation is independent, so no explicit jnp.pad is needed.
    """
    if B <= 8 or (B <= batch_tile and B % 8):
        return B
    half = _round_up(pl.cdiv(B, 2), 8)
    return max(8, min(batch_tile, half))


def _make_seq_kernel(n_layers):
    """Kernel body for a fixed (static) number of coupling layers."""

    def kernel(z_ref, w1_ref, b1_ref, wst_ref, bst_ref, x_ref, logj_ref):
        tb = z_ref.shape[0]
        d = z_ref.shape[1]
        z = z_ref[...].astype(jnp.float32)            # (TB, D)
        logj = jnp.zeros((tb, 1), jnp.float32)

        # Static Python loop over layers (unrolled at trace time).
        for l in range(n_layers):
            # h = tanh((m*z) @ W1 + b1): the checkerboard mask is baked into
            # W1's rows (zeroed at active sites) -> no gather / mask op here.
            # tanh runs in bf16 (EUP bf16 path on v6e/v7x is ~2x; h feeds a
            # bf16 MXU dot anyway).
            h = jnp.tanh(
                (jnp.dot(z.astype(jnp.bfloat16), w1_ref[l],
                         preferred_element_type=jnp.float32)
                 + b1_ref[pl.ds(l, 1), :]).astype(jnp.bfloat16))   # (TB, HID)

            # Fused [s | t] projection in one (HID, 2D) matmul.  Frozen-site
            # columns of Wst and bst are zero, so s == 0 and t == 0 exactly
            # at frozen sites.
            st = (jnp.dot(h, wst_ref[l], preferred_element_type=jnp.float32)
                  + bst_ref[pl.ds(l, 1), :])                       # (TB, 2D)
            s = jnp.tanh(st[:, :d])        # f32: drives x and log_J accuracy
            t = st[:, d:]

            # At frozen sites exp(0)=1, t=0 -> z' = z; at active sites the
            # affine flow update z' = z*exp(s) + t.
            z = z * jnp.exp(s) + t
            logj = logj + jnp.sum(s, axis=-1, keepdims=True)

        x_ref[...] = z.astype(x_ref.dtype)
        # Lane-dense log_J store (avoid vst.msk on a width-1 output).
        logj_ref[...] = jnp.broadcast_to(logj, logj_ref.shape)

    return kernel


def transformation_sequence(z_nchw, params, *, batch_tile=512):
    """Forward pass of the TransformationSequence.

    Args:
      z_nchw: (B, C, H, W) float32 configurations.
      params: dict from make_params (mask-baked bf16 weights).
      batch_tile: max rows per grid step (512 fits v7x's 64 MiB VMEM;
        v5e/v6e with 128 MiB can take 1024).

    Returns:
      x: (B, C, H, W) transformed configurations.
      log_J: (B,) accumulated log Jacobian determinant.
    """
    B, C, H, W = z_nchw.shape
    D = C * H * W
    assert D % 128 == 0, "lattice size must be a multiple of the 128-lane vreg"

    w1, b1 = params["w1"], params["b1"]          # (L, D, HID) bf16, (L, HID) f32
    wst, bst = params["wst"], params["bst"]      # (L, HID, 2D) bf16, (L, 2D) f32
    n_layers, hidden = w1.shape[0], w1.shape[-1]

    # No permutation gather, no padding: just a view-level reshape.
    z = z_nchw.reshape(B, D).astype(jnp.float32)

    tb = _pick_batch_tile(B, batch_tile)
    grid = (pl.cdiv(B, tb),)

    # Grid-invariant weights/biases: resident in VMEM, single-buffered.
    def resident(arr):
        nd = arr.ndim
        return pl.BlockSpec(arr.shape, lambda i, _nd=nd: (0,) * _nd,
                            pipeline_mode=pl.Buffered(1))

    # Tightened VMEM request (stay well under v7x's 64 MiB physical VMEM).
    weight_bytes = n_layers * (D * hidden + hidden * 2 * D) * 2     # bf16, 1-buffered
    bias_bytes = n_layers * (hidden + 2 * D) * 4
    tile_io = 2 * 2 * (tb * D * 4) + 2 * (tb * 128 * 4)             # z/x dbl-buffered + logj
    act_bytes = tb * (5 * D + hidden) * 4                           # z, st, s, exp(s) live
    vmem_limit = min(48 << 20,
                     max(16 << 20,
                         weight_bytes + bias_bytes + tile_io + act_bytes + (2 << 20)))

    cost = pl.CostEstimate(
        flops=2 * n_layers * B * (D * hidden + hidden * 2 * D),
        transcendentals=n_layers * B * (hidden + 2 * D),
        bytes_accessed=(2 * B * D * 4 + B * 128 * 4 + weight_bytes + bias_bytes),
    )

    x, log_j = pl.pallas_call(
        _make_seq_kernel(n_layers),
        out_shape=(
            jax.ShapeDtypeStruct((B, D), jnp.float32),
            jax.ShapeDtypeStruct((B, 128), jnp.float32),
        ),
        grid_spec=pltpu.PrefetchScalarGridSpec(
            num_scalar_prefetch=0,
            grid=grid,
            in_specs=[
                pl.BlockSpec((tb, D), lambda i: (i, 0)),   # z tile
                resident(w1), resident(b1), resident(wst), resident(bst),
            ],
            out_specs=[
                pl.BlockSpec((tb, D), lambda i: (i, 0)),   # x tile
                pl.BlockSpec((tb, 128), lambda i: (i, 0)),  # lane-dense log_J
            ],
        ),
        compiler_params=pltpu.CompilerParams(
            dimension_semantics=("parallel",),             # batch axis -> megacore
            vmem_limit_bytes=int(vmem_limit),
        ),
        cost_estimate=cost,
    )(z, w1, b1, wst, bst)

    x = x.reshape(B, C, H, W).astype(z_nchw.dtype)
    return x, log_j[:, 0]


def make_params(key, D, n_layers=N_LAYERS, hidden=HIDDEN):
    """Deterministic synthetic parameters for the coupling-layer stack.

    Full (unmasked) weights define the module; the kernel consumes the
    mask-baked form:
      w1  : (L, D, HIDDEN)   rows zeroed at active sites   (bf16)
      wst : (L, HIDDEN, 2*D) [s | t] columns zeroed at frozen sites (bf16)
      bst : (L, 2*D)         biases zeroed at frozen sites (f32)
    """
    keys = jax.random.split(key, 6)
    scale_in = 0.05 / jnp.sqrt(D / 2)
    scale_h = 0.05 / jnp.sqrt(hidden)
    w1_full = scale_in * jax.random.normal(keys[0], (n_layers, D, hidden), jnp.float32)
    ws_full = scale_h * jax.random.normal(keys[1], (n_layers, hidden, D), jnp.float32)
    wt_full = scale_h * jax.random.normal(keys[2], (n_layers, hidden, D), jnp.float32)
    b1 = 0.1 * jax.random.normal(keys[3], (n_layers, hidden), jnp.float32)
    bs = 0.01 * jax.random.normal(keys[4], (n_layers, D), jnp.float32)
    bt = 0.01 * jax.random.normal(keys[5], (n_layers, D), jnp.float32)

    # Alternating checkerboard masks: layer 0 freezes odd sites, layer 1 even...
    site = jnp.arange(D, dtype=jnp.int32)
    mask = jnp.stack([((site % 2) == ((l + 1) % 2)).astype(jnp.float32)
                      for l in range(n_layers)])          # (L, D), 1 = frozen
    active = 1.0 - mask

    w1_k = (mask[:, :, None] * w1_full).astype(jnp.bfloat16)
    wst_k = jnp.concatenate([active[:, None, :] * ws_full,
                             active[:, None, :] * wt_full],
                            axis=-1).astype(jnp.bfloat16)
    bst_k = jnp.concatenate([active * bs, active * bt], axis=-1)

    return {"w1": w1_k, "b1": b1, "wst": wst_k, "bst": bst_k,
            "mask": mask,
            "w1_full": w1_full, "ws_full": ws_full, "wt_full": wt_full,
            "bs": bs, "bt": bt}


def _reference(z_nchw, params):
    """Pure-JAX reference in the original masked-coupling form.

    Uses the same bf16 weight rounding / bf16 hidden tanh as the kernel so the
    comparison is tight; the masks are applied explicitly (module semantics)
    instead of being baked into the weights.
    """
    B = z_nchw.shape[0]
    D = z_nchw[0].size
    n_layers = params["mask"].shape[0]
    z = z_nchw.reshape(B, D).astype(jnp.float32)
    log_j = jnp.zeros((B,), jnp.float32)
    for l in range(n_layers):
        m = params["mask"][l]
        am = 1.0 - m
        w1 = params["w1_full"][l].astype(jnp.bfloat16)
        ws = params["ws_full"][l].astype(jnp.bfloat16)
        wt = params["wt_full"][l].astype(jnp.bfloat16)

        frozen = m * z
        h = jnp.tanh((jnp.dot(frozen.astype(jnp.bfloat16), w1,
                              preferred_element_type=jnp.float32)
                      + params["b1"][l][None, :]).astype(jnp.bfloat16))
        s = am * jnp.tanh(jnp.dot(h, ws, preferred_element_type=jnp.float32)
                          + params["bs"][l][None, :])
        t = am * (jnp.dot(h, wt, preferred_element_type=jnp.float32)
                  + params["bt"][l][None, :])
        z = m * z + am * (z * jnp.exp(s) + t)
        log_j = log_j + jnp.sum(s, axis=-1)
    x = z.reshape(z_nchw.shape).astype(z_nchw.dtype)
    return x, log_j


if __name__ == "__main__":
    key = jax.random.PRNGKey(0)
    k_z, k_p = jax.random.split(key)

    B, C, H, W = 2, 4, 16, 16
    z = jax.random.normal(k_z, (B, C, H, W), jnp.float32)
    params = make_params(k_p, C * H * W)

    x, log_j = transformation_sequence(z, params)
    jax.block_until_ready((x, log_j))

    x_ref, log_j_ref = _reference(z, params)
    assert x.shape == (B, C, H, W) and log_j.shape == (B,)
    assert jnp.allclose(x, x_ref, atol=1e-3, rtol=1e-3)
    assert jnp.allclose(log_j, log_j_ref, atol=1e-3, rtol=1e-3)

    print("KERNEL_OK")
</pallas_src>

<mosaic_0001>
module attributes {stable_mosaic.version = 11 : i64} {
  func.func @kernel(%arg0: i32, %arg1: memref<2x1024xf32, #tpu.memory_space<vmem>>, %arg2: memref<2x1024x256xbf16, #tpu.memory_space<vmem>>, %arg3: memref<2x256xf32, #tpu.memory_space<vmem>>, %arg4: memref<2x256x2048xbf16, #tpu.memory_space<vmem>>, %arg5: memref<2x2048xf32, #tpu.memory_space<vmem>>, %arg6: memref<2x1024xf32, #tpu.memory_space<vmem>>, %arg7: memref<2x128xf32, #tpu.memory_space<vmem>>) attributes {dimension_semantics = [#tpu.dimension_semantics<parallel>], iteration_bounds = array<i64: 1>, scalar_prefetch = 0 : i64, scratch_operands = 0 : i64, tpu.core_type = #tpu.core_type<tc>, window_params = [{transform_indices = @transform_0, window_bounds = array<i64: 2, 1024>}, {pipeline_mode = #tpu.pipeline_mode<synchronous>, transform_indices = @transform_1, window_bounds = array<i64: 2, 1024, 256>}, {pipeline_mode = #tpu.pipeline_mode<synchronous>, transform_indices = @transform_2, window_bounds = array<i64: 2, 256>}, {pipeline_mode = #tpu.pipeline_mode<synchronous>, transform_indices = @transform_3, window_bounds = array<i64: 2, 256, 2048>}, {pipeline_mode = #tpu.pipeline_mode<synchronous>, transform_indices = @transform_4, window_bounds = array<i64: 2, 2048>}, {transform_indices = @transform_5, window_bounds = array<i64: 2, 1024>}, {transform_indices = @transform_6, window_bounds = array<i64: 2, 128>}]} {
    %c0 = arith.constant 0 : index
    %c0_0 = arith.constant 0 : index
    %0 = vector.load %arg1[%c0, %c0_0] : memref<2x1024xf32, #tpu.memory_space<vmem>>, vector<2x1024xf32>
    %cst = arith.constant 0.000000e+00 : f32
    %1 = vector.broadcast %cst : f32 to vector<2x1xf32>
    %2 = arith.truncf %0 : vector<2x1024xf32> to vector<2x1024xbf16>
    %c0_1 = arith.constant 0 : index
    %c0_2 = arith.constant 0 : index
    %c0_3 = arith.constant 0 : index
    %3 = vector.load %arg2[%c0_1, %c0_2, %c0_3] : memref<2x1024x256xbf16, #tpu.memory_space<vmem>>, vector<1x1024x256xbf16>
    %4 = vector.shape_cast %3 : vector<1x1024x256xbf16> to vector<1024x256xbf16>
    %cst_4 = arith.constant dense<0.000000e+00> : vector<2x256xf32>
    %5 = tpu.matmul %2, %4, %cst_4 {dimension_numbers = #tpu.dot_dimension_numbers<[1], [0], [0], [1], [0, 0, 1, 1], [], []>} : vector<2x1024xbf16>, vector<1024x256xbf16>, vector<2x256xf32> -> vector<2x256xf32>
    %c0_5 = arith.constant 0 : index
    %c0_6 = arith.constant 0 : index
    %6 = vector.load %arg3[%c0_5, %c0_6] : memref<2x256xf32, #tpu.memory_space<vmem>>, vector<1x256xf32>
    %7 = vector.broadcast %6 : vector<1x256xf32> to vector<2x256xf32>
    %8 = arith.addf %5, %7 : vector<2x256xf32>
    %9 = arith.truncf %8 : vector<2x256xf32> to vector<2x256xbf16>
    %10 = math.tanh %9 : vector<2x256xbf16>
    %c0_7 = arith.constant 0 : index
    %c0_8 = arith.constant 0 : index
    %c0_9 = arith.constant 0 : index
    %11 = vector.load %arg4[%c0_7, %c0_8, %c0_9] : memref<2x256x2048xbf16, #tpu.memory_space<vmem>>, vector<1x256x2048xbf16>
    %12 = vector.shape_cast %11 : vector<1x256x2048xbf16> to vector<256x2048xbf16>
    %cst_10 = arith.constant dense<0.000000e+00> : vector<2x2048xf32>
    %13 = tpu.matmul %10, %12, %cst_10 {dimension_numbers = #tpu.dot_dimension_numbers<[1], [0], [0], [1], [0, 0, 1, 1], [], []>} : vector<2x256xbf16>, vector<256x2048xbf16>, vector<2x2048xf32> -> vector<2x2048xf32>
    %c0_11 = arith.constant 0 : index
    %c0_12 = arith.constant 0 : index
    %14 = vector.load %arg5[%c0_11, %c0_12] : memref<2x2048xf32, #tpu.memory_space<vmem>>, vector<1x2048xf32>
    %15 = vector.broadcast %14 : vector<1x2048xf32> to vector<2x2048xf32>
    %16 = arith.addf %13, %15 : vector<2x2048xf32>
    %17 = vector.extract_strided_slice %16 {offsets = [0, 0], sizes = [2, 1024], strides = [1, 1]} : vector<2x2048xf32> to vector<2x1024xf32>
    %18 = math.tanh %17 : vector<2x1024xf32>
    %19 = vector.extract_strided_slice %16 {offsets = [0, 1024], sizes = [2, 1024], strides = [1, 1]} : vector<2x2048xf32> to vector<2x1024xf32>
    %20 = math.exp %18 : vector<2x1024xf32>
    %21 = arith.mulf %0, %20 : vector<2x1024xf32>
    %22 = arith.addf %21, %19 : vector<2x1024xf32>
    %cst_13 = arith.constant dense<0.000000e+00> : vector<2xf32>
    %23 = vector.multi_reduction <add>, %18, %cst_13 [1] : vector<2x1024xf32> to vector<2xf32>
    %24 = vector.shape_cast %23 : vector<2xf32> to vector<2x1xf32>
    %25 = arith.addf %1, %24 : vector<2x1xf32>
    %26 = arith.truncf %22 : vector<2x1024xf32> to vector<2x1024xbf16>
    %c1 = arith.constant 1 : index
    %c0_14 = arith.constant 0 : index
    %c0_15 = arith.constant 0 : index
    %27 = vector.load %arg2[%c1, %c0_14, %c0_15] : memref<2x1024x256xbf16, #tpu.memory_space<vmem>>, vector<1x1024x256xbf16>
    %28 = vector.shape_cast %27 : vector<1x1024x256xbf16> to vector<1024x256xbf16>
    %cst_16 = arith.constant dense<0.000000e+00> : vector<2x256xf32>
    %29 = tpu.matmul %26, %28, %cst_16 {dimension_numbers = #tpu.dot_dimension_numbers<[1], [0], [0], [1], [0, 0, 1, 1], [], []>} : vector<2x1024xbf16>, vector<1024x256xbf16>, vector<2x256xf32> -> vector<2x256xf32>
    %c1_17 = arith.constant 1 : index
    %c0_18 = arith.constant 0 : index
    %30 = vector.load %arg3[%c1_17, %c0_18] : memref<2x256xf32, #tpu.memory_space<vmem>>, vector<1x256xf32>
    %31 = vector.broadcast %30 : vector<1x256xf32> to vector<2x256xf32>
    %32 = arith.addf %29, %31 : vector<2x256xf32>
    %33 = arith.truncf %32 : vector<2x256xf32> to vector<2x256xbf16>
    %34 = math.tanh %33 : vector<2x256xbf16>
    %c1_19 = arith.constant 1 : index
    %c0_20 = arith.constant 0 : index
    %c0_21 = arith.constant 0 : index
    %35 = vector.load %arg4[%c1_19, %c0_20, %c0_21] : memref<2x256x2048xbf16, #tpu.memory_space<vmem>>, vector<1x256x2048xbf16>
    %36 = vector.shape_cast %35 : vector<1x256x2048xbf16> to vector<256x2048xbf16>
    %cst_22 = arith.constant dense<0.000000e+00> : vector<2x2048xf32>
    %37 = tpu.matmul %34, %36, %cst_22 {dimension_numbers = #tpu.dot_dimension_numbers<[1], [0], [0], [1], [0, 0, 1, 1], [], []>} : vector<2x256xbf16>, vector<256x2048xbf16>, vector<2x2048xf32> -> vector<2x2048xf32>
    %c1_23 = arith.constant 1 : index
    %c0_24 = arith.constant 0 : index
    %38 = vector.load %arg5[%c1_23, %c0_24] : memref<2x2048xf32, #tpu.memory_space<vmem>>, vector<1x2048xf32>
    %39 = vector.broadcast %38 : vector<1x2048xf32> to vector<2x2048xf32>
    %40 = arith.addf %37, %39 : vector<2x2048xf32>
    %41 = vector.extract_strided_slice %40 {offsets = [0, 0], sizes = [2, 1024], strides = [1, 1]} : vector<2x2048xf32> to vector<2x1024xf32>
    %42 = math.tanh %41 : vector<2x1024xf32>
    %43 = vector.extract_strided_slice %40 {offsets = [0, 1024], sizes = [2, 1024], strides = [1, 1]} : vector<2x2048xf32> to vector<2x1024xf32>
    %44 = math.exp %42 : vector<2x1024xf32>
    %45 = arith.mulf %22, %44 : vector<2x1024xf32>
    %46 = arith.addf %45, %43 : vector<2x1024xf32>
    %cst_25 = arith.constant dense<0.000000e+00> : vector<2xf32>
    %47 = vector.multi_reduction <add>, %42, %cst_25 [1] : vector<2x1024xf32> to vector<2xf32>
    %48 = vector.shape_cast %47 : vector<2xf32> to vector<2x1xf32>
    %49 = arith.addf %25, %48 : vector<2x1xf32>
    %c0_26 = arith.constant 0 : index
    %c0_27 = arith.constant 0 : index
    %50 = vector.load %arg6[%c0_26, %c0_27] : memref<2x1024xf32, #tpu.memory_space<vmem>>, vector<2x1024xf32>
    tpu.vector_store %arg6[%c0_26, %c0_27], %46 {strides = array<i32>} : memref<2x1024xf32, #tpu.memory_space<vmem>>, vector<2x1024xf32>,
    %51 = vector.shape_cast %49 : vector<2x1xf32> to vector<2x1xf32>
    %52 = vector.broadcast %51 : vector<2x1xf32> to vector<2x128xf32>
    %c0_28 = arith.constant 0 : index
    %c0_29 = arith.constant 0 : index
    %53 = vector.load %arg7[%c0_28, %c0_29] : memref<2x128xf32, #tpu.memory_space<vmem>>, vector<2x128xf32>
    tpu.vector_store %arg7[%c0_28, %c0_29], %52 {strides = array<i32>} : memref<2x128xf32, #tpu.memory_space<vmem>>, vector<2x128xf32>,
    return
  }
  func.func @transform_0(%arg0: i32) -> (i32, i32) {
    %c0_i32 = arith.constant 0 : i32
    %c0_i32_0 = arith.constant 0 : i32
    return %arg0, %c0_i32 : i32, i32
  }
  func.func @transform_1(%arg0: i32) -> (i32, i32, i32) {
    %c0_i32 = arith.constant 0 : i32
    %c0_i32_0 = arith.constant 0 : i32
    %c0_i32_1 = arith.constant 0 : i32
    %c0_i32_2 = arith.constant 0 : i32
    return %c0_i32, %c0_i32_0, %c0_i32_1 : i32, i32, i32
  }
  func.func @transform_2(%arg0: i32) -> (i32, i32) {
    %c0_i32 = arith.constant 0 : i32
    %c0_i32_0 = arith.constant 0 : i32
    %c0_i32_1 = arith.constant 0 : i32
    return %c0_i32, %c0_i32_0 : i32, i32
  }
  func.func @transform_3(%arg0: i32) -> (i32, i32, i32) {
    %c0_i32 = arith.constant 0 : i32
    %c0_i32_0 = arith.constant 0 : i32
    %c0_i32_1 = arith.constant 0 : i32
    %c0_i32_2 = arith.constant 0 : i32
    return %c0_i32, %c0_i32_0, %c0_i32_1 : i32, i32, i32
  }
  func.func @transform_4(%arg0: i32) -> (i32, i32) {
    %c0_i32 = arith.constant 0 : i32
    %c0_i32_0 = arith.constant 0 : i32
    %c0_i32_1 = arith.constant 0 : i32
    return %c0_i32, %c0_i32_0 : i32, i32
  }
  func.func @transform_5(%arg0: i32) -> (i32, i32) {
    %c0_i32 = arith.constant 0 : i32
    %c0_i32_0 = arith.constant 0 : i32
    return %arg0, %c0_i32 : i32, i32
  }
  func.func @transform_6(%arg0: i32) -> (i32, i32) {
    %c0_i32 = arith.constant 0 : i32
    %c0_i32_0 = arith.constant 0 : i32
    return %arg0, %c0_i32 : i32, i32
  }
}

</mosaic_0001>

<llo_original>
// kernel: tpu_custom_call.1
$region0: #{tpu_custom_call.1}
  #allocation0 [shape = 'u32[]', space=smem, size = 0x4, offset = 0x4, fixed_abs, tag = 'smem constant byte address 0x4 - core index']
  #allocation1 [shape = 'u32[144,128]{1,0:T(1,128)}', space=vmem, size = 0x12000, scoped, tag = 'internal scratch']
  %s0 = inlined_call_operand.hbm [shape: f32[2,1024], index: 0, kind: input, shape index: {}]
  %s1 = inlined_call_operand.hbm [shape: bf16[2,1024,256], index: 1, kind: input, shape index: {}]
  %s2 = inlined_call_operand.hbm [shape: f32[2,256], index: 2, kind: input, shape index: {}]
  %s3 = inlined_call_operand.hbm [shape: bf16[2,256,2048], index: 3, kind: input, shape index: {}]
  %s4 = inlined_call_operand.hbm [shape: f32[2,2048], index: 4, kind: input, shape index: {}]
  %s5 = inlined_call_operand.hbm [shape: f32[2,1024], index: 5, kind: output, shape index: {0}]
  %s6 = inlined_call_operand.hbm [shape: f32[2,128], index: 6, kind: output, shape index: {1}]
  %7 = xla_tuple %s5, %s6
  %s8 = sld [smem:[#allocation0]]
  $region58: #{tpu_custom_call.1} parent=0
    _
  %s10 = ssub.s32 1, %s8
  %s11 = scalar_select 0, %s10, %s8
  $region1: #{tpu_custom_call.1} parent=0
    #allocation2 [shape = 'u8[8192]{0}', space=vmem, size = 0x2000, scoped, tag = 'input window, operand 0, single buffered']
    #allocation3 [shape = 's32[1]{0}', space=sflag, size = 0x4, scoped, tag = 'scoped memory for tpu_custom_call.1']
    #allocation4 [shape = 's32[1]{0}', space=sflag, size = 0x4, scoped, tag = 'scoped memory for tpu_custom_call.1']
    #allocation5 [shape = 'u8[1048576]{0}', space=vmem, size = 0x100000, scoped, tag = 'input window, operand 1, single buffered']
    #allocation6 [shape = 's32[1]{0}', space=sflag, size = 0x4, scoped, tag = 'scoped memory for tpu_custom_call.1']
    #allocation7 [shape = 'u8[2048]{0}', space=vmem, size = 0x800, scoped, tag = 'input window, operand 2, single buffered']
    #allocation8 [shape = 'u8[2097152]{0}', space=vmem, size = 0x200000, scoped, tag = 'input window, operand 3, single buffered']
    #allocation9 [shape = 's32[1]{0}', space=sflag, size = 0x4, scoped, tag = 'scoped memory for tpu_custom_call.1']
    #allocation10 [shape = 'u8[16384]{0}', space=vmem, size = 0x4000, scoped, tag = 'input window, operand 4, single buffered']
    #allocation11 [shape = 'u8[8192]{0}', space=vmem, size = 0x2000, scoped, tag = 'output window, operand 0, single buffered']
    #allocation12 [shape = 'u8[1024]{0}', space=vmem, size = 0x400, scoped, tag = 'output window, operand 1, single buffered']
    #allocation13 [shape = 's32[1]{0}', space=sflag, size = 0x4, scoped, tag = 'scoped memory for tpu_custom_call.1']
    %12 = vsyncpa [#allocation3], 0
    %13 = vsyncpa [#allocation6], 0
    %14 = vsyncpa [#allocation9], 0
    %15 = vsyncpa [#allocation4], 0
    %16 = vsyncpa [#allocation13], 0
    // Predicated region
    $region2: #{tpu_custom_call.1} parent=1 // pred_check
      _
    $region3: #{tpu_custom_call.1} parent=1 // pred_check_branch
      %18 = sbr.rel (0) target = $region5
    $region4: #{tpu_custom_call.1} parent=1 // pred_region
      %s20 = ssub.s32 256, 256
      %21 = vsyncadd [#allocation3], %s20
      %s23 = sshll.u32 [#allocation2], 4
      %s24 = int_to_ptr.vmem [resolvable:$true] %s23
      %26 = dma.hbm_to_vmem [thread:$0]  %s0, 256, %s24, [#allocation3]
    $region5: #{tpu_custom_call.1} parent=1 // pred_fallthru
      _
    // Predicated region
    $region6: #{tpu_custom_call.1} parent=1 // pred_check
      _
    $region7: #{tpu_custom_call.1} parent=1 // pred_check_branch
      %28 = sbr.rel (0) target = $region9
    $region8: #{tpu_custom_call.1} parent=1 // pred_region
      %s30 = ssub.s32 32768, 32768
      %31 = vsyncadd [#allocation6], %s30
      %s32 = sshll.u32 [#allocation5], 4
      %s33 = int_to_ptr.vmem [resolvable:$true] %s32
      %38 = dma.hbm_to_vmem [thread:$0]  %s1, 32768, %s33, [#allocation6], 128, 128, 8
    $region9: #{tpu_custom_call.1} parent=1 // pred_fallthru
      _
    // Predicated region
    $region10: #{tpu_custom_call.1} parent=1 // pred_check
      _
    $region11: #{tpu_custom_call.1} parent=1 // pred_check_branch
      %40 = sbr.rel (0) target = $region13
    $region12: #{tpu_custom_call.1} parent=1 // pred_region
      %s42 = ssub.s32 64, 64
      %43 = vsyncadd [#allocation6], %s42
      %s45 = sshll.u32 [#allocation7], 4
      %s46 = int_to_ptr.vmem [resolvable:$true] %s45
      %48 = dma.hbm_to_vmem [thread:$0]  %s2, 64, %s46, [#allocation6]
    $region13: #{tpu_custom_call.1} parent=1 // pred_fallthru
      _
    // Predicated region
    $region14: #{tpu_custom_call.1} parent=1 // pred_check
      _
    $region15: #{tpu_custom_call.1} parent=1 // pred_check_branch
      %50 = sbr.rel (0) target = $region17
    $region16: #{tpu_custom_call.1} parent=1 // pred_region
      %s52 = ssub.s32 65536, 65536
      %53 = vsyncadd [#allocation9], %s52
      %s54 = sshll.u32 [#allocation8], 4
      %s55 = int_to_ptr.vmem [resolvable:$true] %s54
      %60 = dma.hbm_to_vmem [thread:$0]  %s3, 65536, %s55, [#allocation9], 1024, 1024, 64
    $region17: #{tpu_custom_call.1} parent=1 // pred_fallthru
      _
    // Predicated region
    $region18: #{tpu_custom_call.1} parent=1 // pred_check
      _
    $region19: #{tpu_custom_call.1} parent=1 // pred_check_branch
      %62 = sbr.rel (0) target = $region21
    $region20: #{tpu_custom_call.1} parent=1 // pred_region
      %s64 = ssub.s32 512, 512
      %65 = vsyncadd [#allocation9], %s64
      %s67 = sshll.u32 [#allocation10], 4
      %s68 = int_to_ptr.vmem [resolvable:$true] %s67
      %70 = dma.hbm_to_vmem [thread:$0]  %s4, 512, %s68, [#allocation9]
    $region21: #{tpu_custom_call.1} parent=1 // pred_fallthru
      _
    // Predicated region
    $region22: #{tpu_custom_call.1} parent=1 // pred_check
      _
    $region23: #{tpu_custom_call.1} parent=1 // pred_check_branch
      %72 = sbr.rel (0) target = $region25
    $region24: #{tpu_custom_call.1} parent=1 // pred_region
      %73 = dma.done [#allocation3], 256
    $region25: #{tpu_custom_call.1} parent=1 // pred_fallthru
      _
    // Predicated region
    $region26: #{tpu_custom_call.1} parent=1 // pred_check
      _
    $region27: #{tpu_custom_call.1} parent=1 // pred_check_branch
      %75 = sbr.rel (0) target = $region29
    $region28: #{tpu_custom_call.1} parent=1 // pred_region
      %76 = dma.done [#allocation6], 32768
    $region29: #{tpu_custom_call.1} parent=1 // pred_fallthru
      _
    // Predicated region
    $region30: #{tpu_custom_call.1} parent=1 // pred_check
      _
    $region31: #{tpu_custom_call.1} parent=1 // pred_check_branch
      %78 = sbr.rel (0) target = $region33
    $region32: #{tpu_custom_call.1} parent=1 // pred_region
      %79 = dma.done [#allocation6], 64
    $region33: #{tpu_custom_call.1} parent=1 // pred_fallthru
      _
    // Predicated region
    $region34: #{tpu_custom_call.1} parent=1 // pred_check
      _
    $region35: #{tpu_custom_call.1} parent=1 // pred_check_branch
      %81 = sbr.rel (0) target = $region37
    $region36: #{tpu_custom_call.1} parent=1 // pred_region
      %82 = dma.done [#allocation9], 65536
    $region37: #{tpu_custom_call.1} parent=1 // pred_fallthru
      _
    // Predicated region
    $region38: #{tpu_custom_call.1} parent=1 // pred_check
      _
    $region39: #{tpu_custom_call.1} parent=1 // pred_check_branch
      %84 = sbr.rel (0) target = $region41
    $region40: #{tpu_custom_call.1} parent=1 // pred_region
      %85 = dma.done [#allocation9], 512
    $region41: #{tpu_custom_call.1} parent=1 // pred_fallthru
      _
    %v86 = vld [vmem:[#allocation2] sm:$0xff]
    %v87 = vld [vmem:[#allocation2 + $0x8] sm:$0xff]
    %v90 = vcombine.high %v86, %v86
    %v92 = vunpack.c.l.s4 1983009808
    %v93 = vunpack.c.0.s8 %v92
    %v94 = vlaneseq
    %v95 = vshrl.u32 %v94, 7
    %v96 = vsub.s32 %v93, %v95
    %v97 = vrot.slane %v86, %v96
    %v99 = vunpack.c.l.s4 1983009808
    %v100 = vunpack.c.0.s8 %v99
    %v101 = vlaneseq
    %v102 = vshrl.u32 %v101, 7
    %v103 = vsub.s32 %v100, %v102
    %v104 = vrot.slane %v90, %v103
    %v105 = vcombine.high %v97, %v97
    %v106 = vcombine.high %v104, %v104
    %v107 = vcombine.high %v87, %v87
    %v109 = vunpack.c.l.s4 1983009808
    %v110 = vunpack.c.0.s8 %v109
    %v111 = vlaneseq
    %v112 = vshrl.u32 %v111, 7
    %v113 = vsub.s32 %v110, %v112
    %v114 = vrot.slane %v87, %v113
    %v116 = vunpack.c.l.s4 1983009808
    %v117 = vunpack.c.0.s8 %v116
    %v118 = vlaneseq
    %v119 = vshrl.u32 %v118, 7
    %v120 = vsub.s32 %v117, %v119
    %v121 = vrot.slane %v107, %v120
    %v122 = vcombine.high %v114, %v114
    %v123 = vcombine.high %v121, %v121
    %v132 = vpack.c.bf16 %v97, %v97
    %v133 = vpack.c.bf16 %v105, %v105
    %v134 = vpack.c.bf16 %v104, %v104
    %v135 = vpack.c.bf16 %v106, %v106
    %v136 = vpack.c.bf16 %v114, %v114
    %v137 = vpack.c.bf16 %v122, %v122
    %v138 = vpack.c.bf16 %v121, %v121
    %v139 = vpack.c.bf16 %v123, %v123
    %v140 = vld [vmem:[#allocation5] sm:$0xff]
    %v141 = vld [vmem:[#allocation5 + $0x8] sm:$0xff]
    %v142 = vld [vmem:[#allocation5 + $0x10] sm:$0xff]
    %v143 = vld [vmem:[#allocation5 + $0x18] sm:$0xff]
    %v144 = vld [vmem:[#allocation5 + $0x20] sm:$0xff]
    %v145 = vld [vmem:[#allocation5 + $0x28] sm:$0xff]
    %v146 = vld [vmem:[#allocation5 + $0x30] sm:$0xff]
    %v147 = vld [vmem:[#allocation5 + $0x38] sm:$0xff]
    %v148 = vld [vmem:[#allocation5 + $0x40] sm:$0xff]
    %v149 = vld [vmem:[#allocation5 + $0x48] sm:$0xff]
    %v150 = vld [vmem:[#allocation5 + $0x50] sm:$0xff]
    %v151 = vld [vmem:[#allocation5 + $0x58] sm:$0xff]
    %v152 = vld [vmem:[#allocation5 + $0x60] sm:$0xff]
    %v153 = vld [vmem:[#allocation5 + $0x68] sm:$0xff]
    %v154 = vld [vmem:[#allocation5 + $0x70] sm:$0xff]
    %v155 = vld [vmem:[#allocation5 + $0x78] sm:$0xff]
    %v156 = vld [vmem:[#allocation5 + $0x80] sm:$0xff]
    %v157 = vld [vmem:[#allocation5 + $0x88] sm:$0xff]
    %v158 = vld [vmem:[#allocation5 + $0x90] sm:$0xff]
    %v159 = vld [vmem:[#allocation5 + $0x98] sm:$0xff]
    %v160 = vld [vmem:[#allocation5 + $0xa0] sm:$0xff]
    %v161 = vld [vmem:[#allocation5 + $0xa8] sm:$0xff]
    %v162 = vld [vmem:[#allocation5 + $0xb0] sm:$0xff]
    %v163 = vld [vmem:[#allocation5 + $0xb8] sm:$0xff]
    %v164 = vld [vmem:[#allocation5 + $0xc0] sm:$0xff]
    %v165 = vld [vmem:[#allocation5 + $0xc8] sm:$0xff]
    %v166 = vld [vmem:[#allocation5 + $0xd0] sm:$0xff]
    %v167 = vld [vmem:[#allocation5 + $0xd8] sm:$0xff]
    %v168 = vld [vmem:[#allocation5 + $0xe0] sm:$0xff]
    %v169 = vld [vmem:[#allocation5 + $0xe8] sm:$0xff]
    %v170 = vld [vmem:[#allocation5 + $0xf0] sm:$0xff]
    %v171 = vld [vmem:[#allocation5 + $0xf8] sm:$0xff]
    %v172 = vld [vmem:[#allocation5 + $0x100] sm:$0xff]
    %v173 = vld [vmem:[#allocation5 + $0x108] sm:$0xff]
    %v174 = vld [vmem:[#allocation5 + $0x110] sm:$0xff]
    %v175 = vld [vmem:[#allocation5 + $0x118] sm:$0xff]
    %v176 = vld [vmem:[#allocation5 + $0x120] sm:$0xff]
    %v177 = vld [vmem:[#allocation5 + $0x128] sm:$0xff]
    %v178 = vld [vmem:[#allocation5 + $0x130] sm:$0xff]
    %v179 = vld [vmem:[#allocation5 + $0x138] sm:$0xff]
    %v180 = vld [vmem:[#allocation5 + $0x140] sm:$0xff]
    %v181 = vld [vmem:[#allocation5 + $0x148] sm:$0xff]
    %v182 = vld [vmem:[#allocation5 + $0x150] sm:$0xff]
    %v183 = vld [vmem:[#allocation5 + $0x158] sm:$0xff]
    %v184 = vld [vmem:[#allocation5 + $0x160] sm:$0xff]
    %v185 = vld [vmem:[#allocation5 + $0x168] sm:$0xff]
    %v186 = vld [vmem:[#allocation5 + $0x170] sm:$0xff]
    %v187 = vld [vmem:[#allocation5 + $0x178] sm:$0xff]
    %v188 = vld [vmem:[#allocation5 + $0x180] sm:$0xff]
    %v189 = vld [vmem:[#allocation5 + $0x188] sm:$0xff]
    %v190 = vld [vmem:[#allocation5 + $0x190] sm:$0xff]
    %v191 = vld [vmem:[#allocation5 + $0x198] sm:$0xff]
    %v192 = vld [vmem:[#allocation5 + $0x1a0] sm:$0xff]
    %v193 = vld [vmem:[#allocation5 + $0x1a8] sm:$0xff]
    %v194 = vld [vmem:[#allocation5 + $0x1b0] sm:$0xff]
    %v195 = vld [vmem:[#allocation5 + $0x1b8] sm:$0xff]
    %v196 = vld [vmem:[#allocation5 + $0x1c0] sm:$0xff]
    %v197 = vld [vmem:[#allocation5 + $0x1c8] sm:$0xff]
    %v198 = vld [vmem:[#allocation5 + $0x1d0] sm:$0xff]
    %v199 = vld [vmem:[#allocation5 + $0x1d8] sm:$0xff]
    %v200 = vld [vmem:[#allocation5 + $0x1e0] sm:$0xff]
    %v201 = vld [vmem:[#allocation5 + $0x1e8] sm:$0xff]
    %v202 = vld [vmem:[#allocation5 + $0x1f0] sm:$0xff]
    %v203 = vld [vmem:[#allocation5 + $0x1f8] sm:$0xff]
    %v204 = vld [vmem:[#allocation5 + $0x200] sm:$0xff]
    %v205 = vld [vmem:[#allocation5 + $0x208] sm:$0xff]
    %v206 = vld [vmem:[#allocation5 + $0x210] sm:$0xff]
    %v207 = vld [vmem:[#allocation5 + $0x218] sm:$0xff]
    %v208 = vld [vmem:[#allocation5 + $0x220] sm:$0xff]
    %v209 = vld [vmem:[#allocation5 + $0x228] sm:$0xff]
    %v210 = vld [vmem:[#allocation5 + $0x230] sm:$0xff]
    %v211 = vld [vmem:[#allocation5 + $0x238] sm:$0xff]
    %v212 = vld [vmem:[#allocation5 + $0x240] sm:$0xff]
    %v213 = vld [vmem:[#allocation5 + $0x248] sm:$0xff]
    %v214 = vld [vmem:[#allocation5 + $0x250] sm:$0xff]
    %v215 = vld [vmem:[#allocation5 + $0x258] sm:$0xff]
    %v216 = vld [vmem:[#allocation5 + $0x260] sm:$0xff]
    %v217 = vld [vmem:[#allocation5 + $0x268] sm:$0xff]
    %v218 = vld [vmem:[#allocation5 + $0x270] sm:$0xff]
    %v219 = vld [vmem:[#allocation5 + $0x278] sm:$0xff]
    %v220 = vld [vmem:[#allocation5 + $0x280] sm:$0xff]
    %v221 = vld [vmem:[#allocation5 + $0x288] sm:$0xff]
    %v222 = vld [vmem:[#allocation5 + $0x290] sm:$0xff]
    %v223 = vld [vmem:[#allocation5 + $0x298] sm:$0xff]
    %v224 = vld [vmem:[#allocation5 + $0x2a0] sm:$0xff]
    %v225 = vld [vmem:[#allocation5 + $0x2a8] sm:$0xff]
    %v226 = vld [vmem:[#allocation5 + $0x2b0] sm:$0xff]
    %v227 = vld [vmem:[#allocation5 + $0x2b8] sm:$0xff]
    %v228 = vld [vmem:[#allocation5 + $0x2c0] sm:$0xff]
    %v229 = vld [vmem:[#allocation5 + $0x2c8] sm:$0xff]
    %v230 = vld [vmem:[#allocation5 + $0x2d0] sm:$0xff]
    %v231 = vld [vmem:[#allocation5 + $0x2d8] sm:$0xff]
    %v232 = vld [vmem:[#allocation5 + $0x2e0] sm:$0xff]
    %v233 = vld [vmem:[#allocation5 + $0x2e8] sm:$0xff]
    %v234 = vld [vmem:[#allocation5 + $0x2f0] sm:$0xff]
    %v235 = vld [vmem:[#allocation5 + $0x2f8] sm:$0xff]
    %v236 = vld [vmem:[#allocation5 + $0x300] sm:$0xff]
    %v237 = vld [vmem:[#allocation5 + $0x308] sm:$0xff]
    %v238 = vld [vmem:[#allocation5 + $0x310] sm:$0xff]
    %v239 = vld [vmem:[#allocation5 + $0x318] sm:$0xff]
    %v240 = vld [vmem:[#allocation5 + $0x320] sm:$0xff]
    %v241 = vld [vmem:[#allocation5 + $0x328] sm:$0xff]
    %v242 = vld [vmem:[#allocation5 + $0x330] sm:$0xff]
    %v243 = vld [vmem:[#allocation5 + $0x338] sm:$0xff]
    %v244 = vld [vmem:[#allocation5 + $0x340] sm:$0xff]
    %v245 = vld [vmem:[#allocation5 + $0x348] sm:$0xff]
    %v246 = vld [vmem:[#allocation5 + $0x350] sm:$0xff]
    %v247 = vld [vmem:[#allocation5 + $0x358] sm:$0xff]
    %v248 = vld [vmem:[#allocation5 + $0x360] sm:$0xff]
    %v249 = vld [vmem:[#allocation5 + $0x368] sm:$0xff]
    %v250 = vld [vmem:[#allocation5 + $0x370] sm:$0xff]
    %v251 = vld [vmem:[#allocation5 + $0x378] sm:$0xff]
    %v252 = vld [vmem:[#allocation5 + $0x380] sm:$0xff]
    %v253 = vld [vmem:[#allocation5 + $0x388] sm:$0xff]
    %v254 = vld [vmem:[#allocation5 + $0x390] sm:$0xff]
    %v255 = vld [vmem:[#allocation5 + $0x398] sm:$0xff]
    %v256 = vld [vmem:[#allocation5 + $0x3a0] sm:$0xff]
    %v257 = vld [vmem:[#allocation5 + $0x3a8] sm:$0xff]
    %v258 = vld [vmem:[#allocation5 + $0x3b0] sm:$0xff]
    %v259 = vld [vmem:[#allocation5 + $0x3b8] sm:$0xff]
    %v260 = vld [vmem:[#allocation5 + $0x3c0] sm:$0xff]
    %v261 = vld [vmem:[#allocation5 + $0x3c8] sm:$0xff]
    %v262 = vld [vmem:[#allocation5 + $0x3d0] sm:$0xff]
    %v263 = vld [vmem:[#allocation5 + $0x3d8] sm:$0xff]
    %v264 = vld [vmem:[#allocation5 + $0x3e0] sm:$0xff]
    %v265 = vld [vmem:[#allocation5 + $0x3e8] sm:$0xff]
    %v266 = vld [vmem:[#allocation5 + $0x3f0] sm:$0xff]
    %v267 = vld [vmem:[#allocation5 + $0x3f8] sm:$0xff]
    %v268 = vld [vmem:[#allocation7] ss:$2 sm:$0x3]
    %v270 = vlaneseq
    %v271 = vshrl.u32 %v270, 7
    %v272 = vsub.s32 0, %v271
    %v273 = vrot.slane %v268, %v272
    %v274 = vlaneseq
    %v275 = vshrl.u32 %v274, 7
    %v276 = vsub.s32 1, %v275
    %v277 = vrot.slane %v268, %v276
    %v408 = vunpack.c.l.b16 %v140
    %v409 = vunpack.c.h.b16 %v140
    %v410 = vunpack.c.l.b16 %v141
    %v411 = vunpack.c.h.b16 %v141
    %v412 = vunpack.c.l.b16 %v142
    %v413 = vunpack.c.h.b16 %v142
    %v414 = vunpack.c.l.b16 %v143
    %v415 = vunpack.c.h.b16 %v143
    %v416 = vunpack.c.l.b16 %v144
    %v417 = vunpack.c.h.b16 %v144
    %v418 = vunpack.c.l.b16 %v145
    %v419 = vunpack.c.h.b16 %v145
    %v420 = vunpack.c.l.b16 %v146
    %v421 = vunpack.c.h.b16 %v146
    %v422 = vunpack.c.l.b16 %v147
    %v423 = vunpack.c.h.b16 %v147
    %v424 = vunpack.c.l.b16 %v148
    %v425 = vunpack.c.h.b16 %v148
    %v426 = vunpack.c.l.b16 %v149
    %v427 = vunpack.c.h.b16 %v149
    %v428 = vunpack.c.l.b16 %v150
    %v429 = vunpack.c.h.b16 %v150
    %v430 = vunpack.c.l.b16 %v151
    %v431 = vunpack.c.h.b16 %v151
    %v432 = vunpack.c.l.b16 %v152
    %v433 = vunpack.c.h.b16 %v152
    %v434 = vunpack.c.l.b16 %v153
    %v435 = vunpack.c.h.b16 %v153
    %v436 = vunpack.c.l.b16 %v154
    %v437 = vunpack.c.h.b16 %v154
    %v438 = vunpack.c.l.b16 %v155
    %v439 = vunpack.c.h.b16 %v155
    %v440 = vunpack.c.l.b16 %v156
    %v441 = vunpack.c.h.b16 %v156
    %v442 = vunpack.c.l.b16 %v157
    %v443 = vunpack.c.h.b16 %v157
    %v444 = vunpack.c.l.b16 %v158
    %v445 = vunpack.c.h.b16 %v158
    %v446 = vunpack.c.l.b16 %v159
    %v447 = vunpack.c.h.b16 %v159
    %v448 = vunpack.c.l.b16 %v160
    %v449 = vunpack.c.h.b16 %v160
    %v450 = vunpack.c.l.b16 %v161
    %v451 = vunpack.c.h.b16 %v161
    %v452 = vunpack.c.l.b16 %v162
    %v453 = vunpack.c.h.b16 %v162
    %v454 = vunpack.c.l.b16 %v163
    %v455 = vunpack.c.h.b16 %v163
    %v456 = vunpack.c.l.b16 %v164
    %v457 = vunpack.c.h.b16 %v164
    %v458 = vunpack.c.l.b16 %v165
    %v459 = vunpack.c.h.b16 %v165
    %v460 = vunpack.c.l.b16 %v166
    %v461 = vunpack.c.h.b16 %v166
    %v462 = vunpack.c.l.b16 %v167
    %v463 = vunpack.c.h.b16 %v167
    %v464 = vunpack.c.l.b16 %v168
    %v465 = vunpack.c.h.b16 %v168
    %v466 = vunpack.c.l.b16 %v169
    %v467 = vunpack.c.h.b16 %v169
    %v468 = vunpack.c.l.b16 %v170
    %v469 = vunpack.c.h.b16 %v170
    %v470 = vunpack.c.l.b16 %v171
    %v471 = vunpack.c.h.b16 %v171
    %v472 = vunpack.c.l.b16 %v172
    %v473 = vunpack.c.h.b16 %v172
    %v474 = vunpack.c.l.b16 %v173
    %v475 = vunpack.c.h.b16 %v173
    %v476 = vunpack.c.l.b16 %v174
    %v477 = vunpack.c.h.b16 %v174
    %v478 = vunpack.c.l.b16 %v175
    %v479 = vunpack.c.h.b16 %v175
    %v480 = vunpack.c.l.b16 %v176
    %v481 = vunpack.c.h.b16 %v176
    %v482 = vunpack.c.l.b16 %v177
    %v483 = vunpack.c.h.b16 %v177
    %v484 = vunpack.c.l.b16 %v178
    %v485 = vunpack.c.h.b16 %v178
    %v486 = vunpack.c.l.b16 %v179
    %v487 = vunpack.c.h.b16 %v179
    %v488 = vunpack.c.l.b16 %v180
    %v489 = vunpack.c.h.b16 %v180
    %v490 = vunpack.c.l.b16 %v181
    %v491 = vunpack.c.h.b16 %v181
    %v492 = vunpack.c.l.b16 %v182
    %v493 = vunpack.c.h.b16 %v182
    %v494 = vunpack.c.l.b16 %v183
    %v495 = vunpack.c.h.b16 %v183
    %v496 = vunpack.c.l.b16 %v184
    %v497 = vunpack.c.h.b16 %v184
    %v498 = vunpack.c.l.b16 %v185
    %v499 = vunpack.c.h.b16 %v185
    %v500 = vunpack.c.l.b16 %v186
    %v501 = vunpack.c.h.b16 %v186
    %v502 = vunpack.c.l.b16 %v187
    %v503 = vunpack.c.h.b16 %v187
    %v504 = vunpack.c.l.b16 %v188
    %v505 = vunpack.c.h.b16 %v188
    %v506 = vunpack.c.l.b16 %v189
    %v507 = vunpack.c.h.b16 %v189
    %v508 = vunpack.c.l.b16 %v190
    %v509 = vunpack.c.h.b16 %v190
    %v510 = vunpack.c.l.b16 %v191
    %v511 = vunpack.c.h.b16 %v191
    %v512 = vunpack.c.l.b16 %v192
    %v513 = vunpack.c.h.b16 %v192
    %v514 = vunpack.c.l.b16 %v193
    %v515 = vunpack.c.h.b16 %v193
    %v516 = vunpack.c.l.b16 %v194
    %v517 = vunpack.c.h.b16 %v194
    %v518 = vunpack.c.l.b16 %v195
    %v519 = vunpack.c.h.b16 %v195
    %v520 = vunpack.c.l.b16 %v196
    %v521 = vunpack.c.h.b16 %v196
    %v522 = vunpack.c.l.b16 %v197
    %v523 = vunpack.c.h.b16 %v197
    %v524 = vunpack.c.l.b16 %v198
    %v525 = vunpack.c.h.b16 %v198
    %v526 = vunpack.c.l.b16 %v199
    %v527 = vunpack.c.h.b16 %v199
    %v528 = vunpack.c.l.b16 %v200
    %v529 = vunpack.c.h.b16 %v200
    %v530 = vunpack.c.l.b16 %v201
    %v531 = vunpack.c.h.b16 %v201
    %v532 = vunpack.c.l.b16 %v202
    %v533 = vunpack.c.h.b16 %v202
    %v534 = vunpack.c.l.b16 %v203
    %v535 = vunpack.c.h.b16 %v203
    %v536 = vunpack.c.l.b16 %v204
    %v537 = vunpack.c.h.b16 %v204
    %v538 = vunpack.c.l.b16 %v205
    %v539 = vunpack.c.h.b16 %v205
    %v540 = vunpack.c.l.b16 %v206
    %v541 = vunpack.c.h.b16 %v206
    %v542 = vunpack.c.l.b16 %v207
    %v543 = vunpack.c.h.b16 %v207
    %v544 = vunpack.c.l.b16 %v208
    %v545 = vunpack.c.h.b16 %v208
    %v546 = vunpack.c.l.b16 %v209
    %v547 = vunpack.c.h.b16 %v209
    %v548 = vunpack.c.l.b16 %v210
    %v549 = vunpack.c.h.b16 %v210
    %v550 = vunpack.c.l.b16 %v211
    %v551 = vunpack.c.h.b16 %v211
    %v552 = vunpack.c.l.b16 %v212
    %v553 = vunpack.c.h.b16 %v212
    %v554 = vunpack.c.l.b16 %v213
    %v555 = vunpack.c.h.b16 %v213
    %v556 = vunpack.c.l.b16 %v214
    %v557 = vunpack.c.h.b16 %v214
    %v558 = vunpack.c.l.b16 %v215
    %v559 = vunpack.c.h.b16 %v215
    %v560 = vunpack.c.l.b16 %v216
    %v561 = vunpack.c.h.b16 %v216
    %v562 = vunpack.c.l.b16 %v217
    %v563 = vunpack.c.h.b16 %v217
    %v564 = vunpack.c.l.b16 %v218
    %v565 = vunpack.c.h.b16 %v218
    %v566 = vunpack.c.l.b16 %v219
    %v567 = vunpack.c.h.b16 %v219
    %v568 = vunpack.c.l.b16 %v220
    %v569 = vunpack.c.h.b16 %v220
    %v570 = vunpack.c.l.b16 %v221
    %v571 = vunpack.c.h.b16 %v221
    %v572 = vunpack.c.l.b16 %v222
    %v573 = vunpack.c.h.b16 %v222
    %v574 = vunpack.c.l.b16 %v223
    %v575 = vunpack.c.h.b16 %v223
    %v576 = vunpack.c.l.b16 %v224
    %v577 = vunpack.c.h.b16 %v224
    %v578 = vunpack.c.l.b16 %v225
    %v579 = vunpack.c.h.b16 %v225
    %v580 = vunpack.c.l.b16 %v226
    %v581 = vunpack.c.h.b16 %v226
    %v582 = vunpack.c.l.b16 %v227
    %v583 = vunpack.c.h.b16 %v227
    %v584 = vunpack.c.l.b16 %v228
    %v585 = vunpack.c.h.b16 %v228
    %v586 = vunpack.c.l.b16 %v229
    %v587 = vunpack.c.h.b16 %v229
    %v588 = vunpack.c.l.b16 %v230
    %v589 = vunpack.c.h.b16 %v230
    %v590 = vunpack.c.l.b16 %v231
    %v591 = vunpack.c.h.b16 %v231
    %v592 = vunpack.c.l.b16 %v232
    %v593 = vunpack.c.h.b16 %v232
    %v594 = vunpack.c.l.b16 %v233
    %v595 = vunpack.c.h.b16 %v233
    %v596 = vunpack.c.l.b16 %v234
    %v597 = vunpack.c.h.b16 %v234
    %v598 = vunpack.c.l.b16 %v235
    %v599 = vunpack.c.h.b16 %v235
    %v600 = vunpack.c.l.b16 %v236
    %v601 = vunpack.c.h.b16 %v236
    %v602 = vunpack.c.l.b16 %v237
    %v603 = vunpack.c.h.b16 %v237
    %v604 = vunpack.c.l.b16 %v238
    %v605 = vunpack.c.h.b16 %v238
    %v606 = vunpack.c.l.b16 %v239
    %v607 = vunpack.c.h.b16 %v239
    %v608 = vunpack.c.l.b16 %v240
    %v609 = vunpack.c.h.b16 %v240
    %v610 = vunpack.c.l.b16 %v241
    %v611 = vunpack.c.h.b16 %v241
    %v612 = vunpack.c.l.b16 %v242
    %v613 = vunpack.c.h.b16 %v242
    %v614 = vunpack.c.l.b16 %v243
    %v615 = vunpack.c.h.b16 %v243
    %v616 = vunpack.c.l.b16 %v244
    %v617 = vunpack.c.h.b16 %v244
    %v618 = vunpack.c.l.b16 %v245
    %v619 = vunpack.c.h.b16 %v245
    %v620 = vunpack.c.l.b16 %v246
    %v621 = vunpack.c.h.b16 %v246
    %v622 = vunpack.c.l.b16 %v247
    %v623 = vunpack.c.h.b16 %v247
    %v624 = vunpack.c.l.b16 %v248
    %v625 = vunpack.c.h.b16 %v248
    %v626 = vunpack.c.l.b16 %v249
    %v627 = vunpack.c.h.b16 %v249
    %v628 = vunpack.c.l.b16 %v250
    %v629 = vunpack.c.h.b16 %v250
    %v630 = vunpack.c.l.b16 %v251
    %v631 = vunpack.c.h.b16 %v251
    %v632 = vunpack.c.l.b16 %v252
    %v633 = vunpack.c.h.b16 %v252
    %v634 = vunpack.c.l.b16 %v253
    %v635 = vunpack.c.h.b16 %v253
    %v636 = vunpack.c.l.b16 %v254
    %v637 = vunpack.c.h.b16 %v254
    %v638 = vunpack.c.l.b16 %v255
    %v639 = vunpack.c.h.b16 %v255
    %v640 = vunpack.c.l.b16 %v256
    %v641 = vunpack.c.h.b16 %v256
    %v642 = vunpack.c.l.b16 %v257
    %v643 = vunpack.c.h.b16 %v257
    %v644 = vunpack.c.l.b16 %v258
    %v645 = vunpack.c.h.b16 %v258
    %v646 = vunpack.c.l.b16 %v259
    %v647 = vunpack.c.h.b16 %v259
    %v648 = vunpack.c.l.b16 %v260
    %v649 = vunpack.c.h.b16 %v260
    %v650 = vunpack.c.l.b16 %v261
    %v651 = vunpack.c.h.b16 %v261
    %v652 = vunpack.c.l.b16 %v262
    %v653 = vunpack.c.h.b16 %v262
    %v654 = vunpack.c.l.b16 %v263
    %v655 = vunpack.c.h.b16 %v263
    %v656 = vunpack.c.l.b16 %v264
    %v657 = vunpack.c.h.b16 %v264
    %v658 = vunpack.c.l.b16 %v265
    %v659 = vunpack.c.h.b16 %v265
    %v660 = vunpack.c.l.b16 %v266
    %v661 = vunpack.c.h.b16 %v266
    %v662 = vunpack.c.l.b16 %v267
    %v663 = vunpack.c.h.b16 %v267
    %v664 = vpack.c.b16 %v410, %v408
    %v665 = vpack.c.b16 %v411, %v409
    %v666 = vpack.c.b16 %v414, %v412
    %v667 = vpack.c.b16 %v415, %v413
    %v668 = vpack.c.b16 %v418, %v416
    %v669 = vpack.c.b16 %v419, %v417
    %v670 = vpack.c.b16 %v422, %v420
    %v671 = vpack.c.b16 %v423, %v421
    %v672 = vpack.c.b16 %v426, %v424
    %v673 = vpack.c.b16 %v427, %v425
    %v674 = vpack.c.b16 %v430, %v428
    %v675 = vpack.c.b16 %v431, %v429
    %v676 = vpack.c.b16 %v434, %v432
    %v677 = vpack.c.b16 %v435, %v433
    %v678 = vpack.c.b16 %v438, %v436
    %v679 = vpack.c.b16 %v439, %v437
    %v680 = vpack.c.b16 %v442, %v440
    %v681 = vpack.c.b16 %v443, %v441
    %v682 = vpack.c.b16 %v446, %v444
    %v683 = vpack.c.b16 %v447, %v445
    %v684 = vpack.c.b16 %v450, %v448
    %v685 = vpack.c.b16 %v451, %v449
    %v686 = vpack.c.b16 %v454, %v452
    %v687 = vpack.c.b16 %v455, %v453
    %v688 = vpack.c.b16 %v458, %v456
    %v689 = vpack.c.b16 %v459, %v457
    %v690 = vpack.c.b16 %v462, %v460
    %v691 = vpack.c.b16 %v463, %v461
    %v692 = vpack.c.b16 %v466, %v464
    %v693 = vpack.c.b16 %v467, %v465
    %v694 = vpack.c.b16 %v470, %v468
    %v695 = vpack.c.b16 %v471, %v469
    %v696 = vpack.c.b16 %v474, %v472
    %v697 = vpack.c.b16 %v475, %v473
    %v698 = vpack.c.b16 %v478, %v476
    %v699 = vpack.c.b16 %v479, %v477
    %v700 = vpack.c.b16 %v482, %v480
    %v701 = vpack.c.b16 %v483, %v481
    %v702 = vpack.c.b16 %v486, %v484
    %v703 = vpack.c.b16 %v487, %v485
    %v704 = vpack.c.b16 %v490, %v488
    %v705 = vpack.c.b16 %v491, %v489
    %v706 = vpack.c.b16 %v494, %v492
    %v707 = vpack.c.b16 %v495, %v493
    %v708 = vpack.c.b16 %v498, %v496
    %v709 = vpack.c.b16 %v499, %v497
    %v710 = vpack.c.b16 %v502, %v500
    %v711 = vpack.c.b16 %v503, %v501
    %v712 = vpack.c.b16 %v506, %v504
    %v713 = vpack.c.b16 %v507, %v505
    %v714 = vpack.c.b16 %v510, %v508
    %v715 = vpack.c.b16 %v511, %v509
    %v716 = vpack.c.b16 %v514, %v512
    %v717 = vpack.c.b16 %v515, %v513
    %v718 = vpack.c.b16 %v518, %v516
    %v719 = vpack.c.b16 %v519, %v517
    %v720 = vpack.c.b16 %v522, %v520
    %v721 = vpack.c.b16 %v523, %v521
    %v722 = vpack.c.b16 %v526, %v524
    %v723 = vpack.c.b16 %v527, %v525
    %v724 = vpack.c.b16 %v530, %v528
    %v725 = vpack.c.b16 %v531, %v529
    %v726 = vpack.c.b16 %v534, %v532
    %v727 = vpack.c.b16 %v535, %v533
    %v728 = vpack.c.b16 %v538, %v536
    %v729 = vpack.c.b16 %v539, %v537
    %v730 = vpack.c.b16 %v542, %v540
    %v731 = vpack.c.b16 %v543, %v541
    %v732 = vpack.c.b16 %v546, %v544
    %v733 = vpack.c.b16 %v547, %v545
    %v734 = vpack.c.b16 %v550, %v548
    %v735 = vpack.c.b16 %v551, %v549
    %v736 = vpack.c.b16 %v554, %v552
    %v737 = vpack.c.b16 %v555, %v553
    %v738 = vpack.c.b16 %v558, %v556
    %v739 = vpack.c.b16 %v559, %v557
    %v740 = vpack.c.b16 %v562, %v560
    %v741 = vpack.c.b16 %v563, %v561
    %v742 = vpack.c.b16 %v566, %v564
    %v743 = vpack.c.b16 %v567, %v565
    %v744 = vpack.c.b16 %v570, %v568
    %v745 = vpack.c.b16 %v571, %v569
    %v746 = vpack.c.b16 %v574, %v572
    %v747 = vpack.c.b16 %v575, %v573
    %v748 = vpack.c.b16 %v578, %v576
    %v749 = vpack.c.b16 %v579, %v577
    %v750 = vpack.c.b16 %v582, %v580
    %v751 = vpack.c.b16 %v583, %v581
    %v752 = vpack.c.b16 %v586, %v584
    %v753 = vpack.c.b16 %v587, %v585
    %v754 = vpack.c.b16 %v590, %v588
    %v755 = vpack.c.b16 %v591, %v589
    %v756 = vpack.c.b16 %v594, %v592
    %v757 = vpack.c.b16 %v595, %v593
    %v758 = vpack.c.b16 %v598, %v596
    %v759 = vpack.c.b16 %v599, %v597
    %v760 = vpack.c.b16 %v602, %v600
    %v761 = vpack.c.b16 %v603, %v601
    %v762 = vpack.c.b16 %v606, %v604
    %v763 = vpack.c.b16 %v607, %v605
    %v764 = vpack.c.b16 %v610, %v608
    %v765 = vpack.c.b16 %v611, %v609
    %v766 = vpack.c.b16 %v614, %v612
    %v767 = vpack.c.b16 %v615, %v613
    %v768 = vpack.c.b16 %v618, %v616
    %v769 = vpack.c.b16 %v619, %v617
    %v770 = vpack.c.b16 %v622, %v620
    %v771 = vpack.c.b16 %v623, %v621
    %v772 = vpack.c.b16 %v626, %v624
    %v773 = vpack.c.b16 %v627, %v625
    %v774 = vpack.c.b16 %v630, %v628
    %v775 = vpack.c.b16 %v631, %v629
    %v776 = vpack.c.b16 %v634, %v632
    %v777 = vpack.c.b16 %v635, %v633
    %v778 = vpack.c.b16 %v638, %v636
    %v779 = vpack.c.b16 %v639, %v637
    %v780 = vpack.c.b16 %v642, %v640
    %v781 = vpack.c.b16 %v643, %v641
    %v782 = vpack.c.b16 %v646, %v644
    %v783 = vpack.c.b16 %v647, %v645
    %v784 = vpack.c.b16 %v650, %v648
    %v785 = vpack.c.b16 %v651, %v649
    %v786 = vpack.c.b16 %v654, %v652
    %v787 = vpack.c.b16 %v655, %v653
    %v788 = vpack.c.b16 %v658, %v656
    %v789 = vpack.c.b16 %v659, %v657
    %v790 = vpack.c.b16 %v662, %v660
    %v791 = vpack.c.b16 %v663, %v661
    %920 = vmatprep.subr.bf16.mxu0 %v679
    %921 = vmatpush1.bf16.msra.mxu0 %v678
    %922 = vmatprep.subr.bf16.mxu0 %v677
    %923 = vmatpush1.bf16.msra.mxu0 %v676
    %924 = vmatprep.subr.bf16.mxu0 %v675
    %925 = vmatpush1.bf16.msra.mxu0 %v674
    %926 = vmatprep.subr.bf16.mxu0 %v673
    %927 = vmatpush1.bf16.msra.mxu0 %v672
    %928 = vmatprep.subr.bf16.mxu0 %v671
    %929 = vmatpush1.bf16.msra.mxu0 %v670
    %930 = vmatprep.subr.bf16.mxu0 %v669
    %931 = vmatpush1.bf16.msra.mxu0 %v668
    %932 = vmatprep.subr.bf16.mxu0 %v667
    %933 = vmatpush1.bf16.msra.mxu0 %v666
    %934 = vmatprep.subr.bf16.mxu0 %v665
    %935 = vmatpush1.bf16.msra.mxu0 %v664
    %936 = vmatprep.subr.bf16.mxu0 %v695
    %937 = vmatpush2.bf16.msra.mxu0 %v694
    %938 = vmatprep.subr.bf16.mxu0 %v693
    %939 = vmatpush2.bf16.msra.mxu0 %v692
    %940 = vmatprep.subr.bf16.mxu0 %v691
    %941 = vmatpush2.bf16.msra.mxu0 %v690
    %942 = vmatprep.subr.bf16.mxu0 %v689
    %943 = vmatpush2.bf16.msra.mxu0 %v688
    %944 = vmatprep.subr.bf16.mxu0 %v687
    %945 = vmatpush2.bf16.msra.mxu0 %v686
    %946 = vmatprep.subr.bf16.mxu0 %v685
    %947 = vmatpush2.bf16.msra.mxu0 %v684
    %948 = vmatprep.subr.bf16.mxu0 %v683
    %949 = vmatpush2.bf16.msra.mxu0 %v682
    %950 = vmatprep.subr.bf16.mxu0 %v681
    %951 = vmatpush2.bf16.msra.mxu0 %v680
    %952 = vmatprep.mubr.bf16.mxu0 %v133
    %953 = vmatmul.mubr.bf16.gmra.mxu0 %v132
    %v954 = vpop.f32.mrf.mxu0
    %v955 = vadd.f32 %v273, %v954
    %v956 = vpop.f32.mrf.mxu0
    %v957 = vadd.f32 %v277, %v956
    %v958 = vpop.f32.mrf.mxu0
    %v959 = vpop.f32.mrf.mxu0
    %960 = vdwg.mxu0
    %961 = vmatprep.subr.bf16.mxu0 %v711
    %962 = vmatpush1.bf16.msra.mxu0 %v710
    %963 = vmatprep.subr.bf16.mxu0 %v709
    %964 = vmatpush1.bf16.msra.mxu0 %v708
    %965 = vmatprep.subr.bf16.mxu0 %v707
    %966 = vmatpush1.bf16.msra.mxu0 %v706
    %967 = vmatprep.subr.bf16.mxu0 %v705
    %968 = vmatpush1.bf16.msra.mxu0 %v704
    %969 = vmatprep.subr.bf16.mxu0 %v703
    %970 = vmatpush1.bf16.msra.mxu0 %v702
    %971 = vmatprep.subr.bf16.mxu0 %v701
    %972 = vmatpush1.bf16.msra.mxu0 %v700
    %973 = vmatprep.subr.bf16.mxu0 %v699
    %974 = vmatpush1.bf16.msra.mxu0 %v698
    %975 = vmatprep.subr.bf16.mxu0 %v697
    %976 = vmatpush1.bf16.msra.mxu0 %v696
    %977 = vmatprep.subr.bf16.mxu0 %v727
    %978 = vmatpush2.bf16.msra.mxu0 %v726
    %979 = vmatprep.subr.bf16.mxu0 %v725
    %980 = vmatpush2.bf16.msra.mxu0 %v724
    %981 = vmatprep.subr.bf16.mxu0 %v723
    %982 = vmatpush2.bf16.msra.mxu0 %v722
    %983 = vmatprep.subr.bf16.mxu0 %v721
    %984 = vmatpush2.bf16.msra.mxu0 %v720
    %985 = vmatprep.subr.bf16.mxu0 %v719
    %986 = vmatpush2.bf16.msra.mxu0 %v718
    %987 = vmatprep.subr.bf16.mxu0 %v717
    %988 = vmatpush2.bf16.msra.mxu0 %v716
    %989 = vmatprep.subr.bf16.mxu0 %v715
    %990 = vmatpush2.bf16.msra.mxu0 %v714
    %991 = vmatprep.subr.bf16.mxu0 %v713
    %992 = vmatpush2.bf16.msra.mxu0 %v712
    %993 = vmatprep.mubr.bf16.mxu0 %v135
    %994 = vmatmul.mubr.bf16.gmra.mxu0 %v134
    %v995 = vpop.f32.mrf.mxu0
    %v996 = vadd.f32 %v955, %v995
    %v997 = vpop.f32.mrf.mxu0
    %v998 = vadd.f32 %v957, %v997
    %v999 = vpop.f32.mrf.mxu0
    %v1000 = vpop.f32.mrf.mxu0
    %1001 = vdwg.mxu0
    %1002 = vmatprep.subr.bf16.mxu0 %v743
    %1003 = vmatpush1.bf16.msra.mxu0 %v742
    %1004 = vmatprep.subr.bf16.mxu0 %v741
    %1005 = vmatpush1.bf16.msra.mxu0 %v740
    %1006 = vmatprep.subr.bf16.mxu0 %v739
    %1007 = vmatpush1.bf16.msra.mxu0 %v738
    %1008 = vmatprep.subr.bf16.mxu0 %v737
    %1009 = vmatpush1.bf16.msra.mxu0 %v736
    %1010 = vmatprep.subr.bf16.mxu0 %v735
    %1011 = vmatpush1.bf16.msra.mxu0 %v734
    %1012 = vmatprep.subr.bf16.mxu0 %v733
    %1013 = vmatpush1.bf16.msra.mxu0 %v732
    %1014 = vmatprep.subr.bf16.mxu0 %v731
    %1015 = vmatpush1.bf16.msra.mxu0 %v730
    %1016 = vmatprep.subr.bf16.mxu0 %v729
    %1017 = vmatpush1.bf16.msra.mxu0 %v728
    %1018 = vmatprep.subr.bf16.mxu0 %v759
    %1019 = vmatpush2.bf16.msra.mxu0 %v758
    %1020 = vmatprep.subr.bf16.mxu0 %v757
    %1021 = vmatpush2.bf16.msra.mxu0 %v756
    %1022 = vmatprep.subr.bf16.mxu0 %v755
    %1023 = vmatpush2.bf16.msra.mxu0 %v754
    %1024 = vmatprep.subr.bf16.mxu0 %v753
    %1025 = vmatpush2.bf16.msra.mxu0 %v752
    %1026 = vmatprep.subr.bf16.mxu0 %v751
    %1027 = vmatpush2.bf16.msra.mxu0 %v750
    %1028 = vmatprep.subr.bf16.mxu0 %v749
    %1029 = vmatpush2.bf16.msra.mxu0 %v748
    %1030 = vmatprep.subr.bf16.mxu0 %v747
    %1031 = vmatpush2.bf16.msra.mxu0 %v746
    %1032 = vmatprep.subr.bf16.mxu0 %v745
    %1033 = vmatpush2.bf16.msra.mxu0 %v744
    %1034 = vmatprep.mubr.bf16.mxu0 %v137
    %1035 = vmatmul.mubr.bf16.gmra.mxu0 %v136
    %v1036 = vpop.f32.mrf.mxu0
    %v1037 = vadd.f32 %v996, %v1036
    %v1038 = vpop.f32.mrf.mxu0
    %v1039 = vadd.f32 %v998, %v1038
    %v1040 = vpop.f32.mrf.mxu0
    %v1041 = vpop.f32.mrf.mxu0
    %1042 = vdwg.mxu0
    %1043 = vmatprep.subr.bf16.mxu0 %v775
    %1044 = vmatpush1.bf16.msra.mxu0 %v774
    %1045 = vmatprep.subr.bf16.mxu0 %v773
    %1046 = vmatpush1.bf16.msra.mxu0 %v772
    %1047 = vmatprep.subr.bf16.mxu0 %v771
    %1048 = vmatpush1.bf16.msra.mxu0 %v770
    %1049 = vmatprep.subr.bf16.mxu0 %v769
    %1050 = vmatpush1.bf16.msra.mxu0 %v768
    %1051 = vmatprep.subr.bf16.mxu0 %v767
    %1052 = vmatpush1.bf16.msra.mxu0 %v766
    %1053 = vmatprep.subr.bf16.mxu0 %v765
    %1054 = vmatpush1.bf16.msra.mxu0 %v764
    %1055 = vmatprep.subr.bf16.mxu0 %v763
    %1056 = vmatpush1.bf16.msra.mxu0 %v762
    %1057 = vmatprep.subr.bf16.mxu0 %v761
    %1058 = vmatpush1.bf16.msra.mxu0 %v760
    %1059 = vmatprep.subr.bf16.mxu0 %v791
    %1060 = vmatpush2.bf16.msra.mxu0 %v790
    %1061 = vmatprep.subr.bf16.mxu0 %v789
    %1062 = vmatpush2.bf16.msra.mxu0 %v788
    %1063 = vmatprep.subr.bf16.mxu0 %v787
    %1064 = vmatpush2.bf16.msra.mxu0 %v786
    %1065 = vmatprep.subr.bf16.mxu0 %v785
    %1066 = vmatpush2.bf16.msra.mxu0 %v784
    %1067 = vmatprep.subr.bf16.mxu0 %v783
    %1068 = vmatpush2.bf16.msra.mxu0 %v782
    %1069 = vmatprep.subr.bf16.mxu0 %v781
    %1070 = vmatpush2.bf16.msra.mxu0 %v780
    %1071 = vmatprep.subr.bf16.mxu0 %v779
    %1072 = vmatpush2.bf16.msra.mxu0 %v778
    %1073 = vmatprep.subr.bf16.mxu0 %v777
    %1074 = vmatpush2.bf16.msra.mxu0 %v776
    %1075 = vmatprep.mubr.bf16.mxu0 %v139
    %1076 = vmatmul.mubr.bf16.gmra.mxu0 %v138
    %v1077 = vpop.f32.mrf.mxu0
    %v1078 = vadd.f32 %v1037, %v1077
    %v1079 = vpop.f32.mrf.mxu0
    %v1080 = vadd.f32 %v1039, %v1079
    %v1081 = vpop.f32.mrf.mxu0
    %v1082 = vpop.f32.mrf.mxu0
    %1083 = vdwg.mxu0
    %v1084 = vpack.c.bf16 %v1078, %v1078
    %v1085 = vpack.c.bf16 %v1080, %v1080
    %v1086 = vtanh.bf16.pop %v1084
    %v1087 = vtanh.bf16.pop %v1085
    %v1088 = vld [vmem:[#allocation8] sm:$0xff]
    %v1089 = vld [vmem:[#allocation8 + $0x8] sm:$0xff]
    %v1090 = vld [vmem:[#allocation8 + $0x10] sm:$0xff]
    %v1091 = vld [vmem:[#allocation8 + $0x18] sm:$0xff]
    %v1092 = vld [vmem:[#allocation8 + $0x20] sm:$0xff]
    %v1093 = vld [vmem:[#allocation8 + $0x28] sm:$0xff]
    %v1094 = vld [vmem:[#allocation8 + $0x30] sm:$0xff]
    %v1095 = vld [vmem:[#allocation8 + $0x38] sm:$0xff]
    %v1096 = vld [vmem:[#allocation8 + $0x40] sm:$0xff]
    %v1097 = vld [vmem:[#allocation8 + $0x48] sm:$0xff]
    %v1098 = vld [vmem:[#allocation8 + $0x50] sm:$0xff]
    %v1099 = vld [vmem:[#allocation8 + $0x58] sm:$0xff]
    %v1100 = vld [vmem:[#allocation8 + $0x60] sm:$0xff]
    %v1101 = vld [vmem:[#allocation8 + $0x68] sm:$0xff]
    %v1102 = vld [vmem:[#allocation8 + $0x70] sm:$0xff]
    %v1103 = vld [vmem:[#allocation8 + $0x78] sm:$0xff]
    %v1104 = vld [vmem:[#allocation8 + $0x80] sm:$0xff]
    %v1105 = vld [vmem:[#allocation8 + $0x88] sm:$0xff]
    %v1106 = vld [vmem:[#allocation8 + $0x90] sm:$0xff]
    %v1107 = vld [vmem:[#allocation8 + $0x98] sm:$0xff]
    %v1108 = vld [vmem:[#allocation8 + $0xa0] sm:$0xff]
    %v1109 = vld [vmem:[#allocation8 + $0xa8] sm:$0xff]
    %v1110 = vld [vmem:[#allocation8 + $0xb0] sm:$0xff]
    %v1111 = vld [vmem:[#allocation8 + $0xb8] sm:$0xff]
    %v1112 = vld [vmem:[#allocation8 + $0xc0] sm:$0xff]
    %v1113 = vld [vmem:[#allocation8 + $0xc8] sm:$0xff]
    %v1114 = vld [vmem:[#allocation8 + $0xd0] sm:$0xff]
    %v1115 = vld [vmem:[#allocation8 + $0xd8] sm:$0xff]
    %v1116 = vld [vmem:[#allocation8 + $0xe0] sm:$0xff]
    %v1117 = vld [vmem:[#allocation8 + $0xe8] sm:$0xff]
    %v1118 = vld [vmem:[#allocation8 + $0xf0] sm:$0xff]
    %v1119 = vld [vmem:[#allocation8 + $0xf8] sm:$0xff]
    %v1120 = vld [vmem:[#allocation8 + $0x100] sm:$0xff]
    %v1121 = vld [vmem:[#allocation8 + $0x108] sm:$0xff]
    %v1122 = vld [vmem:[#allocation8 + $0x110] sm:$0xff]
    %v1123 = vld [vmem:[#allocation8 + $0x118] sm:$0xff]
    %v1124 = vld [vmem:[#allocation8 + $0x120] sm:$0xff]
    %v1125 = vld [vmem:[#allocation8 + $0x128] sm:$0xff]
    %v1126 = vld [vmem:[#allocation8 + $0x130] sm:$0xff]
    %v1127 = vld [vmem:[#allocation8 + $0x138] sm:$0xff]
    %v1128 = vld [vmem:[#allocation8 + $0x140] sm:$0xff]
    %v1129 = vld [vmem:[#allocation8 + $0x148] sm:$0xff]
    %v1130 = vld [vmem:[#allocation8 + $0x150] sm:$0xff]
    %v1131 = vld [vmem:[#allocation8 + $0x158] sm:$0xff]
    %v1132 = vld [vmem:[#allocation8 + $0x160] sm:$0xff]
    %v1133 = vld [vmem:[#allocation8 + $0x168] sm:$0xff]
    %v1134 = vld [vmem:[#allocation8 + $0x170] sm:$0xff]
    %v1135 = vld [vmem:[#allocation8 + $0x178] sm:$0xff]
    %v1136 = vld [vmem:[#allocation8 + $0x180] sm:$0xff]
    %v1137 = vld [vmem:[#allocation8 + $0x188] sm:$0xff]
    %v1138 = vld [vmem:[#allocation8 + $0x190] sm:$0xff]
    %v1139 = vld [vmem:[#allocation8 + $0x198] sm:$0xff]
    %v1140 = vld [vmem:[#allocation8 + $0x1a0] sm:$0xff]
    %v1141 = vld [vmem:[#allocation8 + $0x1a8] sm:$0xff]
    %v1142 = vld [vmem:[#allocation8 + $0x1b0] sm:$0xff]
    %v1143 = vld [vmem:[#allocation8 + $0x1b8] sm:$0xff]
    %v1144 = vld [vmem:[#allocation8 + $0x1c0] sm:$0xff]
    %v1145 = vld [vmem:[#allocation8 + $0x1c8] sm:$0xff]
    %v1146 = vld [vmem:[#allocation8 + $0x1d0] sm:$0xff]
    %v1147 = vld [vmem:[#allocation8 + $0x1d8] sm:$0xff]
    %v1148 = vld [vmem:[#allocation8 + $0x1e0] sm:$0xff]
    %v1149 = vld [vmem:[#allocation8 + $0x1e8] sm:$0xff]
    %v1150 = vld [vmem:[#allocation8 + $0x1f0] sm:$0xff]
    %v1151 = vld [vmem:[#allocation8 + $0x1f8] sm:$0xff]
    %v1152 = vld [vmem:[#allocation8 + $0x200] sm:$0xff]
    %v1153 = vld [vmem:[#allocation8 + $0x208] sm:$0xff]
    %v1154 = vld [vmem:[#allocation8 + $0x210] sm:$0xff]
    %v1155 = vld [vmem:[#allocation8 + $0x218] sm:$0xff]
    %v1156 = vld [vmem:[#allocation8 + $0x220] sm:$0xff]
    %v1157 = vld [vmem:[#allocation8 + $0x228] sm:$0xff]
    %v1158 = vld [vmem:[#allocation8 + $0x230] sm:$0xff]
    %v1159 = vld [vmem:[#allocation8 + $0x238] sm:$0xff]
    %v1160 = vld [vmem:[#allocation8 + $0x240] sm:$0xff]
    %v1161 = vld [vmem:[#allocation8 + $0x248] sm:$0xff]
    %v1162 = vld [vmem:[#allocation8 + $0x250] sm:$0xff]
    %v1163 = vld [vmem:[#allocation8 + $0x258] sm:$0xff]
    %v1164 = vld [vmem:[#allocation8 + $0x260] sm:$0xff]
    %v1165 = vld [vmem:[#allocation8 + $0x268] sm:$0xff]
    %v1166 = vld [vmem:[#allocation8 + $0x270] sm:$0xff]
    %v1167 = vld [vmem:[#allocation8 + $0x278] sm:$0xff]
    %v1168 = vld [vmem:[#allocation8 + $0x280] sm:$0xff]
    %v1169 = vld [vmem:[#allocation8 + $0x288] sm:$0xff]
    %v1170 = vld [vmem:[#allocation8 + $0x290] sm:$0xff]
    %v1171 = vld [vmem:[#allocation8 + $0x298] sm:$0xff]
    %v1172 = vld [vmem:[#allocation8 + $0x2a0] sm:$0xff]
    %v1173 = vld [vmem:[#allocation8 + $0x2a8] sm:$0xff]
    %v1174 = vld [vmem:[#allocation8 + $0x2b0] sm:$0xff]
    %v1175 = vld [vmem:[#allocation8 + $0x2b8] sm:$0xff]
    %v1176 = vld [vmem:[#allocation8 + $0x2c0] sm:$0xff]
    %v1177 = vld [vmem:[#allocation8 + $0x2c8] sm:$0xff]
    %v1178 = vld [vmem:[#allocation8 + $0x2d0] sm:$0xff]
    %v1179 = vld [vmem:[#allocation8 + $0x2d8] sm:$0xff]
    %v1180 = vld [vmem:[#allocation8 + $0x2e0] sm:$0xff]
    %v1181 = vld [vmem:[#allocation8 + $0x2e8] sm:$0xff]
    %v1182 = vld [vmem:[#allocation8 + $0x2f0] sm:$0xff]
    %v1183 = vld [vmem:[#allocation8 + $0x2f8] sm:$0xff]
    %v1184 = vld [vmem:[#allocation8 + $0x300] sm:$0xff]
    %v1185 = vld [vmem:[#allocation8 + $0x308] sm:$0xff]
    %v1186 = vld [vmem:[#allocation8 + $0x310] sm:$0xff]
    %v1187 = vld [vmem:[#allocation8 + $0x318] sm:$0xff]
    %v1188 = vld [vmem:[#allocation8 + $0x320] sm:$0xff]
    %v1189 = vld [vmem:[#allocation8 + $0x328] sm:$0xff]
    %v1190 = vld [vmem:[#allocation8 + $0x330] sm:$0xff]
    %v1191 = vld [vmem:[#allocation8 + $0x338] sm:$0xff]
    %v1192 = vld [vmem:[#allocation8 + $0x340] sm:$0xff]
    %v1193 = vld [vmem:[#allocation8 + $0x348] sm:$0xff]
    %v1194 = vld [vmem:[#allocation8 + $0x350] sm:$0xff]
    %v1195 = vld [vmem:[#allocation8 + $0x358] sm:$0xff]
    %v1196 = vld [vmem:[#allocation8 + $0x360] sm:$0xff]
    %v1197 = vld [vmem:[#allocation8 + $0x368] sm:$0xff]
    %v1198 = vld [vmem:[#allocation8 + $0x370] sm:$0xff]
    %v1199 = vld [vmem:[#allocation8 + $0x378] sm:$0xff]
    %v1200 = vld [vmem:[#allocation8 + $0x380] sm:$0xff]
    %v1201 = vld [vmem:[#allocation8 + $0x388] sm:$0xff]
    %v1202 = vld [vmem:[#allocation8 + $0x390] sm:$0xff]
    %v1203 = vld [vmem:[#allocation8 + $0x398] sm:$0xff]
    %v1204 = vld [vmem:[#allocation8 + $0x3a0] sm:$0xff]
    %v1205 = vld [vmem:[#allocation8 + $0x3a8] sm:$0xff]
    %v1206 = vld [vmem:[#allocation8 + $0x3b0] sm:$0xff]
    %v1207 = vld [vmem:[#allocation8 + $0x3b8] sm:$0xff]
    %v1208 = vld [vmem:[#allocation8 + $0x3c0] sm:$0xff]
    %v1209 = vld [vmem:[#allocation8 + $0x3c8] sm:$0xff]
    %v1210 = vld [vmem:[#allocation8 + $0x3d0] sm:$0xff]
    %v1211 = vld [vmem:[#allocation8 + $0x3d8] sm:$0xff]
    %v1212 = vld [vmem:[#allocation8 + $0x3e0] sm:$0xff]
    %v1213 = vld [vmem:[#allocation8 + $0x3e8] sm:$0xff]
    %v1214 = vld [vmem:[#allocation8 + $0x3f0] sm:$0xff]
    %v1215 = vld [vmem:[#allocation8 + $0x3f8] sm:$0xff]
    %v1216 = vld [vmem:[#allocation8 + $0x400] sm:$0xff]
    %v1217 = vld [vmem:[#allocation8 + $0x408] sm:$0xff]
    %v1218 = vld [vmem:[#allocation8 + $0x410] sm:$0xff]
    %v1219 = vld [vmem:[#allocation8 + $0x418] sm:$0xff]
    %v1220 = vld [vmem:[#allocation8 + $0x420] sm:$0xff]
    %v1221 = vld [vmem:[#allocation8 + $0x428] sm:$0xff]
    %v1222 = vld [vmem:[#allocation8 + $0x430] sm:$0xff]
    %v1223 = vld [vmem:[#allocation8 + $0x438] sm:$0xff]
    %v1224 = vld [vmem:[#allocation8 + $0x440] sm:$0xff]
    %v1225 = vld [vmem:[#allocation8 + $0x448] sm:$0xff]
    %v1226 = vld [vmem:[#allocation8 + $0x450] sm:$0xff]
    %v1227 = vld [vmem:[#allocation8 + $0x458] sm:$0xff]
    %v1228 = vld [vmem:[#allocation8 + $0x460] sm:$0xff]
    %v1229 = vld [vmem:[#allocation8 + $0x468] sm:$0xff]
    %v1230 = vld [vmem:[#allocation8 + $0x470] sm:$0xff]
    %v1231 = vld [vmem:[#allocation8 + $0x478] sm:$0xff]
    %v1232 = vld [vmem:[#allocation8 + $0x480] sm:$0xff]
    %v1233 = vld [vmem:[#allocation8 + $0x488] sm:$0xff]
    %v1234 = vld [vmem:[#allocation8 + $0x490] sm:$0xff]
    %v1235 = vld [vmem:[#allocation8 + $0x498] sm:$0xff]
    %v1236 = vld [vmem:[#allocation8 + $0x4a0] sm:$0xff]
    %v1237 = vld [vmem:[#allocation8 + $0x4a8] sm:$0xff]
    %v1238 = vld [vmem:[#allocation8 + $0x4b0] sm:$0xff]
    %v1239 = vld [vmem:[#allocation8 + $0x4b8] sm:$0xff]
    %v1240 = vld [vmem:[#allocation8 + $0x4c0] sm:$0xff]
    %v1241 = vld [vmem:[#allocation8 + $0x4c8] sm:$0xff]
    %v1242 = vld [vmem:[#allocation8 + $0x4d0] sm:$0xff]
    %v1243 = vld [vmem:[#allocation8 + $0x4d8] sm:$0xff]
    %v1244 = vld [vmem:[#allocation8 + $0x4e0] sm:$0xff]
    %v1245 = vld [vmem:[#allocation8 + $0x4e8] sm:$0xff]
    %v1246 = vld [vmem:[#allocation8 + $0x4f0] sm:$0xff]
    %v1247 = vld [vmem:[#allocation8 + $0x4f8] sm:$0xff]
    %v1248 = vld [vmem:[#allocation8 + $0x500] sm:$0xff]
    %v1249 = vld [vmem:[#allocation8 + $0x508] sm:$0xff]
    %v1250 = vld [vmem:[#allocation8 + $0x510] sm:$0xff]
    %v1251 = vld [vmem:[#allocation8 + $0x518] sm:$0xff]
    %v1252 = vld [vmem:[#allocation8 + $0x520] sm:$0xff]
    %v1253 = vld [vmem:[#allocation8 + $0x528] sm:$0xff]
    %v1254 = vld [vmem:[#allocation8 + $0x530] sm:$0xff]
    %v1255 = vld [vmem:[#allocation8 + $0x538] sm:$0xff]
    %v1256 = vld [vmem:[#allocation8 + $0x540] sm:$0xff]
    %v1257 = vld [vmem:[#allocation8 + $0x548] sm:$0xff]
    %v1258 = vld [vmem:[#allocation8 + $0x550] sm:$0xff]
    %v1259 = vld [vmem:[#allocation8 + $0x558] sm:$0xff]
    %v1260 = vld [vmem:[#allocation8 + $0x560] sm:$0xff]
    %v1261 = vld [vmem:[#allocation8 + $0x568] sm:$0xff]
    %v1262 = vld [vmem:[#allocation8 + $0x570] sm:$0xff]
    %v1263 = vld [vmem:[#allocation8 + $0x578] sm:$0xff]
    %v1264 = vld [vmem:[#allocation8 + $0x580] sm:$0xff]
    %v1265 = vld [vmem:[#allocation8 + $0x588] sm:$0xff]
    %v1266 = vld [vmem:[#allocation8 + $0x590] sm:$0xff]
    %v1267 = vld [vmem:[#allocation8 + $0x598] sm:$0xff]
    %v1268 = vld [vmem:[#allocation8 + $0x5a0] sm:$0xff]
    %v1269 = vld [vmem:[#allocation8 + $0x5a8] sm:$0xff]
    %v1270 = vld [vmem:[#allocation8 + $0x5b0] sm:$0xff]
    %v1271 = vld [vmem:[#allocation8 + $0x5b8] sm:$0xff]
    %v1272 = vld [vmem:[#allocation8 + $0x5c0] sm:$0xff]
    %v1273 = vld [vmem:[#allocation8 + $0x5c8] sm:$0xff]
    %v1274 = vld [vmem:[#allocation8 + $0x5d0] sm:$0xff]
    %v1275 = vld [vmem:[#allocation8 + $0x5d8] sm:$0xff]
    %v1276 = vld [vmem:[#allocation8 + $0x5e0] sm:$0xff]
    %v1277 = vld [vmem:[#allocation8 + $0x5e8] sm:$0xff]
    %v1278 = vld [vmem:[#allocation8 + $0x5f0] sm:$0xff]
    %v1279 = vld [vmem:[#allocation8 + $0x5f8] sm:$0xff]
    %v1280 = vld [vmem:[#allocation8 + $0x600] sm:$0xff]
    %v1281 = vld [vmem:[#allocation8 + $0x608] sm:$0xff]
    %v1282 = vld [vmem:[#allocation8 + $0x610] sm:$0xff]
    %v1283 = vld [vmem:[#allocation8 + $0x618] sm:$0xff]
    %v1284 = vld [vmem:[#allocation8 + $0x620] sm:$0xff]
    %v1285 = vld [vmem:[#allocation8 + $0x628] sm:$0xff]
    %v1286 = vld [vmem:[#allocation8 + $0x630] sm:$0xff]
    %v1287 = vld [vmem:[#allocation8 + $0x638] sm:$0xff]
    %v1288 = vld [vmem:[#allocation8 + $0x640] sm:$0xff]
    %v1289 = vld [vmem:[#allocation8 + $0x648] sm:$0xff]
    %v1290 = vld [vmem:[#allocation8 + $0x650] sm:$0xff]
    %v1291 = vld [vmem:[#allocation8 + $0x658] sm:$0xff]
    %v1292 = vld [vmem:[#allocation8 + $0x660] sm:$0xff]
    %v1293 = vld [vmem:[#allocation8 + $0x668] sm:$0xff]
    %v1294 = vld [vmem:[#allocation8 + $0x670] sm:$0xff]
    %v1295 = vld [vmem:[#allocation8 + $0x678] sm:$0xff]
    %v1296 = vld [vmem:[#allocation8 + $0x680] sm:$0xff]
    %v1297 = vld [vmem:[#allocation8 + $0x688] sm:$0xff]
    %v1298 = vld [vmem:[#allocation8 + $0x690] sm:$0xff]
    %v1299 = vld [vmem:[#allocation8 + $0x698] sm:$0xff]
    %v1300 = vld [vmem:[#allocation8 + $0x6a0] sm:$0xff]
    %v1301 = vld [vmem:[#allocation8 + $0x6a8] sm:$0xff]
    %v1302 = vld [vmem:[#allocation8 + $0x6b0] sm:$0xff]
    %v1303 = vld [vmem:[#allocation8 + $0x6b8] sm:$0xff]
    %v1304 = vld [vmem:[#allocation8 + $0x6c0] sm:$0xff]
    %v1305 = vld [vmem:[#allocation8 + $0x6c8] sm:$0xff]
    %v1306 = vld [vmem:[#allocation8 + $0x6d0] sm:$0xff]
    %v1307 = vld [vmem:[#allocation8 + $0x6d8] sm:$0xff]
    %v1308 = vld [vmem:[#allocation8 + $0x6e0] sm:$0xff]
    %v1309 = vld [vmem:[#allocation8 + $0x6e8] sm:$0xff]
    %v1310 = vld [vmem:[#allocation8 + $0x6f0] sm:$0xff]
    %v1311 = vld [vmem:[#allocation8 + $0x6f8] sm:$0xff]
    %v1312 = vld [vmem:[#allocation8 + $0x700] sm:$0xff]
    %v1313 = vld [vmem:[#allocation8 + $0x708] sm:$0xff]
    %v1314 = vld [vmem:[#allocation8 + $0x710] sm:$0xff]
    %v1315 = vld [vmem:[#allocation8 + $0x718] sm:$0xff]
    %v1316 = vld [vmem:[#allocation8 + $0x720] sm:$0xff]
    %v1317 = vld [vmem:[#allocation8 + $0x728] sm:$0xff]
    %v1318 = vld [vmem:[#allocation8 + $0x730] sm:$0xff]
    %v1319 = vld [vmem:[#allocation8 + $0x738] sm:$0xff]
    %v1320 = vld [vmem:[#allocation8 + $0x740] sm:$0xff]
    %v1321 = vld [vmem:[#allocation8 + $0x748] sm:$0xff]
    %v1322 = vld [vmem:[#allocation8 + $0x750] sm:$0xff]
    %v1323 = vld [vmem:[#allocation8 + $0x758] sm:$0xff]
    %v1324 = vld [vmem:[#allocation8 + $0x760] sm:$0xff]
    %v1325 = vld [vmem:[#allocation8 + $0x768] sm:$0xff]
    %v1326 = vld [vmem:[#allocation8 + $0x770] sm:$0xff]
    %v1327 = vld [vmem:[#allocation8 + $0x778] sm:$0xff]
    %v1328 = vld [vmem:[#allocation8 + $0x780] sm:$0xff]
    %v1329 = vld [vmem:[#allocation8 + $0x788] sm:$0xff]
    %v1330 = vld [vmem:[#allocation8 + $0x790] sm:$0xff]
    %v1331 = vld [vmem:[#allocation8 + $0x798] sm:$0xff]
    %v1332 = vld [vmem:[#allocation8 + $0x7a0] sm:$0xff]
    %v1333 = vld [vmem:[#allocation8 + $0x7a8] sm:$0xff]
    %v1334 = vld [vmem:[#allocation8 + $0x7b0] sm:$0xff]
    %v1335 = vld [vmem:[#allocation8 + $0x7b8] sm:$0xff]
    %v1336 = vld [vmem:[#allocation8 + $0x7c0] sm:$0xff]
    %v1337 = vld [vmem:[#allocation8 + $0x7c8] sm:$0xff]
    %v1338 = vld [vmem:[#allocation8 + $0x7d0] sm:$0xff]
    %v1339 = vld [vmem:[#allocation8 + $0x7d8] sm:$0xff]
    %v1340 = vld [vmem:[#allocation8 + $0x7e0] sm:$0xff]
    %v1341 = vld [vmem:[#allocation8 + $0x7e8] sm:$0xff]
    %v1342 = vld [vmem:[#allocation8 + $0x7f0] sm:$0xff]
    %v1343 = vld [vmem:[#allocation8 + $0x7f8] sm:$0xff]
    %v1344 = vld [vmem:[#allocation10] ss:$2 sm:$0xff]
    %s1345 = scalar_lea.vmem [#allocation10], 16
    %v1346 = vld [vmem:[%s1345] ss:$2 sm:$0xff]
    %v1349 = vlaneseq
    %v1350 = vshrl.u32 %v1349, 7
    %v1351 = vsub.s32 0, %v1350
    %v1352 = vrot.slane %v1344, %v1351
    %v1353 = vlaneseq
    %v1354 = vshrl.u32 %v1353, 7
    %v1355 = vsub.s32 1, %v1354
    %v1356 = vrot.slane %v1344, %v1355
    %v1357 = vlaneseq
    %v1358 = vshrl.u32 %v1357, 7
    %v1359 = vsub.s32 2, %v1358
    %v1360 = vrot.slane %v1344, %v1359
    %v1361 = vlaneseq
    %v1362 = vshrl.u32 %v1361, 7
    %v1363 = vsub.s32 3, %v1362
    %v1364 = vrot.slane %v1344, %v1363
    %v1365 = vlaneseq
    %v1366 = vshrl.u32 %v1365, 7
    %v1367 = vsub.s32 4, %v1366
    %v1368 = vrot.slane %v1344, %v1367
    %v1369 = vlaneseq
    %v1370 = vshrl.u32 %v1369, 7
    %v1371 = vsub.s32 5, %v1370
    %v1372 = vrot.slane %v1344, %v1371
    %v1373 = vlaneseq
    %v1374 = vshrl.u32 %v1373, 7
    %v1375 = vsub.s32 6, %v1374
    %v1376 = vrot.slane %v1344, %v1375
    %v1377 = vlaneseq
    %v1378 = vshrl.u32 %v1377, 7
    %v1379 = vsub.s32 7, %v1378
    %v1380 = vrot.slane %v1344, %v1379
    %v1381 = vlaneseq
    %v1382 = vshrl.u32 %v1381, 7
    %v1383 = vsub.s32 0, %v1382
    %v1384 = vrot.slane %v1346, %v1383
    %v1385 = vlaneseq
    %v1386 = vshrl.u32 %v1385, 7
    %v1387 = vsub.s32 1, %v1386
    %v1388 = vrot.slane %v1346, %v1387
    %v1389 = vlaneseq
    %v1390 = vshrl.u32 %v1389, 7
    %v1391 = vsub.s32 2, %v1390
    %v1392 = vrot.slane %v1346, %v1391
    %v1393 = vlaneseq
    %v1394 = vshrl.u32 %v1393, 7
    %v1395 = vsub.s32 3, %v1394
    %v1396 = vrot.slane %v1346, %v1395
    %v1397 = vlaneseq
    %v1398 = vshrl.u32 %v1397, 7
    %v1399 = vsub.s32 4, %v1398
    %v1400 = vrot.slane %v1346, %v1399
    %v1401 = vlaneseq
    %v1402 = vshrl.u32 %v1401, 7
    %v1403 = vsub.s32 5, %v1402
    %v1404 = vrot.slane %v1346, %v1403
    %v1405 = vlaneseq
    %v1406 = vshrl.u32 %v1405, 7
    %v1407 = vsub.s32 6, %v1406
    %v1408 = vrot.slane %v1346, %v1407
    %v1409 = vlaneseq
    %v1410 = vshrl.u32 %v1409, 7
    %v1411 = vsub.s32 7, %v1410
    %v1412 = vrot.slane %v1346, %v1411
    %v1685 = vunpack.c.l.b16 %v1088
    %v1686 = vunpack.c.h.b16 %v1088
    %v1687 = vunpack.c.l.b16 %v1089
    %v1688 = vunpack.c.h.b16 %v1089
    %v1689 = vunpack.c.l.b16 %v1090
    %v1690 = vunpack.c.h.b16 %v1090
    %v1691 = vunpack.c.l.b16 %v1091
    %v1692 = vunpack.c.h.b16 %v1091
    %v1693 = vunpack.c.l.b16 %v1092
    %v1694 = vunpack.c.h.b16 %v1092
    %v1695 = vunpack.c.l.b16 %v1093
    %v1696 = vunpack.c.h.b16 %v1093
    %v1697 = vunpack.c.l.b16 %v1094
    %v1698 = vunpack.c.h.b16 %v1094
    %v1699 = vunpack.c.l.b16 %v1095
    %v1700 = vunpack.c.h.b16 %v1095
    %v1701 = vunpack.c.l.b16 %v1096
    %v1702 = vunpack.c.h.b16 %v1096
    %v1703 = vunpack.c.l.b16 %v1097
    %v1704 = vunpack.c.h.b16 %v1097
    %v1705 = vunpack.c.l.b16 %v1098
    %v1706 = vunpack.c.h.b16 %v1098
    %v1707 = vunpack.c.l.b16 %v1099
    %v1708 = vunpack.c.h.b16 %v1099
    %v1709 = vunpack.c.l.b16 %v1100
    %v1710 = vunpack.c.h.b16 %v1100
    %v1711 = vunpack.c.l.b16 %v1101
    %v1712 = vunpack.c.h.b16 %v1101
    %v1713 = vunpack.c.l.b16 %v1102
    %v1714 = vunpack.c.h.b16 %v1102
    %v1715 = vunpack.c.l.b16 %v1103
    %v1716 = vunpack.c.h.b16 %v1103
    %v1717 = vunpack.c.l.b16 %v1104
    %v1718 = vunpack.c.h.b16 %v1104
    %v1719 = vunpack.c.l.b16 %v1105
    %v1720 = vunpack.c.h.b16 %v1105
    %v1721 = vunpack.c.l.b16 %v1106
    %v1722 = vunpack.c.h.b16 %v1106
    %v1723 = vunpack.c.l.b16 %v1107
    %v1724 = vunpack.c.h.b16 %v1107
    %v1725 = vunpack.c.l.b16 %v1108
    %v1726 = vunpack.c.h.b16 %v1108
    %v1727 = vunpack.c.l.b16 %v1109
    %v1728 = vunpack.c.h.b16 %v1109
    %v1729 = vunpack.c.l.b16 %v1110
    %v1730 = vunpack.c.h.b16 %v1110
    %v1731 = vunpack.c.l.b16 %v1111
    %v1732 = vunpack.c.h.b16 %v1111
    %v1733 = vunpack.c.l.b16 %v1112
    %v1734 = vunpack.c.h.b16 %v1112
    %v1735 = vunpack.c.l.b16 %v1113
    %v1736 = vunpack.c.h.b16 %v1113
    %v1737 = vunpack.c.l.b16 %v1114
    %v1738 = vunpack.c.h.b16 %v1114
    %v1739 = vunpack.c.l.b16 %v1115
    %v1740 = vunpack.c.h.b16 %v1115
    %v1741 = vunpack.c.l.b16 %v1116
    %v1742 = vunpack.c.h.b16 %v1116
    %v1743 = vunpack.c.l.b16 %v1117
    %v1744 = vunpack.c.h.b16 %v1117
    %v1745 = vunpack.c.l.b16 %v1118
    %v1746 = vunpack.c.h.b16 %v1118
    %v1747 = vunpack.c.l.b16 %v1119
    %v1748 = vunpack.c.h.b16 %v1119
    %v1749 = vunpack.c.l.b16 %v1120
    %v1750 = vunpack.c.h.b16 %v1120
    %v1751 = vunpack.c.l.b16 %v1121
    %v1752 = vunpack.c.h.b16 %v1121
    %v1753 = vunpack.c.l.b16 %v1122
    %v1754 = vunpack.c.h.b16 %v1122
    %v1755 = vunpack.c.l.b16 %v1123
    %v1756 = vunpack.c.h.b16 %v1123
    %v1757 = vunpack.c.l.b16 %v1124
    %v1758 = vunpack.c.h.b16 %v1124
    %v1759 = vunpack.c.l.b16 %v1125
    %v1760 = vunpack.c.h.b16 %v1125
    %v1761 = vunpack.c.l.b16 %v1126
    %v1762 = vunpack.c.h.b16 %v1126
    %v1763 = vunpack.c.l.b16 %v1127
    %v1764 = vunpack.c.h.b16 %v1127
    %v1765 = vunpack.c.l.b16 %v1128
    %v1766 = vunpack.c.h.b16 %v1128
    %v1767 = vunpack.c.l.b16 %v1129
    %v1768 = vunpack.c.h.b16 %v1129
    %v1769 = vunpack.c.l.b16 %v1130
    %v1770 = vunpack.c.h.b16 %v1130
    %v1771 = vunpack.c.l.b16 %v1131
    %v1772 = vunpack.c.h.b16 %v1131
    %v1773 = vunpack.c.l.b16 %v1132
    %v1774 = vunpack.c.h.b16 %v1132
    %v1775 = vunpack.c.l.b16 %v1133
    %v1776 = vunpack.c.h.b16 %v1133
    %v1777 = vunpack.c.l.b16 %v1134
    %v1778 = vunpack.c.h.b16 %v1134
    %v1779 = vunpack.c.l.b16 %v1135
    %v1780 = vunpack.c.h.b16 %v1135
    %v1781 = vunpack.c.l.b16 %v1136
    %v1782 = vunpack.c.h.b16 %v1136
    %v1783 = vunpack.c.l.b16 %v1137
    %v1784 = vunpack.c.h.b16 %v1137
    %v1785 = vunpack.c.l.b16 %v1138
    %v1786 = vunpack.c.h.b16 %v1138
    %v1787 = vunpack.c.l.b16 %v1139
    %v1788 = vunpack.c.h.b16 %v1139
    %v1789 = vunpack.c.l.b16 %v1140
    %v1790 = vunpack.c.h.b16 %v1140
    %v1791 = vunpack.c.l.b16 %v1141
    %v1792 = vunpack.c.h.b16 %v1141
    %v1793 = vunpack.c.l.b16 %v1142
    %v1794 = vunpack.c.h.b16 %v1142
    %v1795 = vunpack.c.l.b16 %v1143
    %v1796 = vunpack.c.h.b16 %v1143
    %v1797 = vunpack.c.l.b16 %v1144
    %v1798 = vunpack.c.h.b16 %v1144
    %v1799 = vunpack.c.l.b16 %v1145
    %v1800 = vunpack.c.h.b16 %v1145
    %v1801 = vunpack.c.l.b16 %v1146
    %v1802 = vunpack.c.h.b16 %v1146
    %v1803 = vunpack.c.l.b16 %v1147
    %v1804 = vunpack.c.h.b16 %v1147
    %v1805 = vunpack.c.l.b16 %v1148
    %v1806 = vunpack.c.h.b16 %v1148
    %v1807 = vunpack.c.l.b16 %v1149
    %v1808 = vunpack.c.h.b16 %v1149
    %v1809 = vunpack.c.l.b16 %v1150
    %v1810 = vunpack.c.h.b16 %v1150
    %v1811 = vunpack.c.l.b16 %v1151
    %v1812 = vunpack.c.h.b16 %v1151
    %v1813 = vunpack.c.l.b16 %v1152
    %v1814 = vunpack.c.h.b16 %v1152
    %v1815 = vunpack.c.l.b16 %v1153
    %v1816 = vunpack.c.h.b16 %v1153
    %v1817 = vunpack.c.l.b16 %v1154
    %v1818 = vunpack.c.h.b16 %v1154
    %v1819 = vunpack.c.l.b16 %v1155
    %v1820 = vunpack.c.h.b16 %v1155
    %v1821 = vunpack.c.l.b16 %v1156
    %v1822 = vunpack.c.h.b16 %v1156
    %v1823 = vunpack.c.l.b16 %v1157
    %v1824 = vunpack.c.h.b16 %v1157
    %v1825 = vunpack.c.l.b16 %v1158
    %v1826 = vunpack.c.h.b16 %v1158
    %v1827 = vunpack.c.l.b16 %v1159
    %v1828 = vunpack.c.h.b16 %v1159
    %v1829 = vunpack.c.l.b16 %v1160
    %v1830 = vunpack.c.h.b16 %v1160
    %v1831 = vunpack.c.l.b16 %v1161
    %v1832 = vunpack.c.h.b16 %v1161
    %v1833 = vunpack.c.l.b16 %v1162
    %v1834 = vunpack.c.h.b16 %v1162
    %v1835 = vunpack.c.l.b16 %v1163
    %v1836 = vunpack.c.h.b16 %v1163
    %v1837 = vunpack.c.l.b16 %v1164
    %v1838 = vunpack.c.h.b16 %v1164
    %v1839 = vunpack.c.l.b16 %v1165
    %v1840 = vunpack.c.h.b16 %v1165
    %v1841 = vunpack.c.l.b16 %v1166
    %v1842 = vunpack.c.h.b16 %v1166
    %v1843 = vunpack.c.l.b16 %v1167
    %v1844 = vunpack.c.h.b16 %v1167
    %v1845 = vunpack.c.l.b16 %v1168
    %v1846 = vunpack.c.h.b16 %v1168
    %v1847 = vunpack.c.l.b16 %v1169
    %v1848 = vunpack.c.h.b16 %v1169
    %v1849 = vunpack.c.l.b16 %v1170
    %v1850 = vunpack.c.h.b16 %v1170
    %v1851 = vunpack.c.l.b16 %v1171
    %v1852 = vunpack.c.h.b16 %v1171
    %v1853 = vunpack.c.l.b16 %v1172
    %v1854 = vunpack.c.h.b16 %v1172
    %v1855 = vunpack.c.l.b16 %v1173
    %v1856 = vunpack.c.h.b16 %v1173
    %v1857 = vunpack.c.l.b16 %v1174
    %v1858 = vunpack.c.h.b16 %v1174
    %v1859 = vunpack.c.l.b16 %v1175
    %v1860 = vunpack.c.h.b16 %v1175
    %v1861 = vunpack.c.l.b16 %v1176
    %v1862 = vunpack.c.h.b16 %v1176
    %v1863 = vunpack.c.l.b16 %v1177
    %v1864 = vunpack.c.h.b16 %v1177
    %v1865 = vunpack.c.l.b16 %v1178
    %v1866 = vunpack.c.h.b16 %v1178
    %v1867 = vunpack.c.l.b16 %v1179
    %v1868 = vunpack.c.h.b16 %v1179
    %v1869 = vunpack.c.l.b16 %v1180
    %v1870 = vunpack.c.h.b16 %v1180
    %v1871 = vunpack.c.l.b16 %v1181
    %v1872 = vunpack.c.h.b16 %v1181
    %v1873 = vunpack.c.l.b16 %v1182
    %v1874 = vunpack.c.h.b16 %v1182
    %v1875 = vunpack.c.l.b16 %v1183
    %v1876 = vunpack.c.h.b16 %v1183
    %v1877 = vunpack.c.l.b16 %v1184
    %v1878 = vunpack.c.h.b16 %v1184
    %v1879 = vunpack.c.l.b16 %v1185
    %v1880 = vunpack.c.h.b16 %v1185
    %v1881 = vunpack.c.l.b16 %v1186
    %v1882 = vunpack.c.h.b16 %v1186
    %v1883 = vunpack.c.l.b16 %v1187
    %v1884 = vunpack.c.h.b16 %v1187
    %v1885 = vunpack.c.l.b16 %v1188
    %v1886 = vunpack.c.h.b16 %v1188
    %v1887 = vunpack.c.l.b16 %v1189
    %v1888 = vunpack.c.h.b16 %v1189
    %v1889 = vunpack.c.l.b16 %v1190
    %v1890 = vunpack.c.h.b16 %v1190
    %v1891 = vunpack.c.l.b16 %v1191
    %v1892 = vunpack.c.h.b16 %v1191
    %v1893 = vunpack.c.l.b16 %v1192
    %v1894 = vunpack.c.h.b16 %v1192
    %v1895 = vunpack.c.l.b16 %v1193
    %v1896 = vunpack.c.h.b16 %v1193
    %v1897 = vunpack.c.l.b16 %v1194
    %v1898 = vunpack.c.h.b16 %v1194
    %v1899 = vunpack.c.l.b16 %v1195
    %v1900 = vunpack.c.h.b16 %v1195
    %v1901 = vunpack.c.l.b16 %v1196
    %v1902 = vunpack.c.h.b16 %v1196
    %v1903 = vunpack.c.l.b16 %v1197
    %v1904 = vunpack.c.h.b16 %v1197
    %v1905 = vunpack.c.l.b16 %v1198
    %v1906 = vunpack.c.h.b16 %v1198
    %v1907 = vunpack.c.l.b16 %v1199
    %v1908 = vunpack.c.h.b16 %v1199
    %v1909 = vunpack.c.l.b16 %v1200
    %v1910 = vunpack.c.h.b16 %v1200
    %v1911 = vunpack.c.l.b16 %v1201
    %v1912 = vunpack.c.h.b16 %v1201
    %v1913 = vunpack.c.l.b16 %v1202
    %v1914 = vunpack.c.h.b16 %v1202
    %v1915 = vunpack.c.l.b16 %v1203
    %v1916 = vunpack.c.h.b16 %v1203
    %v1917 = vunpack.c.l.b16 %v1204
    %v1918 = vunpack.c.h.b16 %v1204
    %v1919 = vunpack.c.l.b16 %v1205
    %v1920 = vunpack.c.h.b16 %v1205
    %v1921 = vunpack.c.l.b16 %v1206
    %v1922 = vunpack.c.h.b16 %v1206
    %v1923 = vunpack.c.l.b16 %v1207
    %v1924 = vunpack.c.h.b16 %v1207
    %v1925 = vunpack.c.l.b16 %v1208
    %v1926 = vunpack.c.h.b16 %v1208
    %v1927 = vunpack.c.l.b16 %v1209
    %v1928 = vunpack.c.h.b16 %v1209
    %v1929 = vunpack.c.l.b16 %v1210
    %v1930 = vunpack.c.h.b16 %v1210
    %v1931 = vunpack.c.l.b16 %v1211
    %v1932 = vunpack.c.h.b16 %v1211
    %v1933 = vunpack.c.l.b16 %v1212
    %v1934 = vunpack.c.h.b16 %v1212
    %v1935 = vunpack.c.l.b16 %v1213
    %v1936 = vunpack.c.h.b16 %v1213
    %v1937 = vunpack.c.l.b16 %v1214
    %v1938 = vunpack.c.h.b16 %v1214
    %v1939 = vunpack.c.l.b16 %v1215
    %v1940 = vunpack.c.h.b16 %v1215
    %v1941 = vunpack.c.l.b16 %v1216
    %v1942 = vunpack.c.h.b16 %v1216
    %v1943 = vunpack.c.l.b16 %v1217
    %v1944 = vunpack.c.h.b16 %v1217
    %v1945 = vunpack.c.l.b16 %v1218
    %v1946 = vunpack.c.h.b16 %v1218
    %v1947 = vunpack.c.l.b16 %v1219
    %v1948 = vunpack.c.h.b16 %v1219
    %v1949 = vunpack.c.l.b16 %v1220
    %v1950 = vunpack.c.h.b16 %v1220
    %v1951 = vunpack.c.l.b16 %v1221
    %v1952 = vunpack.c.h.b16 %v1221
    %v1953 = vunpack.c.l.b16 %v1222
    %v1954 = vunpack.c.h.b16 %v1222
    %v1955 = vunpack.c.l.b16 %v1223
    %v1956 = vunpack.c.h.b16 %v1223
    %v1957 = vunpack.c.l.b16 %v1224
    %v1958 = vunpack.c.h.b16 %v1224
    %v1959 = vunpack.c.l.b16 %v1225
    %v1960 = vunpack.c.h.b16 %v1225
    %v1961 = vunpack.c.l.b16 %v1226
    %v1962 = vunpack.c.h.b16 %v1226
    %v1963 = vunpack.c.l.b16 %v1227
    %v1964 = vunpack.c.h.b16 %v1227
    %v1965 = vunpack.c.l.b16 %v1228
    %v1966 = vunpack.c.h.b16 %v1228
    %v1967 = vunpack.c.l.b16 %v1229
    %v1968 = vunpack.c.h.b16 %v1229
    %v1969 = vunpack.c.l.b16 %v1230
    %v1970 = vunpack.c.h.b16 %v1230
    %v1971 = vunpack.c.l.b16 %v1231
    %v1972 = vunpack.c.h.b16 %v1231
    %v1973 = vunpack.c.l.b16 %v1232
    %v1974 = vunpack.c.h.b16 %v1232
    %v1975 = vunpack.c.l.b16 %v1233
    %v1976 = vunpack.c.h.b16 %v1233
    %v1977 = vunpack.c.l.b16 %v1234
    %v1978 = vunpack.c.h.b16 %v1234
    %v1979 = vunpack.c.l.b16 %v1235
    %v1980 = vunpack.c.h.b16 %v1235
    %v1981 = vunpack.c.l.b16 %v1236
    %v1982 = vunpack.c.h.b16 %v1236
    %v1983 = vunpack.c.l.b16 %v1237
    %v1984 = vunpack.c.h.b16 %v1237
    %v1985 = vunpack.c.l.b16 %v1238
    %v1986 = vunpack.c.h.b16 %v1238
    %v1987 = vunpack.c.l.b16 %v1239
    %v1988 = vunpack.c.h.b16 %v1239
    %v1989 = vunpack.c.l.b16 %v1240
    %v1990 = vunpack.c.h.b16 %v1240
    %v1991 = vunpack.c.l.b16 %v1241
    %v1992 = vunpack.c.h.b16 %v1241
    %v1993 = vunpack.c.l.b16 %v1242
    %v1994 = vunpack.c.h.b16 %v1242
    %v1995 = vunpack.c.l.b16 %v1243
    %v1996 = vunpack.c.h.b16 %v1243
    %v1997 = vunpack.c.l.b16 %v1244
    %v1998 = vunpack.c.h.b16 %v1244
    %v1999 = vunpack.c.l.b16 %v1245
    %v2000 = vunpack.c.h.b16 %v1245
    %v2001 = vunpack.c.l.b16 %v1246
    %v2002 = vunpack.c.h.b16 %v1246
    %v2003 = vunpack.c.l.b16 %v1247
    %v2004 = vunpack.c.h.b16 %v1247
    %v2005 = vunpack.c.l.b16 %v1248
    %v2006 = vunpack.c.h.b16 %v1248
    %v2007 = vunpack.c.l.b16 %v1249
    %v2008 = vunpack.c.h.b16 %v1249
    %v2009 = vunpack.c.l.b16 %v1250
    %v2010 = vunpack.c.h.b16 %v1250
    %v2011 = vunpack.c.l.b16 %v1251
    %v2012 = vunpack.c.h.b16 %v1251
    %v2013 = vunpack.c.l.b16 %v1252
    %v2014 = vunpack.c.h.b16 %v1252
    %v2015 = vunpack.c.l.b16 %v1253
    %v2016 = vunpack.c.h.b16 %v1253
    %v2017 = vunpack.c.l.b16 %v1254
    %v2018 = vunpack.c.h.b16 %v1254
    %v2019 = vunpack.c.l.b16 %v1255
    %v2020 = vunpack.c.h.b16 %v1255
    %v2021 = vunpack.c.l.b16 %v1256
    %v2022 = vunpack.c.h.b16 %v1256
    %v2023 = vunpack.c.l.b16 %v1257
    %v2024 = vunpack.c.h.b16 %v1257
    %v2025 = vunpack.c.l.b16 %v1258
    %v2026 = vunpack.c.h.b16 %v1258
    %v2027 = vunpack.c.l.b16 %v1259
    %v2028 = vunpack.c.h.b16 %v1259
    %v2029 = vunpack.c.l.b16 %v1260
    %v2030 = vunpack.c.h.b16 %v1260
    %v2031 = vunpack.c.l.b16 %v1261
    %v2032 = vunpack.c.h.b16 %v1261
    %v2033 = vunpack.c.l.b16 %v1262
    %v2034 = vunpack.c.h.b16 %v1262
    %v2035 = vunpack.c.l.b16 %v1263
    %v2036 = vunpack.c.h.b16 %v1263
    %v2037 = vunpack.c.l.b16 %v1264
    %v2038 = vunpack.c.h.b16 %v1264
    %v2039 = vunpack.c.l.b16 %v1265
    %v2040 = vunpack.c.h.b16 %v1265
    %v2041 = vunpack.c.l.b16 %v1266
    %v2042 = vunpack.c.h.b16 %v1266
    %v2043 = vunpack.c.l.b16 %v1267
    %v2044 = vunpack.c.h.b16 %v1267
    %v2045 = vunpack.c.l.b16 %v1268
    %v2046 = vunpack.c.h.b16 %v1268
    %v2047 = vunpack.c.l.b16 %v1269
    %v2048 = vunpack.c.h.b16 %v1269
    %v2049 = vunpack.c.l.b16 %v1270
    %v2050 = vunpack.c.h.b16 %v1270
    %v2051 = vunpack.c.l.b16 %v1271
    %v2052 = vunpack.c.h.b16 %v1271
    %v2053 = vunpack.c.l.b16 %v1272
    %v2054 = vunpack.c.h.b16 %v1272
    %v2055 = vunpack.c.l.b16 %v1273
    %v2056 = vunpack.c.h.b16 %v1273
    %v2057 = vunpack.c.l.b16 %v1274
    %v2058 = vunpack.c.h.b16 %v1274
    %v2059 = vunpack.c.l.b16 %v1275
    %v2060 = vunpack.c.h.b16 %v1275
    %v2061 = vunpack.c.l.b16 %v1276
    %v2062 = vunpack.c.h.b16 %v1276
    %v2063 = vunpack.c.l.b16 %v1277
    %v2064 = vunpack.c.h.b16 %v1277
    %v2065 = vunpack.c.l.b16 %v1278
    %v2066 = vunpack.c.h.b16 %v1278
    %v2067 = vunpack.c.l.b16 %v1279
    %v2068 = vunpack.c.h.b16 %v1279
    %v2069 = vunpack.c.l.b16 %v1280
    %v2070 = vunpack.c.h.b16 %v1280
    %v2071 = vunpack.c.l.b16 %v1281
    %v2072 = vunpack.c.h.b16 %v1281
    %v2073 = vunpack.c.l.b16 %v1282
    %v2074 = vunpack.c.h.b16 %v1282
    %v2075 = vunpack.c.l.b16 %v1283
    %v2076 = vunpack.c.h.b16 %v1283
    %v2077 = vunpack.c.l.b16 %v1284
    %v2078 = vunpack.c.h.b16 %v1284
    %v2079 = vunpack.c.l.b16 %v1285
    %v2080 = vunpack.c.h.b16 %v1285
    %v2081 = vunpack.c.l.b16 %v1286
    %v2082 = vunpack.c.h.b16 %v1286
    %v2083 = vunpack.c.l.b16 %v1287
    %v2084 = vunpack.c.h.b16 %v1287
    %v2085 = vunpack.c.l.b16 %v1288
    %v2086 = vunpack.c.h.b16 %v1288
    %v2087 = vunpack.c.l.b16 %v1289
    %v2088 = vunpack.c.h.b16 %v1289
    %v2089 = vunpack.c.l.b16 %v1290
    %v2090 = vunpack.c.h.b16 %v1290
    %v2091 = vunpack.c.l.b16 %v1291
    %v2092 = vunpack.c.h.b16 %v1291
    %v2093 = vunpack.c.l.b16 %v1292
    %v2094 = vunpack.c.h.b16 %v1292
    %v2095 = vunpack.c.l.b16 %v1293
    %v2096 = vunpack.c.h.b16 %v1293
    %v2097 = vunpack.c.l.b16 %v1294
    %v2098 = vunpack.c.h.b16 %v1294
    %v2099 = vunpack.c.l.b16 %v1295
    %v2100 = vunpack.c.h.b16 %v1295
    %v2101 = vunpack.c.l.b16 %v1296
    %v2102 = vunpack.c.h.b16 %v1296
    %v2103 = vunpack.c.l.b16 %v1297
    %v2104 = vunpack.c.h.b16 %v1297
    %v2105 = vunpack.c.l.b16 %v1298
    %v2106 = vunpack.c.h.b16 %v1298
    %v2107 = vunpack.c.l.b16 %v1299
    %v2108 = vunpack.c.h.b16 %v1299
    %v2109 = vunpack.c.l.b16 %v1300
    %v2110 = vunpack.c.h.b16 %v1300
    %v2111 = vunpack.c.l.b16 %v1301
    %v2112 = vunpack.c.h.b16 %v1301
    %v2113 = vunpack.c.l.b16 %v1302
    %v2114 = vunpack.c.h.b16 %v1302
    %v2115 = vunpack.c.l.b16 %v1303
    %v2116 = vunpack.c.h.b16 %v1303
    %v2117 = vunpack.c.l.b16 %v1304
    %v2118 = vunpack.c.h.b16 %v1304
    %v2119 = vunpack.c.l.b16 %v1305
    %v2120 = vunpack.c.h.b16 %v1305
    %v2121 = vunpack.c.l.b16 %v1306
    %v2122 = vunpack.c.h.b16 %v1306
    %v2123 = vunpack.c.l.b16 %v1307
    %v2124 = vunpack.c.h.b16 %v1307
    %v2125 = vunpack.c.l.b16 %v1308
    %v2126 = vunpack.c.h.b16 %v1308
    %v2127 = vunpack.c.l.b16 %v1309
    %v2128 = vunpack.c.h.b16 %v1309
    %v2129 = vunpack.c.l.b16 %v1310
    %v2130 = vunpack.c.h.b16 %v1310
    %v2131 = vunpack.c.l.b16 %v1311
    %v2132 = vunpack.c.h.b16 %v1311
    %v2133 = vunpack.c.l.b16 %v1312
    %v2134 = vunpack.c.h.b16 %v1312
    %v2135 = vunpack.c.l.b16 %v1313
    %v2136 = vunpack.c.h.b16 %v1313
    %v2137 = vunpack.c.l.b16 %v1314
    %v2138 = vunpack.c.h.b16 %v1314
    %v2139 = vunpack.c.l.b16 %v1315
    %v2140 = vunpack.c.h.b16 %v1315
    %v2141 = vunpack.c.l.b16 %v1316
    %v2142 = vunpack.c.h.b16 %v1316
    %v2143 = vunpack.c.l.b16 %v1317
    %v2144 = vunpack.c.h.b16 %v1317
    %v2145 = vunpack.c.l.b16 %v1318
    %v2146 = vunpack.c.h.b16 %v1318
    %v2147 = vunpack.c.l.b16 %v1319
    %v2148 = vunpack.c.h.b16 %v1319
    %v2149 = vunpack.c.l.b16 %v1320
    %v2150 = vunpack.c.h.b16 %v1320
    %v2151 = vunpack.c.l.b16 %v1321
    %v2152 = vunpack.c.h.b16 %v1321
    %v2153 = vunpack.c.l.b16 %v1322
    %v2154 = vunpack.c.h.b16 %v1322
    %v2155 = vunpack.c.l.b16 %v1323
    %v2156 = vunpack.c.h.b16 %v1323
    %v2157 = vunpack.c.l.b16 %v1324
    %v2158 = vunpack.c.h.b16 %v1324
    %v2159 = vunpack.c.l.b16 %v1325
    %v2160 = vunpack.c.h.b16 %v1325
    %v2161 = vunpack.c.l.b16 %v1326
    %v2162 = vunpack.c.h.b16 %v1326
    %v2163 = vunpack.c.l.b16 %v1327
    %v2164 = vunpack.c.h.b16 %v1327
    %v2165 = vunpack.c.l.b16 %v1328
    %v2166 = vunpack.c.h.b16 %v1328
    %v2167 = vunpack.c.l.b16 %v1329
    %v2168 = vunpack.c.h.b16 %v1329
    %v2169 = vunpack.c.l.b16 %v1330
    %v2170 = vunpack.c.h.b16 %v1330
    %v2171 = vunpack.c.l.b16 %v1331
    %v2172 = vunpack.c.h.b16 %v1331
    %v2173 = vunpack.c.l.b16 %v1332
    %v2174 = vunpack.c.h.b16 %v1332
    %v2175 = vunpack.c.l.b16 %v1333
    %v2176 = vunpack.c.h.b16 %v1333
    %v2177 = vunpack.c.l.b16 %v1334
    %v2178 = vunpack.c.h.b16 %v1334
    %v2179 = vunpack.c.l.b16 %v1335
    %v2180 = vunpack.c.h.b16 %v1335
    %v2181 = vunpack.c.l.b16 %v1336
    %v2182 = vunpack.c.h.b16 %v1336
    %v2183 = vunpack.c.l.b16 %v1337
    %v2184 = vunpack.c.h.b16 %v1337
    %v2185 = vunpack.c.l.b16 %v1338
    %v2186 = vunpack.c.h.b16 %v1338
    %v2187 = vunpack.c.l.b16 %v1339
    %v2188 = vunpack.c.h.b16 %v1339
    %v2189 = vunpack.c.l.b16 %v1340
    %v2190 = vunpack.c.h.b16 %v1340
    %v2191 = vunpack.c.l.b16 %v1341
    %v2192 = vunpack.c.h.b16 %v1341
    %v2193 = vunpack.c.l.b16 %v1342
    %v2194 = vunpack.c.h.b16 %v1342
    %v2195 = vunpack.c.l.b16 %v1343
    %v2196 = vunpack.c.h.b16 %v1343
    %v2197 = vpack.c.b16 %v1701, %v1685
    %v2198 = vpack.c.b16 %v1702, %v1686
    %v2199 = vpack.c.b16 %v1703, %v1687
    %v2200 = vpack.c.b16 %v1704, %v1688
    %v2201 = vpack.c.b16 %v1705, %v1689
    %v2202 = vpack.c.b16 %v1706, %v1690
    %v2203 = vpack.c.b16 %v1707, %v1691
    %v2204 = vpack.c.b16 %v1708, %v1692
    %v2205 = vpack.c.b16 %v1709, %v1693
    %v2206 = vpack.c.b16 %v1710, %v1694
    %v2207 = vpack.c.b16 %v1711, %v1695
    %v2208 = vpack.c.b16 %v1712, %v1696
    %v2209 = vpack.c.b16 %v1713, %v1697
    %v2210 = vpack.c.b16 %v1714, %v1698
    %v2211 = vpack.c.b16 %v1715, %v1699
    %v2212 = vpack.c.b16 %v1716, %v1700
    %v2213 = vpack.c.b16 %v1733, %v1717
    %v2214 = vpack.c.b16 %v1734, %v1718
    %v2215 = vpack.c.b16 %v1735, %v1719
    %v2216 = vpack.c.b16 %v1736, %v1720
    %v2217 = vpack.c.b16 %v1737, %v1721
    %v2218 = vpack.c.b16 %v1738, %v1722
    %v2219 = vpack.c.b16 %v1739, %v1723
    %v2220 = vpack.c.b16 %v1740, %v1724
    %v2221 = vpack.c.b16 %v1741, %v1725
    %v2222 = vpack.c.b16 %v1742, %v1726
    %v2223 = vpack.c.b16 %v1743, %v1727
    %v2224 = vpack.c.b16 %v1744, %v1728
    %v2225 = vpack.c.b16 %v1745, %v1729
    %v2226 = vpack.c.b16 %v1746, %v1730
    %v2227 = vpack.c.b16 %v1747, %v1731
    %v2228 = vpack.c.b16 %v1748, %v1732
    %v2229 = vpack.c.b16 %v1765, %v1749
    %v2230 = vpack.c.b16 %v1766, %v1750
    %v2231 = vpack.c.b16 %v1767, %v1751
    %v2232 = vpack.c.b16 %v1768, %v1752
    %v2233 = vpack.c.b16 %v1769, %v1753
    %v2234 = vpack.c.b16 %v1770, %v1754
    %v2235 = vpack.c.b16 %v1771, %v1755
    %v2236 = vpack.c.b16 %v1772, %v1756
    %v2237 = vpack.c.b16 %v1773, %v1757
    %v2238 = vpack.c.b16 %v1774, %v1758
    %v2239 = vpack.c.b16 %v1775, %v1759
    %v2240 = vpack.c.b16 %v1776, %v1760
    %v2241 = vpack.c.b16 %v1777, %v1761
    %v2242 = vpack.c.b16 %v1778, %v1762
    %v2243 = vpack.c.b16 %v1779, %v1763
    %v2244 = vpack.c.b16 %v1780, %v1764
    %v2245 = vpack.c.b16 %v1797, %v1781
    %v2246 = vpack.c.b16 %v1798, %v1782
    %v2247 = vpack.c.b16 %v1799, %v1783
    %v2248 = vpack.c.b16 %v1800, %v1784
    %v2249 = vpack.c.b16 %v1801, %v1785
    %v2250 = vpack.c.b16 %v1802, %v1786
    %v2251 = vpack.c.b16 %v1803, %v1787
    %v2252 = vpack.c.b16 %v1804, %v1788
    %v2253 = vpack.c.b16 %v1805, %v1789
    %v2254 = vpack.c.b16 %v1806, %v1790
    %v2255 = vpack.c.b16 %v1807, %v1791
    %v2256 = vpack.c.b16 %v1808, %v1792
    %v2257 = vpack.c.b16 %v1809, %v1793
    %v2258 = vpack.c.b16 %v1810, %v1794
    %v2259 = vpack.c.b16 %v1811, %v1795
    %v2260 = vpack.c.b16 %v1812, %v1796
    %v2261 = vpack.c.b16 %v1829, %v1813
    %v2262 = vpack.c.b16 %v1830, %v1814
    %v2263 = vpack.c.b16 %v1831, %v1815
    %v2264 = vpack.c.b16 %v1832, %v1816
    %v2265 = vpack.c.b16 %v1833, %v1817
    %v2266 = vpack.c.b16 %v1834, %v1818
    %v2267 = vpack.c.b16 %v1835, %v1819
    %v2268 = vpack.c.b16 %v1836, %v1820
    %v2269 = vpack.c.b16 %v1837, %v1821
    %v2270 = vpack.c.b16 %v1838, %v1822
    %v2271 = vpack.c.b16 %v1839, %v1823
    %v2272 = vpack.c.b16 %v1840, %v1824
    %v2273 = vpack.c.b16 %v1841, %v1825
    %v2274 = vpack.c.b16 %v1842, %v1826
    %v2275 = vpack.c.b16 %v1843, %v1827
    %v2276 = vpack.c.b16 %v1844, %v1828
    %v2277 = vpack.c.b16 %v1861, %v1845
    %v2278 = vpack.c.b16 %v1862, %v1846
    %v2279 = vpack.c.b16 %v1863, %v1847
    %v2280 = vpack.c.b16 %v1864, %v1848
    %v2281 = vpack.c.b16 %v1865, %v1849
    %v2282 = vpack.c.b16 %v1866, %v1850
    %v2283 = vpack.c.b16 %v1867, %v1851
    %v2284 = vpack.c.b16 %v1868, %v1852
    %v2285 = vpack.c.b16 %v1869, %v1853
    %v2286 = vpack.c.b16 %v1870, %v1854
    %v2287 = vpack.c.b16 %v1871, %v1855
    %v2288 = vpack.c.b16 %v1872, %v1856
    %v2289 = vpack.c.b16 %v1873, %v1857
    %v2290 = vpack.c.b16 %v1874, %v1858
    %v2291 = vpack.c.b16 %v1875, %v1859
    %v2292 = vpack.c.b16 %v1876, %v1860
    %v2293 = vpack.c.b16 %v1893, %v1877
    %v2294 = vpack.c.b16 %v1894, %v1878
    %v2295 = vpack.c.b16 %v1895, %v1879
    %v2296 = vpack.c.b16 %v1896, %v1880
    %v2297 = vpack.c.b16 %v1897, %v1881
    %v2298 = vpack.c.b16 %v1898, %v1882
    %v2299 = vpack.c.b16 %v1899, %v1883
    %v2300 = vpack.c.b16 %v1900, %v1884
    %v2301 = vpack.c.b16 %v1901, %v1885
    %v2302 = vpack.c.b16 %v1902, %v1886
    %v2303 = vpack.c.b16 %v1903, %v1887
    %v2304 = vpack.c.b16 %v1904, %v1888
    %v2305 = vpack.c.b16 %v1905, %v1889
    %v2306 = vpack.c.b16 %v1906, %v1890
    %v2307 = vpack.c.b16 %v1907, %v1891
    %v2308 = vpack.c.b16 %v1908, %v1892
    %v2309 = vpack.c.b16 %v1925, %v1909
    %v2310 = vpack.c.b16 %v1926, %v1910
    %v2311 = vpack.c.b16 %v1927, %v1911
    %v2312 = vpack.c.b16 %v1928, %v1912
    %v2313 = vpack.c.b16 %v1929, %v1913
    %v2314 = vpack.c.b16 %v1930, %v1914
    %v2315 = vpack.c.b16 %v1931, %v1915
    %v2316 = vpack.c.b16 %v1932, %v1916
    %v2317 = vpack.c.b16 %v1933, %v1917
    %v2318 = vpack.c.b16 %v1934, %v1918
    %v2319 = vpack.c.b16 %v1935, %v1919
    %v2320 = vpack.c.b16 %v1936, %v1920
    %v2321 = vpack.c.b16 %v1937, %v1921
    %v2322 = vpack.c.b16 %v1938, %v1922
    %v2323 = vpack.c.b16 %v1939, %v1923
    %v2324 = vpack.c.b16 %v1940, %v1924
    %v2325 = vpack.c.b16 %v1957, %v1941
    %v2326 = vpack.c.b16 %v1958, %v1942
    %v2327 = vpack.c.b16 %v1959, %v1943
    %v2328 = vpack.c.b16 %v1960, %v1944
    %v2329 = vpack.c.b16 %v1961, %v1945
    %v2330 = vpack.c.b16 %v1962, %v1946
    %v2331 = vpack.c.b16 %v1963, %v1947
    %v2332 = vpack.c.b16 %v1964, %v1948
    %v2333 = vpack.c.b16 %v1965, %v1949
    %v2334 = vpack.c.b16 %v1966, %v1950
    %v2335 = vpack.c.b16 %v1967, %v1951
    %v2336 = vpack.c.b16 %v1968, %v1952
    %v2337 = vpack.c.b16 %v1969, %v1953
    %v2338 = vpack.c.b16 %v1970, %v1954
    %v2339 = vpack.c.b16 %v1971, %v1955
    %v2340 = vpack.c.b16 %v1972, %v1956
    %v2341 = vpack.c.b16 %v1989, %v1973
    %v2342 = vpack.c.b16 %v1990, %v1974
    %v2343 = vpack.c.b16 %v1991, %v1975
    %v2344 = vpack.c.b16 %v1992, %v1976
    %v2345 = vpack.c.b16 %v1993, %v1977
    %v2346 = vpack.c.b16 %v1994, %v1978
    %v2347 = vpack.c.b16 %v1995, %v1979
    %v2348 = vpack.c.b16 %v1996, %v1980
    %v2349 = vpack.c.b16 %v1997, %v1981
    %v2350 = vpack.c.b16 %v1998, %v1982
    %v2351 = vpack.c.b16 %v1999, %v1983
    %v2352 = vpack.c.b16 %v2000, %v1984
    %v2353 = vpack.c.b16 %v2001, %v1985
    %v2354 = vpack.c.b16 %v2002, %v1986
    %v2355 = vpack.c.b16 %v2003, %v1987
    %v2356 = vpack.c.b16 %v2004, %v1988
    %v2357 = vpack.c.b16 %v2021, %v2005
    %v2358 = vpack.c.b16 %v2022, %v2006
    %v2359 = vpack.c.b16 %v2023, %v2007
    %v2360 = vpack.c.b16 %v2024, %v2008
    %v2361 = vpack.c.b16 %v2025, %v2009
    %v2362 = vpack.c.b16 %v2026, %v2010
    %v2363 = vpack.c.b16 %v2027, %v2011
    %v2364 = vpack.c.b16 %v2028, %v2012
    %v2365 = vpack.c.b16 %v2029, %v2013
    %v2366 = vpack.c.b16 %v2030, %v2014
    %v2367 = vpack.c.b16 %v2031, %v2015
    %v2368 = vpack.c.b16 %v2032, %v2016
    %v2369 = vpack.c.b16 %v2033, %v2017
    %v2370 = vpack.c.b16 %v2034, %v2018
    %v2371 = vpack.c.b16 %v2035, %v2019
    %v2372 = vpack.c.b16 %v2036, %v2020
    %v2373 = vpack.c.b16 %v2053, %v2037
    %v2374 = vpack.c.b16 %v2054, %v2038
    %v2375 = vpack.c.b16 %v2055, %v2039
    %v2376 = vpack.c.b16 %v2056, %v2040
    %v2377 = vpack.c.b16 %v2057, %v2041
    %v2378 = vpack.c.b16 %v2058, %v2042
    %v2379 = vpack.c.b16 %v2059, %v2043
    %v2380 = vpack.c.b16 %v2060, %v2044
    %v2381 = vpack.c.b16 %v2061, %v2045
    %v2382 = vpack.c.b16 %v2062, %v2046
    %v2383 = vpack.c.b16 %v2063, %v2047
    %v2384 = vpack.c.b16 %v2064, %v2048
    %v2385 = vpack.c.b16 %v2065, %v2049
    %v2386 = vpack.c.b16 %v2066, %v2050
    %v2387 = vpack.c.b16 %v2067, %v2051
    %v2388 = vpack.c.b16 %v2068, %v2052
    %v2389 = vpack.c.b16 %v2085, %v2069
    %v2390 = vpack.c.b16 %v2086, %v2070
    %v2391 = vpack.c.b16 %v2087, %v2071
    %v2392 = vpack.c.b16 %v2088, %v2072
    %v2393 = vpack.c.b16 %v2089, %v2073
    %v2394 = vpack.c.b16 %v2090, %v2074
    %v2395 = vpack.c.b16 %v2091, %v2075
    %v2396 = vpack.c.b16 %v2092, %v2076
    %v2397 = vpack.c.b16 %v2093, %v2077
    %v2398 = vpack.c.b16 %v2094, %v2078
    %v2399 = vpack.c.b16 %v2095, %v2079
    %v2400 = vpack.c.b16 %v2096, %v2080
    %v2401 = vpack.c.b16 %v2097, %v2081
    %v2402 = vpack.c.b16 %v2098, %v2082
    %v2403 = vpack.c.b16 %v2099, %v2083
    %v2404 = vpack.c.b16 %v2100, %v2084
    %v2405 = vpack.c.b16 %v2117, %v2101
    %v2406 = vpack.c.b16 %v2118, %v2102
    %v2407 = vpack.c.b16 %v2119, %v2103
    %v2408 = vpack.c.b16 %v2120, %v2104
    %v2409 = vpack.c.b16 %v2121, %v2105
    %v2410 = vpack.c.b16 %v2122, %v2106
    %v2411 = vpack.c.b16 %v2123, %v2107
    %v2412 = vpack.c.b16 %v2124, %v2108
    %v2413 = vpack.c.b16 %v2125, %v2109
    %v2414 = vpack.c.b16 %v2126, %v2110
    %v2415 = vpack.c.b16 %v2127, %v2111
    %v2416 = vpack.c.b16 %v2128, %v2112
    %v2417 = vpack.c.b16 %v2129, %v2113
    %v2418 = vpack.c.b16 %v2130, %v2114
    %v2419 = vpack.c.b16 %v2131, %v2115
    %v2420 = vpack.c.b16 %v2132, %v2116
    %v2421 = vpack.c.b16 %v2149, %v2133
    %v2422 = vpack.c.b16 %v2150, %v2134
    %v2423 = vpack.c.b16 %v2151, %v2135
    %v2424 = vpack.c.b16 %v2152, %v2136
    %v2425 = vpack.c.b16 %v2153, %v2137
    %v2426 = vpack.c.b16 %v2154, %v2138
    %v2427 = vpack.c.b16 %v2155, %v2139
    %v2428 = vpack.c.b16 %v2156, %v2140
    %v2429 = vpack.c.b16 %v2157, %v2141
    %v2430 = vpack.c.b16 %v2158, %v2142
    %v2431 = vpack.c.b16 %v2159, %v2143
    %v2432 = vpack.c.b16 %v2160, %v2144
    %v2433 = vpack.c.b16 %v2161, %v2145
    %v2434 = vpack.c.b16 %v2162, %v2146
    %v2435 = vpack.c.b16 %v2163, %v2147
    %v2436 = vpack.c.b16 %v2164, %v2148
    %v2437 = vpack.c.b16 %v2181, %v2165
    %v2438 = vpack.c.b16 %v2182, %v2166
    %v2439 = vpack.c.b16 %v2183, %v2167
    %v2440 = vpack.c.b16 %v2184, %v2168
    %v2441 = vpack.c.b16 %v2185, %v2169
    %v2442 = vpack.c.b16 %v2186, %v2170
    %v2443 = vpack.c.b16 %v2187, %v2171
    %v2444 = vpack.c.b16 %v2188, %v2172
    %v2445 = vpack.c.b16 %v2189, %v2173
    %v2446 = vpack.c.b16 %v2190, %v2174
    %v2447 = vpack.c.b16 %v2191, %v2175
    %v2448 = vpack.c.b16 %v2192, %v2176
    %v2449 = vpack.c.b16 %v2193, %v2177
    %v2450 = vpack.c.b16 %v2194, %v2178
    %v2451 = vpack.c.b16 %v2195, %v2179
    %v2452 = vpack.c.b16 %v2196, %v2180
    %2709 = vmatprep.subr.bf16.mxu0 %v2310
    %2710 = vmatpush1.bf16.msra.mxu0 %v2309
    %2711 = vmatprep.subr.bf16.mxu0 %v2294
    %2712 = vmatpush1.bf16.msra.mxu0 %v2293
    %2713 = vmatprep.subr.bf16.mxu0 %v2278
    %2714 = vmatpush1.bf16.msra.mxu0 %v2277
    %2715 = vmatprep.subr.bf16.mxu0 %v2262
    %2716 = vmatpush1.bf16.msra.mxu0 %v2261
    %2717 = vmatprep.subr.bf16.mxu0 %v2246
    %2718 = vmatpush1.bf16.msra.mxu0 %v2245
    %2719 = vmatprep.subr.bf16.mxu0 %v2230
    %2720 = vmatpush1.bf16.msra.mxu0 %v2229
    %2721 = vmatprep.subr.bf16.mxu0 %v2214
    %2722 = vmatpush1.bf16.msra.mxu0 %v2213
    %2723 = vmatprep.subr.bf16.mxu0 %v2198
    %2724 = vmatpush1.bf16.msra.mxu0 %v2197
    %2725 = vmatprep.subr.bf16.mxu0 %v2438
    %2726 = vmatpush2.bf16.msra.mxu0 %v2437
    %2727 = vmatprep.subr.bf16.mxu0 %v2422
    %2728 = vmatpush2.bf16.msra.mxu0 %v2421
    %2729 = vmatprep.subr.bf16.mxu0 %v2406
    %2730 = vmatpush2.bf16.msra.mxu0 %v2405
    %2731 = vmatprep.subr.bf16.mxu0 %v2390
    %2732 = vmatpush2.bf16.msra.mxu0 %v2389
    %2733 = vmatprep.subr.bf16.mxu0 %v2374
    %2734 = vmatpush2.bf16.msra.mxu0 %v2373
    %2735 = vmatprep.subr.bf16.mxu0 %v2358
    %2736 = vmatpush2.bf16.msra.mxu0 %v2357
    %2737 = vmatprep.subr.bf16.mxu0 %v2342
    %2738 = vmatpush2.bf16.msra.mxu0 %v2341
    %2739 = vmatprep.subr.bf16.mxu0 %v2326
    %2740 = vmatpush2.bf16.msra.mxu0 %v2325
    %2741 = vmatprep.mubr.bf16.mxu0 %v1087
    %2742 = vmatmul.mubr.bf16.gmra.mxu0 %v1086
    %v2743 = vpop.f32.mrf.mxu0
    %v2744 = vadd.f32 %v1352, %v2743
    %v2745 = vpop.f32.mrf.mxu0
    %v2746 = vadd.f32 %v1356, %v2745
    %v2747 = vpop.f32.mrf.mxu0
    %v2748 = vpop.f32.mrf.mxu0
    %2749 = vdwg.mxu0
    %2750 = vmatprep.subr.bf16.mxu0 %v2312
    %2751 = vmatpush1.bf16.msra.mxu0 %v2311
    %2752 = vmatprep.subr.bf16.mxu0 %v2296
    %2753 = vmatpush1.bf16.msra.mxu0 %v2295
    %2754 = vmatprep.subr.bf16.mxu0 %v2280
    %2755 = vmatpush1.bf16.msra.mxu0 %v2279
    %2756 = vmatprep.subr.bf16.mxu0 %v2264
    %2757 = vmatpush1.bf16.msra.mxu0 %v2263
    %2758 = vmatprep.subr.bf16.mxu0 %v2248
    %2759 = vmatpush1.bf16.msra.mxu0 %v2247
    %2760 = vmatprep.subr.bf16.mxu0 %v2232
    %2761 = vmatpush1.bf16.msra.mxu0 %v2231
    %2762 = vmatprep.subr.bf16.mxu0 %v2216
    %2763 = vmatpush1.bf16.msra.mxu0 %v2215
    %2764 = vmatprep.subr.bf16.mxu0 %v2200
    %2765 = vmatpush1.bf16.msra.mxu0 %v2199
    %2766 = vmatprep.subr.bf16.mxu0 %v2440
    %2767 = vmatpush2.bf16.msra.mxu0 %v2439
    %2768 = vmatprep.subr.bf16.mxu0 %v2424
    %2769 = vmatpush2.bf16.msra.mxu0 %v2423
    %2770 = vmatprep.subr.bf16.mxu0 %v2408
    %2771 = vmatpush2.bf16.msra.mxu0 %v2407
    %2772 = vmatprep.subr.bf16.mxu0 %v2392
    %2773 = vmatpush2.bf16.msra.mxu0 %v2391
    %2774 = vmatprep.subr.bf16.mxu0 %v2376
    %2775 = vmatpush2.bf16.msra.mxu0 %v2375
    %2776 = vmatprep.subr.bf16.mxu0 %v2360
    %2777 = vmatpush2.bf16.msra.mxu0 %v2359
    %2778 = vmatprep.subr.bf16.mxu0 %v2344
    %2779 = vmatpush2.bf16.msra.mxu0 %v2343
    %2780 = vmatprep.subr.bf16.mxu0 %v2328
    %2781 = vmatpush2.bf16.msra.mxu0 %v2327
    %2782 = vmatprep.mubr.bf16.mxu0 %v1087
    %2783 = vmatmul.mubr.bf16.gmra.mxu0 %v1086
    %v2784 = vpop.f32.mrf.mxu0
    %v2785 = vadd.f32 %v1360, %v2784
    %v2786 = vpop.f32.mrf.mxu0
    %v2787 = vadd.f32 %v1364, %v2786
    %v2788 = vpop.f32.mrf.mxu0
    %v2789 = vpop.f32.mrf.mxu0
    %2790 = vdwg.mxu0
    %2791 = vmatprep.subr.bf16.mxu0 %v2314
    %2792 = vmatpush1.bf16.msra.mxu0 %v2313
    %2793 = vmatprep.subr.bf16.mxu0 %v2298
    %2794 = vmatpush1.bf16.msra.mxu0 %v2297
    %2795 = vmatprep.subr.bf16.mxu0 %v2282
    %2796 = vmatpush1.bf16.msra.mxu0 %v2281
    %2797 = vmatprep.subr.bf16.mxu0 %v2266
    %2798 = vmatpush1.bf16.msra.mxu0 %v2265
    %2799 = vmatprep.subr.bf16.mxu0 %v2250
    %2800 = vmatpush1.bf16.msra.mxu0 %v2249
    %2801 = vmatprep.subr.bf16.mxu0 %v2234
    %2802 = vmatpush1.bf16.msra.mxu0 %v2233
    %2803 = vmatprep.subr.bf16.mxu0 %v2218
    %2804 = vmatpush1.bf16.msra.mxu0 %v2217
    %2805 = vmatprep.subr.bf16.mxu0 %v2202
    %2806 = vmatpush1.bf16.msra.mxu0 %v2201
    %2807 = vmatprep.subr.bf16.mxu0 %v2442
    %2808 = vmatpush2.bf16.msra.mxu0 %v2441
    %2809 = vmatprep.subr.bf16.mxu0 %v2426
    %2810 = vmatpush2.bf16.msra.mxu0 %v2425
    %2811 = vmatprep.subr.bf16.mxu0 %v2410
    %2812 = vmatpush2.bf16.msra.mxu0 %v2409
    %2813 = vmatprep.subr.bf16.mxu0 %v2394
    %2814 = vmatpush2.bf16.msra.mxu0 %v2393
    %2815 = vmatprep.subr.bf16.mxu0 %v2378
    %2816 = vmatpush2.bf16.msra.mxu0 %v2377
    %2817 = vmatprep.subr.bf16.mxu0 %v2362
    %2818 = vmatpush2.bf16.msra.mxu0 %v2361
    %2819 = vmatprep.subr.bf16.mxu0 %v2346
    %2820 = vmatpush2.bf16.msra.mxu0 %v2345
    %2821 = vmatprep.subr.bf16.mxu0 %v2330
    %2822 = vmatpush2.bf16.msra.mxu0 %v2329
    %2823 = vmatprep.mubr.bf16.mxu0 %v1087
    %2824 = vmatmul.mubr.bf16.gmra.mxu0 %v1086
    %v2825 = vpop.f32.mrf.mxu0
    %v2826 = vadd.f32 %v1368, %v2825
    %v2827 = vpop.f32.mrf.mxu0
    %v2828 = vadd.f32 %v1372, %v2827
    %v2829 = vpop.f32.mrf.mxu0
    %v2830 = vpop.f32.mrf.mxu0
    %2831 = vdwg.mxu0
    %2832 = vmatprep.subr.bf16.mxu0 %v2316
    %2833 = vmatpush1.bf16.msra.mxu0 %v2315
    %2834 = vmatprep.subr.bf16.mxu0 %v2300
    %2835 = vmatpush1.bf16.msra.mxu0 %v2299
    %2836 = vmatprep.subr.bf16.mxu0 %v2284
    %2837 = vmatpush1.bf16.msra.mxu0 %v2283
    %2838 = vmatprep.subr.bf16.mxu0 %v2268
    %2839 = vmatpush1.bf16.msra.mxu0 %v2267
    %2840 = vmatprep.subr.bf16.mxu0 %v2252
    %2841 = vmatpush1.bf16.msra.mxu0 %v2251
    %2842 = vmatprep.subr.bf16.mxu0 %v2236
    %2843 = vmatpush1.bf16.msra.mxu0 %v2235
    %2844 = vmatprep.subr.bf16.mxu0 %v2220
    %2845 = vmatpush1.bf16.msra.mxu0 %v2219
    %2846 = vmatprep.subr.bf16.mxu0 %v2204
    %2847 = vmatpush1.bf16.msra.mxu0 %v2203
    %2848 = vmatprep.subr.bf16.mxu0 %v2444
    %2849 = vmatpush2.bf16.msra.mxu0 %v2443
    %2850 = vmatprep.subr.bf16.mxu0 %v2428
    %2851 = vmatpush2.bf16.msra.mxu0 %v2427
    %2852 = vmatprep.subr.bf16.mxu0 %v2412
    %2853 = vmatpush2.bf16.msra.mxu0 %v2411
    %2854 = vmatprep.subr.bf16.mxu0 %v2396
    %2855 = vmatpush2.bf16.msra.mxu0 %v2395
    %2856 = vmatprep.subr.bf16.mxu0 %v2380
    %2857 = vmatpush2.bf16.msra.mxu0 %v2379
    %2858 = vmatprep.subr.bf16.mxu0 %v2364
    %2859 = vmatpush2.bf16.msra.mxu0 %v2363
    %2860 = vmatprep.subr.bf16.mxu0 %v2348
    %2861 = vmatpush2.bf16.msra.mxu0 %v2347
    %2862 = vmatprep.subr.bf16.mxu0 %v2332
    %2863 = vmatpush2.bf16.msra.mxu0 %v2331
    %2864 = vmatprep.mubr.bf16.mxu0 %v1087
    %2865 = vmatmul.mubr.bf16.gmra.mxu0 %v1086
    %v2866 = vpop.f32.mrf.mxu0
    %v2867 = vadd.f32 %v1376, %v2866
    %v2868 = vpop.f32.mrf.mxu0
    %v2869 = vadd.f32 %v1380, %v2868
    %v2870 = vpop.f32.mrf.mxu0
    %v2871 = vpop.f32.mrf.mxu0
    %2872 = vdwg.mxu0
    %2873 = vmatprep.subr.bf16.mxu0 %v2318
    %2874 = vmatpush1.bf16.msra.mxu0 %v2317
    %2875 = vmatprep.subr.bf16.mxu0 %v2302
    %2876 = vmatpush1.bf16.msra.mxu0 %v2301
    %2877 = vmatprep.subr.bf16.mxu0 %v2286
    %2878 = vmatpush1.bf16.msra.mxu0 %v2285
    %2879 = vmatprep.subr.bf16.mxu0 %v2270
    %2880 = vmatpush1.bf16.msra.mxu0 %v2269
    %2881 = vmatprep.subr.bf16.mxu0 %v2254
    %2882 = vmatpush1.bf16.msra.mxu0 %v2253
    %2883 = vmatprep.subr.bf16.mxu0 %v2238
    %2884 = vmatpush1.bf16.msra.mxu0 %v2237
    %2885 = vmatprep.subr.bf16.mxu0 %v2222
    %2886 = vmatpush1.bf16.msra.mxu0 %v2221
    %2887 = vmatprep.subr.bf16.mxu0 %v2206
    %2888 = vmatpush1.bf16.msra.mxu0 %v2205
    %2889 = vmatprep.subr.bf16.mxu0 %v2446
    %2890 = vmatpush2.bf16.msra.mxu0 %v2445
    %2891 = vmatprep.subr.bf16.mxu0 %v2430
    %2892 = vmatpush2.bf16.msra.mxu0 %v2429
    %2893 = vmatprep.subr.bf16.mxu0 %v2414
    %2894 = vmatpush2.bf16.msra.mxu0 %v2413
    %2895 = vmatprep.subr.bf16.mxu0 %v2398
    %2896 = vmatpush2.bf16.msra.mxu0 %v2397
    %2897 = vmatprep.subr.bf16.mxu0 %v2382
    %2898 = vmatpush2.bf16.msra.mxu0 %v2381
    %2899 = vmatprep.subr.bf16.mxu0 %v2366
    %2900 = vmatpush2.bf16.msra.mxu0 %v2365
    %2901 = vmatprep.subr.bf16.mxu0 %v2350
    %2902 = vmatpush2.bf16.msra.mxu0 %v2349
    %2903 = vmatprep.subr.bf16.mxu0 %v2334
    %2904 = vmatpush2.bf16.msra.mxu0 %v2333
    %2905 = vmatprep.mubr.bf16.mxu0 %v1087
    %2906 = vmatmul.mubr.bf16.gmra.mxu0 %v1086
    %v2907 = vpop.f32.mrf.mxu0
    %v2908 = vadd.f32 %v1384, %v2907
    %v2909 = vpop.f32.mrf.mxu0
    %v2910 = vadd.f32 %v1388, %v2909
    %v2911 = vpop.f32.mrf.mxu0
    %v2912 = vpop.f32.mrf.mxu0
    %2913 = vdwg.mxu0
    %2914 = vmatprep.subr.bf16.mxu0 %v2320
    %2915 = vmatpush1.bf16.msra.mxu0 %v2319
    %2916 = vmatprep.subr.bf16.mxu0 %v2304
    %2917 = vmatpush1.bf16.msra.mxu0 %v2303
    %2918 = vmatprep.subr.bf16.mxu0 %v2288
    %2919 = vmatpush1.bf16.msra.mxu0 %v2287
    %2920 = vmatprep.subr.bf16.mxu0 %v2272
    %2921 = vmatpush1.bf16.msra.mxu0 %v2271
    %2922 = vmatprep.subr.bf16.mxu0 %v2256
    %2923 = vmatpush1.bf16.msra.mxu0 %v2255
    %2924 = vmatprep.subr.bf16.mxu0 %v2240
    %2925 = vmatpush1.bf16.msra.mxu0 %v2239
    %2926 = vmatprep.subr.bf16.mxu0 %v2224
    %2927 = vmatpush1.bf16.msra.mxu0 %v2223
    %2928 = vmatprep.subr.bf16.mxu0 %v2208
    %2929 = vmatpush1.bf16.msra.mxu0 %v2207
    %2930 = vmatprep.subr.bf16.mxu0 %v2448
    %2931 = vmatpush2.bf16.msra.mxu0 %v2447
    %2932 = vmatprep.subr.bf16.mxu0 %v2432
    %2933 = vmatpush2.bf16.msra.mxu0 %v2431
    %2934 = vmatprep.subr.bf16.mxu0 %v2416
    %2935 = vmatpush2.bf16.msra.mxu0 %v2415
    %2936 = vmatprep.subr.bf16.mxu0 %v2400
    %2937 = vmatpush2.bf16.msra.mxu0 %v2399
    %2938 = vmatprep.subr.bf16.mxu0 %v2384
    %2939 = vmatpush2.bf16.msra.mxu0 %v2383
    %2940 = vmatprep.subr.bf16.mxu0 %v2368
    %2941 = vmatpush2.bf16.msra.mxu0 %v2367
    %2942 = vmatprep.subr.bf16.mxu0 %v2352
    %2943 = vmatpush2.bf16.msra.mxu0 %v2351
    %2944 = vmatprep.subr.bf16.mxu0 %v2336
    %2945 = vmatpush2.bf16.msra.mxu0 %v2335
    %2946 = vmatprep.mubr.bf16.mxu0 %v1087
    %2947 = vmatmul.mubr.bf16.gmra.mxu0 %v1086
    %v2948 = vpop.f32.mrf.mxu0
    %v2949 = vadd.f32 %v1392, %v2948
    %v2950 = vpop.f32.mrf.mxu0
    %v2951 = vadd.f32 %v1396, %v2950
    %v2952 = vpop.f32.mrf.mxu0
    %v2953 = vpop.f32.mrf.mxu0
    %2954 = vdwg.mxu0
    %2955 = vmatprep.subr.bf16.mxu0 %v2322
    %2956 = vmatpush1.bf16.msra.mxu0 %v2321
    %2957 = vmatprep.subr.bf16.mxu0 %v2306
    %2958 = vmatpush1.bf16.msra.mxu0 %v2305
    %2959 = vmatprep.subr.bf16.mxu0 %v2290
    %2960 = vmatpush1.bf16.msra.mxu0 %v2289
    %2961 = vmatprep.subr.bf16.mxu0 %v2274
    %2962 = vmatpush1.bf16.msra.mxu0 %v2273
    %2963 = vmatprep.subr.bf16.mxu0 %v2258
    %2964 = vmatpush1.bf16.msra.mxu0 %v2257
    %2965 = vmatprep.subr.bf16.mxu0 %v2242
    %2966 = vmatpush1.bf16.msra.mxu0 %v2241
    %2967 = vmatprep.subr.bf16.mxu0 %v2226
    %2968 = vmatpush1.bf16.msra.mxu0 %v2225
    %2969 = vmatprep.subr.bf16.mxu0 %v2210
    %2970 = vmatpush1.bf16.msra.mxu0 %v2209
    %2971 = vmatprep.subr.bf16.mxu0 %v2450
    %2972 = vmatpush2.bf16.msra.mxu0 %v2449
    %2973 = vmatprep.subr.bf16.mxu0 %v2434
    %2974 = vmatpush2.bf16.msra.mxu0 %v2433
    %2975 = vmatprep.subr.bf16.mxu0 %v2418
    %2976 = vmatpush2.bf16.msra.mxu0 %v2417
    %2977 = vmatprep.subr.bf16.mxu0 %v2402
    %2978 = vmatpush2.bf16.msra.mxu0 %v2401
    %2979 = vmatprep.subr.bf16.mxu0 %v2386
    %2980 = vmatpush2.bf16.msra.mxu0 %v2385
    %2981 = vmatprep.subr.bf16.mxu0 %v2370
    %2982 = vmatpush2.bf16.msra.mxu0 %v2369
    %2983 = vmatprep.subr.bf16.mxu0 %v2354
    %2984 = vmatpush2.bf16.msra.mxu0 %v2353
    %2985 = vmatprep.subr.bf16.mxu0 %v2338
    %2986 = vmatpush2.bf16.msra.mxu0 %v2337
    %2987 = vmatprep.mubr.bf16.mxu0 %v1087
    %2988 = vmatmul.mubr.bf16.gmra.mxu0 %v1086
    %v2989 = vpop.f32.mrf.mxu0
    %v2990 = vadd.f32 %v1400, %v2989
    %v2991 = vpop.f32.mrf.mxu0
    %v2992 = vadd.f32 %v1404, %v2991
    %v2993 = vpop.f32.mrf.mxu0
    %v2994 = vpop.f32.mrf.mxu0
    %2995 = vdwg.mxu0
    %2996 = vmatprep.subr.bf16.mxu0 %v2324
    %2997 = vmatpush1.bf16.msra.mxu0 %v2323
    %2998 = vmatprep.subr.bf16.mxu0 %v2308
    %2999 = vmatpush1.bf16.msra.mxu0 %v2307
    %3000 = vmatprep.subr.bf16.mxu0 %v2292
    %3001 = vmatpush1.bf16.msra.mxu0 %v2291
    %3002 = vmatprep.subr.bf16.mxu0 %v2276
    %3003 = vmatpush1.bf16.msra.mxu0 %v2275
    %3004 = vmatprep.subr.bf16.mxu0 %v2260
    %3005 = vmatpush1.bf16.msra.mxu0 %v2259
    %3006 = vmatprep.subr.bf16.mxu0 %v2244
    %3007 = vmatpush1.bf16.msra.mxu0 %v2243
    %3008 = vmatprep.subr.bf16.mxu0 %v2228
    %3009 = vmatpush1.bf16.msra.mxu0 %v2227
    %3010 = vmatprep.subr.bf16.mxu0 %v2212
    %3011 = vmatpush1.bf16.msra.mxu0 %v2211
    %3012 = vmatprep.subr.bf16.mxu0 %v2452
    %3013 = vmatpush2.bf16.msra.mxu0 %v2451
    %3014 = vmatprep.subr.bf16.mxu0 %v2436
    %3015 = vmatpush2.bf16.msra.mxu0 %v2435
    %3016 = vmatprep.subr.bf16.mxu0 %v2420
    %3017 = vmatpush2.bf16.msra.mxu0 %v2419
    %3018 = vmatprep.subr.bf16.mxu0 %v2404
    %3019 = vmatpush2.bf16.msra.mxu0 %v2403
    %3020 = vmatprep.subr.bf16.mxu0 %v2388
    %3021 = vmatpush2.bf16.msra.mxu0 %v2387
    %3022 = vmatprep.subr.bf16.mxu0 %v2372
    %3023 = vmatpush2.bf16.msra.mxu0 %v2371
    %3024 = vmatprep.subr.bf16.mxu0 %v2356
    %3025 = vmatpush2.bf16.msra.mxu0 %v2355
    %3026 = vmatprep.subr.bf16.mxu0 %v2340
    %3027 = vmatpush2.bf16.msra.mxu0 %v2339
    %3028 = vmatprep.mubr.bf16.mxu0 %v1087
    %3029 = vmatmul.mubr.bf16.gmra.mxu0 %v1086
    %v3030 = vpop.f32.mrf.mxu0
    %v3031 = vadd.f32 %v1408, %v3030
    %v3032 = vpop.f32.mrf.mxu0
    %v3033 = vadd.f32 %v1412, %v3032
    %v3034 = vpop.f32.mrf.mxu0
    %v3035 = vpop.f32.mrf.mxu0
    %3036 = vdwg.mxu0
    %v3037 = vtanh.pop %v2744
    %v3038 = vtanh.pop %v2746
    %v3039 = vtanh.pop %v2785
    %v3040 = vtanh.pop %v2787
    %v3041 = vtanh.pop %v2826
    %v3042 = vtanh.pop %v2828
    %v3043 = vtanh.pop %v2867
    %v3044 = vtanh.pop %v2869
    %v3045 = vmul.f32 %v3037, 1.442695
    %v3046 = vpow.pop %v3045
    %v3047 = vmul.f32 %v3038, 1.442695
    %v3048 = vpow.pop %v3047
    %v3049 = vmul.f32 %v3039, 1.442695
    %v3050 = vpow.pop %v3049
    %v3051 = vmul.f32 %v3040, 1.442695
    %v3052 = vpow.pop %v3051
    %v3053 = vmul.f32 %v3041, 1.442695
    %v3054 = vpow.pop %v3053
    %v3055 = vmul.f32 %v3042, 1.442695
    %v3056 = vpow.pop %v3055
    %v3057 = vmul.f32 %v3043, 1.442695
    %v3058 = vpow.pop %v3057
    %v3059 = vmul.f32 %v3044, 1.442695
    %v3060 = vpow.pop %v3059
    %v3069 = vcombine.low %v3046, %v3048
    %v3070 = vcombine.low %v3050, %v3052
    %v3072 = vunpack.c.l.s4 1983009808
    %v3073 = vunpack.c.0.s8 %v3072
    %v3074 = vlaneseq
    %v3075 = vshrl.u32 %v3074, 7
    %v3076 = vsub.s32 %v3073, %v3075
    %v3077 = vrot.slane %v3069, %v3076
    %v3079 = vunpack.c.l.s4 1983009808
    %v3080 = vunpack.c.0.s8 %v3079
    %v3081 = vlaneseq
    %v3082 = vshrl.u32 %v3081, 7
    %v3083 = vsub.s32 %v3080, %v3082
    %v3084 = vrot.slane %v3070, %v3083
    %v3085 = vcombine.low %v3077, %v3084
    %v3086 = vcombine.low %v3054, %v3056
    %v3087 = vcombine.low %v3058, %v3060
    %v3089 = vunpack.c.l.s4 1983009808
    %v3090 = vunpack.c.0.s8 %v3089
    %v3091 = vlaneseq
    %v3092 = vshrl.u32 %v3091, 7
    %v3093 = vsub.s32 %v3090, %v3092
    %v3094 = vrot.slane %v3086, %v3093
    %v3096 = vunpack.c.l.s4 1983009808
    %v3097 = vunpack.c.0.s8 %v3096
    %v3098 = vlaneseq
    %v3099 = vshrl.u32 %v3098, 7
    %v3100 = vsub.s32 %v3097, %v3099
    %v3101 = vrot.slane %v3087, %v3100
    %v3102 = vcombine.low %v3094, %v3101
    %v3105 = vmul.f32 %v86, %v3085
    %v3106 = vmul.f32 %v87, %v3102
    %v3115 = vcombine.low %v2908, %v2910
    %v3116 = vcombine.low %v2949, %v2951
    %v3118 = vunpack.c.l.s4 1983009808
    %v3119 = vunpack.c.0.s8 %v3118
    %v3120 = vlaneseq
    %v3121 = vshrl.u32 %v3120, 7
    %v3122 = vsub.s32 %v3119, %v3121
    %v3123 = vrot.slane %v3115, %v3122
    %v3125 = vunpack.c.l.s4 1983009808
    %v3126 = vunpack.c.0.s8 %v3125
    %v3127 = vlaneseq
    %v3128 = vshrl.u32 %v3127, 7
    %v3129 = vsub.s32 %v3126, %v3128
    %v3130 = vrot.slane %v3116, %v3129
    %v3131 = vcombine.low %v3123, %v3130
    %v3132 = vcombine.low %v2990, %v2992
    %v3133 = vcombine.low %v3031, %v3033
    %v3135 = vunpack.c.l.s4 1983009808
    %v3136 = vunpack.c.0.s8 %v3135
    %v3137 = vlaneseq
    %v3138 = vshrl.u32 %v3137, 7
    %v3139 = vsub.s32 %v3136, %v3138
    %v3140 = vrot.slane %v3132, %v3139
    %v3142 = vunpack.c.l.s4 1983009808
    %v3143 = vunpack.c.0.s8 %v3142
    %v3144 = vlaneseq
    %v3145 = vshrl.u32 %v3144, 7
    %v3146 = vsub.s32 %v3143, %v3145
    %v3147 = vrot.slane %v3133, %v3146
    %v3148 = vcombine.low %v3140, %v3147
    %v3151 = vadd.f32 %v3105, %v3131
    %v3152 = vadd.f32 %v3106, %v3148
    %vm3153 = vcmask 1041408
    %v3154 = vsel %vm3153, %v3037, 0.0
    %v3155 = vsel %vm3153, %v3038, 0.0
    %v3156 = vadd.f32 %v3154, %v3155
    %v3157 = vsel %vm3153, %v3039, 0.0
    %v3158 = vadd.f32 %v3156, %v3157
    %v3159 = vsel %vm3153, %v3040, 0.0
    %v3160 = vadd.f32 %v3158, %v3159
    %v3161 = vsel %vm3153, %v3041, 0.0
    %v3162 = vadd.f32 %v3160, %v3161
    %v3163 = vsel %vm3153, %v3042, 0.0
    %v3164 = vadd.f32 %v3162, %v3163
    %v3165 = vsel %vm3153, %v3043, 0.0
    %v3166 = vadd.f32 %v3164, %v3165
    %v3167 = vsel %vm3153, %v3044, 0.0
    %v3168 = vadd.f32 %v3166, %v3167
    %3169 = vadd.xlane.f32.xlu0 %v3168
    %v3170 = vpop.xlane.xlu0 %3169
    %v3171 = vadd.f32 %v3170, 0.0
    %v3174 = vcombine.high %v3151, %v3151
    %v3176 = vunpack.c.l.s4 1983009808
    %v3177 = vunpack.c.0.s8 %v3176
    %v3178 = vlaneseq
    %v3179 = vshrl.u32 %v3178, 7
    %v3180 = vsub.s32 %v3177, %v3179
    %v3181 = vrot.slane %v3151, %v3180
    %v3183 = vunpack.c.l.s4 1983009808
    %v3184 = vunpack.c.0.s8 %v3183
    %v3185 = vlaneseq
    %v3186 = vshrl.u32 %v3185, 7
    %v3187 = vsub.s32 %v3184, %v3186
    %v3188 = vrot.slane %v3174, %v3187
    %v3189 = vcombine.high %v3181, %v3181
    %v3190 = vcombine.high %v3188, %v3188
    %v3191 = vcombine.high %v3152, %v3152
    %v3193 = vunpack.c.l.s4 1983009808
    %v3194 = vunpack.c.0.s8 %v3193
    %v3195 = vlaneseq
    %v3196 = vshrl.u32 %v3195, 7
    %v3197 = vsub.s32 %v3194, %v3196
    %v3198 = vrot.slane %v3152, %v3197
    %v3200 = vunpack.c.l.s4 1983009808
    %v3201 = vunpack.c.0.s8 %v3200
    %v3202 = vlaneseq
    %v3203 = vshrl.u32 %v3202, 7
    %v3204 = vsub.s32 %v3201, %v3203
    %v3205 = vrot.slane %v3191, %v3204
    %v3206 = vcombine.high %v3198, %v3198
    %v3207 = vcombine.high %v3205, %v3205
    %v3216 = vpack.c.bf16 %v3181, %v3181
    %v3217 = vpack.c.bf16 %v3189, %v3189
    %v3218 = vpack.c.bf16 %v3188, %v3188
    %v3219 = vpack.c.bf16 %v3190, %v3190
    %v3220 = vpack.c.bf16 %v3198, %v3198
    %v3221 = vpack.c.bf16 %v3206, %v3206
    %v3222 = vpack.c.bf16 %v3205, %v3205
    %v3223 = vpack.c.bf16 %v3207, %v3207
    %s3224 = scalar_lea.vmem [#allocation5], 1024
    %v3225 = vld [vmem:[%s3224] sm:$0xff]
    %v3226 = vld [vmem:[%s3224 + $0x8] sm:$0xff]
    %v3227 = vld [vmem:[%s3224 + $0x10] sm:$0xff]
    %v3228 = vld [vmem:[%s3224 + $0x18] sm:$0xff]
    %v3229 = vld [vmem:[%s3224 + $0x20] sm:$0xff]
    %v3230 = vld [vmem:[%s3224 + $0x28] sm:$0xff]
    %v3231 = vld [vmem:[%s3224 + $0x30] sm:$0xff]
    %v3232 = vld [vmem:[%s3224 + $0x38] sm:$0xff]
    %v3233 = vld [vmem:[%s3224 + $0x40] sm:$0xff]
    %v3234 = vld [vmem:[%s3224 + $0x48] sm:$0xff]
    %v3235 = vld [vmem:[%s3224 + $0x50] sm:$0xff]
    %v3236 = vld [vmem:[%s3224 + $0x58] sm:$0xff]
    %v3237 = vld [vmem:[%s3224 + $0x60] sm:$0xff]
    %v3238 = vld [vmem:[%s3224 + $0x68] sm:$0xff]
    %v3239 = vld [vmem:[%s3224 + $0x70] sm:$0xff]
    %v3240 = vld [vmem:[%s3224 + $0x78] sm:$0xff]
    %v3241 = vld [vmem:[%s3224 + $0x80] sm:$0xff]
    %v3242 = vld [vmem:[%s3224 + $0x88] sm:$0xff]
    %v3243 = vld [vmem:[%s3224 + $0x90] sm:$0xff]
    %v3244 = vld [vmem:[%s3224 + $0x98] sm:$0xff]
    %v3245 = vld [vmem:[%s3224 + $0xa0] sm:$0xff]
    %v3246 = vld [vmem:[%s3224 + $0xa8] sm:$0xff]
    %v3247 = vld [vmem:[%s3224 + $0xb0] sm:$0xff]
    %v3248 = vld [vmem:[%s3224 + $0xb8] sm:$0xff]
    %v3249 = vld [vmem:[%s3224 + $0xc0] sm:$0xff]
    %v3250 = vld [vmem:[%s3224 + $0xc8] sm:$0xff]
    %v3251 = vld [vmem:[%s3224 + $0xd0] sm:$0xff]
    %v3252 = vld [vmem:[%s3224 + $0xd8] sm:$0xff]
    %v3253 = vld [vmem:[%s3224 + $0xe0] sm:$0xff]
    %v3254 = vld [vmem:[%s3224 + $0xe8] sm:$0xff]
    %v3255 = vld [vmem:[%s3224 + $0xf0] sm:$0xff]
    %v3256 = vld [vmem:[%s3224 + $0xf8] sm:$0xff]
    %v3257 = vld [vmem:[%s3224 + $0x100] sm:$0xff]
    %v3258 = vld [vmem:[%s3224 + $0x108] sm:$0xff]
    %v3259 = vld [vmem:[%s3224 + $0x110] sm:$0xff]
    %v3260 = vld [vmem:[%s3224 + $0x118] sm:$0xff]
    %v3261 = vld [vmem:[%s3224 + $0x120] sm:$0xff]
    %v3262 = vld [vmem:[%s3224 + $0x128] sm:$0xff]
    %v3263 = vld [vmem:[%s3224 + $0x130] sm:$0xff]
    %v3264 = vld [vmem:[%s3224 + $0x138] sm:$0xff]
    %v3265 = vld [vmem:[%s3224 + $0x140] sm:$0xff]
    %v3266 = vld [vmem:[%s3224 + $0x148] sm:$0xff]
    %v3267 = vld [vmem:[%s3224 + $0x150] sm:$0xff]
    %v3268 = vld [vmem:[%s3224 + $0x158] sm:$0xff]
    %v3269 = vld [vmem:[%s3224 + $0x160] sm:$0xff]
    %v3270 = vld [vmem:[%s3224 + $0x168] sm:$0xff]
    %v3271 = vld [vmem:[%s3224 + $0x170] sm:$0xff]
    %v3272 = vld [vmem:[%s3224 + $0x178] sm:$0xff]
    %v3273 = vld [vmem:[%s3224 + $0x180] sm:$0xff]
    %v3274 = vld [vmem:[%s3224 + $0x188] sm:$0xff]
    %v3275 = vld [vmem:[%s3224 + $0x190] sm:$0xff]
    %v3276 = vld [vmem:[%s3224 + $0x198] sm:$0xff]
    %v3277 = vld [vmem:[%s3224 + $0x1a0] sm:$0xff]
    %v3278 = vld [vmem:[%s3224 + $0x1a8] sm:$0xff]
    %v3279 = vld [vmem:[%s3224 + $0x1b0] sm:$0xff]
    %v3280 = vld [vmem:[%s3224 + $0x1b8] sm:$0xff]
    %v3281 = vld [vmem:[%s3224 + $0x1c0] sm:$0xff]
    %v3282 = vld [vmem:[%s3224 + $0x1c8] sm:$0xff]
    %v3283 = vld [vmem:[%s3224 + $0x1d0] sm:$0xff]
    %v3284 = vld [vmem:[%s3224 + $0x1d8] sm:$0xff]
    %v3285 = vld [vmem:[%s3224 + $0x1e0] sm:$0xff]
    %v3286 = vld [vmem:[%s3224 + $0x1e8] sm:$0xff]
    %v3287 = vld [vmem:[%s3224 + $0x1f0] sm:$0xff]
    %v3288 = vld [vmem:[%s3224 + $0x1f8] sm:$0xff]
    %v3289 = vld [vmem:[%s3224 + $0x200] sm:$0xff]
    %v3290 = vld [vmem:[%s3224 + $0x208] sm:$0xff]
    %v3291 = vld [vmem:[%s3224 + $0x210] sm:$0xff]
    %v3292 = vld [vmem:[%s3224 + $0x218] sm:$0xff]
    %v3293 = vld [vmem:[%s3224 + $0x220] sm:$0xff]
    %v3294 = vld [vmem:[%s3224 + $0x228] sm:$0xff]
    %v3295 = vld [vmem:[%s3224 + $0x230] sm:$0xff]
    %v3296 = vld [vmem:[%s3224 + $0x238] sm:$0xff]
    %v3297 = vld [vmem:[%s3224 + $0x240] sm:$0xff]
    %v3298 = vld [vmem:[%s3224 + $0x248] sm:$0xff]
    %v3299 = vld [vmem:[%s3224 + $0x250] sm:$0xff]
    %v3300 = vld [vmem:[%s3224 + $0x258] sm:$0xff]
    %v3301 = vld [vmem:[%s3224 + $0x260] sm:$0xff]
    %v3302 = vld [vmem:[%s3224 + $0x268] sm:$0xff]
    %v3303 = vld [vmem:[%s3224 + $0x270] sm:$0xff]
    %v3304 = vld [vmem:[%s3224 + $0x278] sm:$0xff]
    %v3305 = vld [vmem:[%s3224 + $0x280] sm:$0xff]
    %v3306 = vld [vmem:[%s3224 + $0x288] sm:$0xff]
    %v3307 = vld [vmem:[%s3224 + $0x290] sm:$0xff]
    %v3308 = vld [vmem:[%s3224 + $0x298] sm:$0xff]
    %v3309 = vld [vmem:[%s3224 + $0x2a0] sm:$0xff]
    %v3310 = vld [vmem:[%s3224 + $0x2a8] sm:$0xff]
    %v3311 = vld [vmem:[%s3224 + $0x2b0] sm:$0xff]
    %v3312 = vld [vmem:[%s3224 + $0x2b8] sm:$0xff]
    %v3313 = vld [vmem:[%s3224 + $0x2c0] sm:$0xff]
    %v3314 = vld [vmem:[%s3224 + $0x2c8] sm:$0xff]
    %v3315 = vld [vmem:[%s3224 + $0x2d0] sm:$0xff]
    %v3316 = vld [vmem:[%s3224 + $0x2d8] sm:$0xff]
    %v3317 = vld [vmem:[%s3224 + $0x2e0] sm:$0xff]
    %v3318 = vld [vmem:[%s3224 + $0x2e8] sm:$0xff]
    %v3319 = vld [vmem:[%s3224 + $0x2f0] sm:$0xff]
    %v3320 = vld [vmem:[%s3224 + $0x2f8] sm:$0xff]
    %v3321 = vld [vmem:[%s3224 + $0x300] sm:$0xff]
    %v3322 = vld [vmem:[%s3224 + $0x308] sm:$0xff]
    %v3323 = vld [vmem:[%s3224 + $0x310] sm:$0xff]
    %v3324 = vld [vmem:[%s3224 + $0x318] sm:$0xff]
    %v3325 = vld [vmem:[%s3224 + $0x320] sm:$0xff]
    %v3326 = vld [vmem:[%s3224 + $0x328] sm:$0xff]
    %v3327 = vld [vmem:[%s3224 + $0x330] sm:$0xff]
    %v3328 = vld [vmem:[%s3224 + $0x338] sm:$0xff]
    %v3329 = vld [vmem:[%s3224 + $0x340] sm:$0xff]
    %v3330 = vld [vmem:[%s3224 + $0x348] sm:$0xff]
    %v3331 = vld [vmem:[%s3224 + $0x350] sm:$0xff]
    %v3332 = vld [vmem:[%s3224 + $0x358] sm:$0xff]
    %v3333 = vld [vmem:[%s3224 + $0x360] sm:$0xff]
    %v3334 = vld [vmem:[%s3224 + $0x368] sm:$0xff]
    %v3335 = vld [vmem:[%s3224 + $0x370] sm:$0xff]
    %v3336 = vld [vmem:[%s3224 + $0x378] sm:$0xff]
    %v3337 = vld [vmem:[%s3224 + $0x380] sm:$0xff]
    %v3338 = vld [vmem:[%s3224 + $0x388] sm:$0xff]
    %v3339 = vld [vmem:[%s3224 + $0x390] sm:$0xff]
    %v3340 = vld [vmem:[%s3224 + $0x398] sm:$0xff]
    %v3341 = vld [vmem:[%s3224 + $0x3a0] sm:$0xff]
    %v3342 = vld [vmem:[%s3224 + $0x3a8] sm:$0xff]
    %v3343 = vld [vmem:[%s3224 + $0x3b0] sm:$0xff]
    %v3344 = vld [vmem:[%s3224 + $0x3b8] sm:$0xff]
    %v3345 = vld [vmem:[%s3224 + $0x3c0] sm:$0xff]
    %v3346 = vld [vmem:[%s3224 + $0x3c8] sm:$0xff]
    %v3347 = vld [vmem:[%s3224 + $0x3d0] sm:$0xff]
    %v3348 = vld [vmem:[%s3224 + $0x3d8] sm:$0xff]
    %v3349 = vld [vmem:[%s3224 + $0x3e0] sm:$0xff]
    %v3350 = vld [vmem:[%s3224 + $0x3e8] sm:$0xff]
    %v3351 = vld [vmem:[%s3224 + $0x3f0] sm:$0xff]
    %v3352 = vld [vmem:[%s3224 + $0x3f8] sm:$0xff]
    %s3353 = scalar_lea.vmem [#allocation7], 1
    %v3354 = vld [vmem:[%s3353] ss:$2 sm:$0x3]
    %v3356 = vlaneseq
    %v3357 = vshrl.u32 %v3356, 7
    %v3358 = vsub.s32 0, %v3357
    %v3359 = vrot.slane %v3354, %v3358
    %v3360 = vlaneseq
    %v3361 = vshrl.u32 %v3360, 7
    %v3362 = vsub.s32 1, %v3361
    %v3363 = vrot.slane %v3354, %v3362
    %v3494 = vunpack.c.l.b16 %v3225
    %v3495 = vunpack.c.h.b16 %v3225
    %v3496 = vunpack.c.l.b16 %v3226
    %v3497 = vunpack.c.h.b16 %v3226
    %v3498 = vunpack.c.l.b16 %v3227
    %v3499 = vunpack.c.h.b16 %v3227
    %v3500 = vunpack.c.l.b16 %v3228
    %v3501 = vunpack.c.h.b16 %v3228
    %v3502 = vunpack.c.l.b16 %v3229
    %v3503 = vunpack.c.h.b16 %v3229
    %v3504 = vunpack.c.l.b16 %v3230
    %v3505 = vunpack.c.h.b16 %v3230
    %v3506 = vunpack.c.l.b16 %v3231
    %v3507 = vunpack.c.h.b16 %v3231
    %v3508 = vunpack.c.l.b16 %v3232
    %v3509 = vunpack.c.h.b16 %v3232
    %v3510 = vunpack.c.l.b16 %v3233
    %v3511 = vunpack.c.h.b16 %v3233
    %v3512 = vunpack.c.l.b16 %v3234
    %v3513 = vunpack.c.h.b16 %v3234
    %v3514 = vunpack.c.l.b16 %v3235
    %v3515 = vunpack.c.h.b16 %v3235
    %v3516 = vunpack.c.l.b16 %v3236
    %v3517 = vunpack.c.h.b16 %v3236
    %v3518 = vunpack.c.l.b16 %v3237
    %v3519 = vunpack.c.h.b16 %v3237
    %v3520 = vunpack.c.l.b16 %v3238
    %v3521 = vunpack.c.h.b16 %v3238
    %v3522 = vunpack.c.l.b16 %v3239
    %v3523 = vunpack.c.h.b16 %v3239
    %v3524 = vunpack.c.l.b16 %v3240
    %v3525 = vunpack.c.h.b16 %v3240
    %v3526 = vunpack.c.l.b16 %v3241
    %v3527 = vunpack.c.h.b16 %v3241
    %v3528 = vunpack.c.l.b16 %v3242
    %v3529 = vunpack.c.h.b16 %v3242
    %v3530 = vunpack.c.l.b16 %v3243
    %v3531 = vunpack.c.h.b16 %v3243
    %v3532 = vunpack.c.l.b16 %v3244
    %v3533 = vunpack.c.h.b16 %v3244
    %v3534 = vunpack.c.l.b16 %v3245
    %v3535 = vunpack.c.h.b16 %v3245
    %v3536 = vunpack.c.l.b16 %v3246
    %v3537 = vunpack.c.h.b16 %v3246
    %v3538 = vunpack.c.l.b16 %v3247
    %v3539 = vunpack.c.h.b16 %v3247
    %v3540 = vunpack.c.l.b16 %v3248
    %v3541 = vunpack.c.h.b16 %v3248
    %v3542 = vunpack.c.l.b16 %v3249
    %v3543 = vunpack.c.h.b16 %v3249
    %v3544 = vunpack.c.l.b16 %v3250
    %v3545 = vunpack.c.h.b16 %v3250
    %v3546 = vunpack.c.l.b16 %v3251
    %v3547 = vunpack.c.h.b16 %v3251
    %v3548 = vunpack.c.l.b16 %v3252
    %v3549 = vunpack.c.h.b16 %v3252
    %v3550 = vunpack.c.l.b16 %v3253
    %v3551 = vunpack.c.h.b16 %v3253
    %v3552 = vunpack.c.l.b16 %v3254
    %v3553 = vunpack.c.h.b16 %v3254
    %v3554 = vunpack.c.l.b16 %v3255
    %v3555 = vunpack.c.h.b16 %v3255
    %v3556 = vunpack.c.l.b16 %v3256
    %v3557 = vunpack.c.h.b16 %v3256
    %v3558 = vunpack.c.l.b16 %v3257
    %v3559 = vunpack.c.h.b16 %v3257
    %v3560 = vunpack.c.l.b16 %v3258
    %v3561 = vunpack.c.h.b16 %v3258
    %v3562 = vunpack.c.l.b16 %v3259
    %v3563 = vunpack.c.h.b16 %v3259
    %v3564 = vunpack.c.l.b16 %v3260
    %v3565 = vunpack.c.h.b16 %v3260
    %v3566 = vunpack.c.l.b16 %v3261
    %v3567 = vunpack.c.h.b16 %v3261
    %v3568 = vunpack.c.l.b16 %v3262
    %v3569 = vunpack.c.h.b16 %v3262
    %v3570 = vunpack.c.l.b16 %v3263
    %v3571 = vunpack.c.h.b16 %v3263
    %v3572 = vunpack.c.l.b16 %v3264
    %v3573 = vunpack.c.h.b16 %v3264
    %v3574 = vunpack.c.l.b16 %v3265
    %v3575 = vunpack.c.h.b16 %v3265
    %v3576 = vunpack.c.l.b16 %v3266
    %v3577 = vunpack.c.h.b16 %v3266
    %v3578 = vunpack.c.l.b16 %v3267
    %v3579 = vunpack.c.h.b16 %v3267
    %v3580 = vunpack.c.l.b16 %v3268
    %v3581 = vunpack.c.h.b16 %v3268
    %v3582 = vunpack.c.l.b16 %v3269
    %v3583 = vunpack.c.h.b16 %v3269
    %v3584 = vunpack.c.l.b16 %v3270
    %v3585 = vunpack.c.h.b16 %v3270
    %v3586 = vunpack.c.l.b16 %v3271
    %v3587 = vunpack.c.h.b16 %v3271
    %v3588 = vunpack.c.l.b16 %v3272
    %v3589 = vunpack.c.h.b16 %v3272
    %v3590 = vunpack.c.l.b16 %v3273
    %v3591 = vunpack.c.h.b16 %v3273
    %v3592 = vunpack.c.l.b16 %v3274
    %v3593 = vunpack.c.h.b16 %v3274
    %v3594 = vunpack.c.l.b16 %v3275
    %v3595 = vunpack.c.h.b16 %v3275
    %v3596 = vunpack.c.l.b16 %v3276
    %v3597 = vunpack.c.h.b16 %v3276
    %v3598 = vunpack.c.l.b16 %v3277
    %v3599 = vunpack.c.h.b16 %v3277
    %v3600 = vunpack.c.l.b16 %v3278
    %v3601 = vunpack.c.h.b16 %v3278
    %v3602 = vunpack.c.l.b16 %v3279
    %v3603 = vunpack.c.h.b16 %v3279
    %v3604 = vunpack.c.l.b16 %v3280
    %v3605 = vunpack.c.h.b16 %v3280
    %v3606 = vunpack.c.l.b16 %v3281
    %v3607 = vunpack.c.h.b16 %v3281
    %v3608 = vunpack.c.l.b16 %v3282
    %v3609 = vunpack.c.h.b16 %v3282
    %v3610 = vunpack.c.l.b16 %v3283
    %v3611 = vunpack.c.h.b16 %v3283
    %v3612 = vunpack.c.l.b16 %v3284
    %v3613 = vunpack.c.h.b16 %v3284
    %v3614 = vunpack.c.l.b16 %v3285
    %v3615 = vunpack.c.h.b16 %v3285
    %v3616 = vunpack.c.l.b16 %v3286
    %v3617 = vunpack.c.h.b16 %v3286
    %v3618 = vunpack.c.l.b16 %v3287
    %v3619 = vunpack.c.h.b16 %v3287
    %v3620 = vunpack.c.l.b16 %v3288
    %v3621 = vunpack.c.h.b16 %v3288
    %v3622 = vunpack.c.l.b16 %v3289
    %v3623 = vunpack.c.h.b16 %v3289
    %v3624 = vunpack.c.l.b16 %v3290
    %v3625 = vunpack.c.h.b16 %v3290
    %v3626 = vunpack.c.l.b16 %v3291
    %v3627 = vunpack.c.h.b16 %v3291
    %v3628 = vunpack.c.l.b16 %v3292
    %v3629 = vunpack.c.h.b16 %v3292
    %v3630 = vunpack.c.l.b16 %v3293
    %v3631 = vunpack.c.h.b16 %v3293
    %v3632 = vunpack.c.l.b16 %v3294
    %v3633 = vunpack.c.h.b16 %v3294
    %v3634 = vunpack.c.l.b16 %v3295
    %v3635 = vunpack.c.h.b16 %v3295
    %v3636 = vunpack.c.l.b16 %v3296
    %v3637 = vunpack.c.h.b16 %v3296
    %v3638 = vunpack.c.l.b16 %v3297
    %v3639 = vunpack.c.h.b16 %v3297
    %v3640 = vunpack.c.l.b16 %v3298
    %v3641 = vunpack.c.h.b16 %v3298
    %v3642 = vunpack.c.l.b16 %v3299
    %v3643 = vunpack.c.h.b16 %v3299
    %v3644 = vunpack.c.l.b16 %v3300
    %v3645 = vunpack.c.h.b16 %v3300
    %v3646 = vunpack.c.l.b16 %v3301
    %v3647 = vunpack.c.h.b16 %v3301
    %v3648 = vunpack.c.l.b16 %v3302
    %v3649 = vunpack.c.h.b16 %v3302
    %v3650 = vunpack.c.l.b16 %v3303
    %v3651 = vunpack.c.h.b16 %v3303
    %v3652 = vunpack.c.l.b16 %v3304
    %v3653 = vunpack.c.h.b16 %v3304
    %v3654 = vunpack.c.l.b16 %v3305
    %v3655 = vunpack.c.h.b16 %v3305
    %v3656 = vunpack.c.l.b16 %v3306
    %v3657 = vunpack.c.h.b16 %v3306
    %v3658 = vunpack.c.l.b16 %v3307
    %v3659 = vunpack.c.h.b16 %v3307
    %v3660 = vunpack.c.l.b16 %v3308
    %v3661 = vunpack.c.h.b16 %v3308
    %v3662 = vunpack.c.l.b16 %v3309
    %v3663 = vunpack.c.h.b16 %v3309
    %v3664 = vunpack.c.l.b16 %v3310
    %v3665 = vunpack.c.h.b16 %v3310
    %v3666 = vunpack.c.l.b16 %v3311
    %v3667 = vunpack.c.h.b16 %v3311
    %v3668 = vunpack.c.l.b16 %v3312
    %v3669 = vunpack.c.h.b16 %v3312
    %v3670 = vunpack.c.l.b16 %v3313
    %v3671 = vunpack.c.h.b16 %v3313
    %v3672 = vunpack.c.l.b16 %v3314
    %v3673 = vunpack.c.h.b16 %v3314
    %v3674 = vunpack.c.l.b16 %v3315
    %v3675 = vunpack.c.h.b16 %v3315
    %v3676 = vunpack.c.l.b16 %v3316
    %v3677 = vunpack.c.h.b16 %v3316
    %v3678 = vunpack.c.l.b16 %v3317
    %v3679 = vunpack.c.h.b16 %v3317
    %v3680 = vunpack.c.l.b16 %v3318
    %v3681 = vunpack.c.h.b16 %v3318
    %v3682 = vunpack.c.l.b16 %v3319
    %v3683 = vunpack.c.h.b16 %v3319
    %v3684 = vunpack.c.l.b16 %v3320
    %v3685 = vunpack.c.h.b16 %v3320
    %v3686 = vunpack.c.l.b16 %v3321
    %v3687 = vunpack.c.h.b16 %v3321
    %v3688 = vunpack.c.l.b16 %v3322
    %v3689 = vunpack.c.h.b16 %v3322
    %v3690 = vunpack.c.l.b16 %v3323
    %v3691 = vunpack.c.h.b16 %v3323
    %v3692 = vunpack.c.l.b16 %v3324
    %v3693 = vunpack.c.h.b16 %v3324
    %v3694 = vunpack.c.l.b16 %v3325
    %v3695 = vunpack.c.h.b16 %v3325
    %v3696 = vunpack.c.l.b16 %v3326
    %v3697 = vunpack.c.h.b16 %v3326
    %v3698 = vunpack.c.l.b16 %v3327
    %v3699 = vunpack.c.h.b16 %v3327
    %v3700 = vunpack.c.l.b16 %v3328
    %v3701 = vunpack.c.h.b16 %v3328
    %v3702 = vunpack.c.l.b16 %v3329
    %v3703 = vunpack.c.h.b16 %v3329
    %v3704 = vunpack.c.l.b16 %v3330
    %v3705 = vunpack.c.h.b16 %v3330
    %v3706 = vunpack.c.l.b16 %v3331
    %v3707 = vunpack.c.h.b16 %v3331
    %v3708 = vunpack.c.l.b16 %v3332
    %v3709 = vunpack.c.h.b16 %v3332
    %v3710 = vunpack.c.l.b16 %v3333
    %v3711 = vunpack.c.h.b16 %v3333
    %v3712 = vunpack.c.l.b16 %v3334
    %v3713 = vunpack.c.h.b16 %v3334
    %v3714 = vunpack.c.l.b16 %v3335
    %v3715 = vunpack.c.h.b16 %v3335
    %v3716 = vunpack.c.l.b16 %v3336
    %v3717 = vunpack.c.h.b16 %v3336
    %v3718 = vunpack.c.l.b16 %v3337
    %v3719 = vunpack.c.h.b16 %v3337
    %v3720 = vunpack.c.l.b16 %v3338
    %v3721 = vunpack.c.h.b16 %v3338
    %v3722 = vunpack.c.l.b16 %v3339
    %v3723 = vunpack.c.h.b16 %v3339
    %v3724 = vunpack.c.l.b16 %v3340
    %v3725 = vunpack.c.h.b16 %v3340
    %v3726 = vunpack.c.l.b16 %v3341
    %v3727 = vunpack.c.h.b16 %v3341
    %v3728 = vunpack.c.l.b16 %v3342
    %v3729 = vunpack.c.h.b16 %v3342
    %v3730 = vunpack.c.l.b16 %v3343
    %v3731 = vunpack.c.h.b16 %v3343
    %v3732 = vunpack.c.l.b16 %v3344
    %v3733 = vunpack.c.h.b16 %v3344
    %v3734 = vunpack.c.l.b16 %v3345
    %v3735 = vunpack.c.h.b16 %v3345
    %v3736 = vunpack.c.l.b16 %v3346
    %v3737 = vunpack.c.h.b16 %v3346
    %v3738 = vunpack.c.l.b16 %v3347
    %v3739 = vunpack.c.h.b16 %v3347
    %v3740 = vunpack.c.l.b16 %v3348
    %v3741 = vunpack.c.h.b16 %v3348
    %v3742 = vunpack.c.l.b16 %v3349
    %v3743 = vunpack.c.h.b16 %v3349
    %v3744 = vunpack.c.l.b16 %v3350
    %v3745 = vunpack.c.h.b16 %v3350
    %v3746 = vunpack.c.l.b16 %v3351
    %v3747 = vunpack.c.h.b16 %v3351
    %v3748 = vunpack.c.l.b16 %v3352
    %v3749 = vunpack.c.h.b16 %v3352
    %v3750 = vpack.c.b16 %v3496, %v3494
    %v3751 = vpack.c.b16 %v3497, %v3495
    %v3752 = vpack.c.b16 %v3500, %v3498
    %v3753 = vpack.c.b16 %v3501, %v3499
    %v3754 = vpack.c.b16 %v3504, %v3502
    %v3755 = vpack.c.b16 %v3505, %v3503
    %v3756 = vpack.c.b16 %v3508, %v3506
    %v3757 = vpack.c.b16 %v3509, %v3507
    %v3758 = vpack.c.b16 %v3512, %v3510
    %v3759 = vpack.c.b16 %v3513, %v3511
    %v3760 = vpack.c.b16 %v3516, %v3514
    %v3761 = vpack.c.b16 %v3517, %v3515
    %v3762 = vpack.c.b16 %v3520, %v3518
    %v3763 = vpack.c.b16 %v3521, %v3519
    %v3764 = vpack.c.b16 %v3524, %v3522
    %v3765 = vpack.c.b16 %v3525, %v3523
    %v3766 = vpack.c.b16 %v3528, %v3526
    %v3767 = vpack.c.b16 %v3529, %v3527
    %v3768 = vpack.c.b16 %v3532, %v3530
    %v3769 = vpack.c.b16 %v3533, %v3531
    %v3770 = vpack.c.b16 %v3536, %v3534
    %v3771 = vpack.c.b16 %v3537, %v3535
    %v3772 = vpack.c.b16 %v3540, %v3538
    %v3773 = vpack.c.b16 %v3541, %v3539
    %v3774 = vpack.c.b16 %v3544, %v3542
    %v3775 = vpack.c.b16 %v3545, %v3543
    %v3776 = vpack.c.b16 %v3548, %v3546
    %v3777 = vpack.c.b16 %v3549, %v3547
    %v3778 = vpack.c.b16 %v3552, %v3550
    %v3779 = vpack.c.b16 %v3553, %v3551
    %v3780 = vpack.c.b16 %v3556, %v3554
    %v3781 = vpack.c.b16 %v3557, %v3555
    %v3782 = vpack.c.b16 %v3560, %v3558
    %v3783 = vpack.c.b16 %v3561, %v3559
    %v3784 = vpack.c.b16 %v3564, %v3562
    %v3785 = vpack.c.b16 %v3565, %v3563
    %v3786 = vpack.c.b16 %v3568, %v3566
    %v3787 = vpack.c.b16 %v3569, %v3567
    %v3788 = vpack.c.b16 %v3572, %v3570
    %v3789 = vpack.c.b16 %v3573, %v3571
    %v3790 = vpack.c.b16 %v3576, %v3574
    %v3791 = vpack.c.b16 %v3577, %v3575
    %v3792 = vpack.c.b16 %v3580, %v3578
    %v3793 = vpack.c.b16 %v3581, %v3579
    %v3794 = vpack.c.b16 %v3584, %v3582
    %v3795 = vpack.c.b16 %v3585, %v3583
    %v3796 = vpack.c.b16 %v3588, %v3586
    %v3797 = vpack.c.b16 %v3589, %v3587
    %v3798 = vpack.c.b16 %v3592, %v3590
    %v3799 = vpack.c.b16 %v3593, %v3591
    %v3800 = vpack.c.b16 %v3596, %v3594
    %v3801 = vpack.c.b16 %v3597, %v3595
    %v3802 = vpack.c.b16 %v3600, %v3598
    %v3803 = vpack.c.b16 %v3601, %v3599
    %v3804 = vpack.c.b16 %v3604, %v3602
    %v3805 = vpack.c.b16 %v3605, %v3603
    %v3806 = vpack.c.b16 %v3608, %v3606
    %v3807 = vpack.c.b16 %v3609, %v3607
    %v3808 = vpack.c.b16 %v3612, %v3610
    %v3809 = vpack.c.b16 %v3613, %v3611
    %v3810 = vpack.c.b16 %v3616, %v3614
    %v3811 = vpack.c.b16 %v3617, %v3615
    %v3812 = vpack.c.b16 %v3620, %v3618
    %v3813 = vpack.c.b16 %v3621, %v3619
    %v3814 = vpack.c.b16 %v3624, %v3622
    %v3815 = vpack.c.b16 %v3625, %v3623
    %v3816 = vpack.c.b16 %v3628, %v3626
    %v3817 = vpack.c.b16 %v3629, %v3627
    %v3818 = vpack.c.b16 %v3632, %v3630
    %v3819 = vpack.c.b16 %v3633, %v3631
    %v3820 = vpack.c.b16 %v3636, %v3634
    %v3821 = vpack.c.b16 %v3637, %v3635
    %v3822 = vpack.c.b16 %v3640, %v3638
    %v3823 = vpack.c.b16 %v3641, %v3639
    %v3824 = vpack.c.b16 %v3644, %v3642
    %v3825 = vpack.c.b16 %v3645, %v3643
    %v3826 = vpack.c.b16 %v3648, %v3646
    %v3827 = vpack.c.b16 %v3649, %v3647
    %v3828 = vpack.c.b16 %v3652, %v3650
    %v3829 = vpack.c.b16 %v3653, %v3651
    %v3830 = vpack.c.b16 %v3656, %v3654
    %v3831 = vpack.c.b16 %v3657, %v3655
    %v3832 = vpack.c.b16 %v3660, %v3658
    %v3833 = vpack.c.b16 %v3661, %v3659
    %v3834 = vpack.c.b16 %v3664, %v3662
    %v3835 = vpack.c.b16 %v3665, %v3663
    %v3836 = vpack.c.b16 %v3668, %v3666
    %v3837 = vpack.c.b16 %v3669, %v3667
    %v3838 = vpack.c.b16 %v3672, %v3670
    %v3839 = vpack.c.b16 %v3673, %v3671
    %v3840 = vpack.c.b16 %v3676, %v3674
    %v3841 = vpack.c.b16 %v3677, %v3675
    %v3842 = vpack.c.b16 %v3680, %v3678
    %v3843 = vpack.c.b16 %v3681, %v3679
    %v3844 = vpack.c.b16 %v3684, %v3682
    %v3845 = vpack.c.b16 %v3685, %v3683
    %v3846 = vpack.c.b16 %v3688, %v3686
    %v3847 = vpack.c.b16 %v3689, %v3687
    %v3848 = vpack.c.b16 %v3692, %v3690
    %v3849 = vpack.c.b16 %v3693, %v3691
    %v3850 = vpack.c.b16 %v3696, %v3694
    %v3851 = vpack.c.b16 %v3697, %v3695
    %v3852 = vpack.c.b16 %v3700, %v3698
    %v3853 = vpack.c.b16 %v3701, %v3699
    %v3854 = vpack.c.b16 %v3704, %v3702
    %v3855 = vpack.c.b16 %v3705, %v3703
    %v3856 = vpack.c.b16 %v3708, %v3706
    %v3857 = vpack.c.b16 %v3709, %v3707
    %v3858 = vpack.c.b16 %v3712, %v3710
    %v3859 = vpack.c.b16 %v3713, %v3711
    %v3860 = vpack.c.b16 %v3716, %v3714
    %v3861 = vpack.c.b16 %v3717, %v3715
    %v3862 = vpack.c.b16 %v3720, %v3718
    %v3863 = vpack.c.b16 %v3721, %v3719
    %v3864 = vpack.c.b16 %v3724, %v3722
    %v3865 = vpack.c.b16 %v3725, %v3723
    %v3866 = vpack.c.b16 %v3728, %v3726
    %v3867 = vpack.c.b16 %v3729, %v3727
    %v3868 = vpack.c.b16 %v3732, %v3730
    %v3869 = vpack.c.b16 %v3733, %v3731
    %v3870 = vpack.c.b16 %v3736, %v3734
    %v3871 = vpack.c.b16 %v3737, %v3735
    %v3872 = vpack.c.b16 %v3740, %v3738
    %v3873 = vpack.c.b16 %v3741, %v3739
    %v3874 = vpack.c.b16 %v3744, %v3742
    %v3875 = vpack.c.b16 %v3745, %v3743
    %v3876 = vpack.c.b16 %v3748, %v3746
    %v3877 = vpack.c.b16 %v3749, %v3747
    %4006 = vmatprep.subr.bf16.mxu0 %v3765
    %4007 = vmatpush1.bf16.msra.mxu0 %v3764
    %4008 = vmatprep.subr.bf16.mxu0 %v3763
    %4009 = vmatpush1.bf16.msra.mxu0 %v3762
    %4010 = vmatprep.subr.bf16.mxu0 %v3761
    %4011 = vmatpush1.bf16.msra.mxu0 %v3760
    %4012 = vmatprep.subr.bf16.mxu0 %v3759
    %4013 = vmatpush1.bf16.msra.mxu0 %v3758
    %4014 = vmatprep.subr.bf16.mxu0 %v3757
    %4015 = vmatpush1.bf16.msra.mxu0 %v3756
    %4016 = vmatprep.subr.bf16.mxu0 %v3755
    %4017 = vmatpush1.bf16.msra.mxu0 %v3754
    %4018 = vmatprep.subr.bf16.mxu0 %v3753
    %4019 = vmatpush1.bf16.msra.mxu0 %v3752
    %4020 = vmatprep.subr.bf16.mxu0 %v3751
    %4021 = vmatpush1.bf16.msra.mxu0 %v3750
    %4022 = vmatprep.subr.bf16.mxu0 %v3781
    %4023 = vmatpush2.bf16.msra.mxu0 %v3780
    %4024 = vmatprep.subr.bf16.mxu0 %v3779
    %4025 = vmatpush2.bf16.msra.mxu0 %v3778
    %4026 = vmatprep.subr.bf16.mxu0 %v3777
    %4027 = vmatpush2.bf16.msra.mxu0 %v3776
    %4028 = vmatprep.subr.bf16.mxu0 %v3775
    %4029 = vmatpush2.bf16.msra.mxu0 %v3774
    %4030 = vmatprep.subr.bf16.mxu0 %v3773
    %4031 = vmatpush2.bf16.msra.mxu0 %v3772
    %4032 = vmatprep.subr.bf16.mxu0 %v3771
    %4033 = vmatpush2.bf16.msra.mxu0 %v3770
    %4034 = vmatprep.subr.bf16.mxu0 %v3769
    %4035 = vmatpush2.bf16.msra.mxu0 %v3768
    %4036 = vmatprep.subr.bf16.mxu0 %v3767
    %4037 = vmatpush2.bf16.msra.mxu0 %v3766
    %4038 = vmatprep.mubr.bf16.mxu0 %v3217
    %4039 = vmatmul.mubr.bf16.gmra.mxu0 %v3216
    %v4040 = vpop.f32.mrf.mxu0
    %v4041 = vadd.f32 %v3359, %v4040
    %v4042 = vpop.f32.mrf.mxu0
    %v4043 = vadd.f32 %v3363, %v4042
    %v4044 = vpop.f32.mrf.mxu0
    %v4045 = vpop.f32.mrf.mxu0
    %4046 = vdwg.mxu0
    %4047 = vmatprep.subr.bf16.mxu0 %v3797
    %4048 = vmatpush1.bf16.msra.mxu0 %v3796
    %4049 = vmatprep.subr.bf16.mxu0 %v3795
    %4050 = vmatpush1.bf16.msra.mxu0 %v3794
    %4051 = vmatprep.subr.bf16.mxu0 %v3793
    %4052 = vmatpush1.bf16.msra.mxu0 %v3792
    %4053 = vmatprep.subr.bf16.mxu0 %v3791
    %4054 = vmatpush1.bf16.msra.mxu0 %v3790
    %4055 = vmatprep.subr.bf16.mxu0 %v3789
    %4056 = vmatpush1.bf16.msra.mxu0 %v3788
    %4057 = vmatprep.subr.bf16.mxu0 %v3787
    %4058 = vmatpush1.bf16.msra.mxu0 %v3786
    %4059 = vmatprep.subr.bf16.mxu0 %v3785
    %4060 = vmatpush1.bf16.msra.mxu0 %v3784
    %4061 = vmatprep.subr.bf16.mxu0 %v3783
    %4062 = vmatpush1.bf16.msra.mxu0 %v3782
    %4063 = vmatprep.subr.bf16.mxu0 %v3813
    %4064 = vmatpush2.bf16.msra.mxu0 %v3812
    %4065 = vmatprep.subr.bf16.mxu0 %v3811
    %4066 = vmatpush2.bf16.msra.mxu0 %v3810
    %4067 = vmatprep.subr.bf16.mxu0 %v3809
    %4068 = vmatpush2.bf16.msra.mxu0 %v3808
    %4069 = vmatprep.subr.bf16.mxu0 %v3807
    %4070 = vmatpush2.bf16.msra.mxu0 %v3806
    %4071 = vmatprep.subr.bf16.mxu0 %v3805
    %4072 = vmatpush2.bf16.msra.mxu0 %v3804
    %4073 = vmatprep.subr.bf16.mxu0 %v3803
    %4074 = vmatpush2.bf16.msra.mxu0 %v3802
    %4075 = vmatprep.subr.bf16.mxu0 %v3801
    %4076 = vmatpush2.bf16.msra.mxu0 %v3800
    %4077 = vmatprep.subr.bf16.mxu0 %v3799
    %4078 = vmatpush2.bf16.msra.mxu0 %v3798
    %4079 = vmatprep.mubr.bf16.mxu0 %v3219
    %4080 = vmatmul.mubr.bf16.gmra.mxu0 %v3218
    %v4081 = vpop.f32.mrf.mxu0
    %v4082 = vadd.f32 %v4041, %v4081
    %v4083 = vpop.f32.mrf.mxu0
    %v4084 = vadd.f32 %v4043, %v4083
    %v4085 = vpop.f32.mrf.mxu0
    %v4086 = vpop.f32.mrf.mxu0
    %4087 = vdwg.mxu0
    %4088 = vmatprep.subr.bf16.mxu0 %v3829
    %4089 = vmatpush1.bf16.msra.mxu0 %v3828
    %4090 = vmatprep.subr.bf16.mxu0 %v3827
    %4091 = vmatpush1.bf16.msra.mxu0 %v3826
    %4092 = vmatprep.subr.bf16.mxu0 %v3825
    %4093 = vmatpush1.bf16.msra.mxu0 %v3824
    %4094 = vmatprep.subr.bf16.mxu0 %v3823
    %4095 = vmatpush1.bf16.msra.mxu0 %v3822
    %4096 = vmatprep.subr.bf16.mxu0 %v3821
    %4097 = vmatpush1.bf16.msra.mxu0 %v3820
    %4098 = vmatprep.subr.bf16.mxu0 %v3819
    %4099 = vmatpush1.bf16.msra.mxu0 %v3818
    %4100 = vmatprep.subr.bf16.mxu0 %v3817
    %4101 = vmatpush1.bf16.msra.mxu0 %v3816
    %4102 = vmatprep.subr.bf16.mxu0 %v3815
    %4103 = vmatpush1.bf16.msra.mxu0 %v3814
    %4104 = vmatprep.subr.bf16.mxu0 %v3845
    %4105 = vmatpush2.bf16.msra.mxu0 %v3844
    %4106 = vmatprep.subr.bf16.mxu0 %v3843
    %4107 = vmatpush2.bf16.msra.mxu0 %v3842
    %4108 = vmatprep.subr.bf16.mxu0 %v3841
    %4109 = vmatpush2.bf16.msra.mxu0 %v3840
    %4110 = vmatprep.subr.bf16.mxu0 %v3839
    %4111 = vmatpush2.bf16.msra.mxu0 %v3838
    %4112 = vmatprep.subr.bf16.mxu0 %v3837
    %4113 = vmatpush2.bf16.msra.mxu0 %v3836
    %4114 = vmatprep.subr.bf16.mxu0 %v3835
    %4115 = vmatpush2.bf16.msra.mxu0 %v3834
    %4116 = vmatprep.subr.bf16.mxu0 %v3833
    %4117 = vmatpush2.bf16.msra.mxu0 %v3832
    %4118 = vmatprep.subr.bf16.mxu0 %v3831
    %4119 = vmatpush2.bf16.msra.mxu0 %v3830
    %4120 = vmatprep.mubr.bf16.mxu0 %v3221
    %4121 = vmatmul.mubr.bf16.gmra.mxu0 %v3220
    %v4122 = vpop.f32.mrf.mxu0
    %v4123 = vadd.f32 %v4082, %v4122
    %v4124 = vpop.f32.mrf.mxu0
    %v4125 = vadd.f32 %v4084, %v4124
    %v4126 = vpop.f32.mrf.mxu0
    %v4127 = vpop.f32.mrf.mxu0
    %4128 = vdwg.mxu0
    %4129 = vmatprep.subr.bf16.mxu0 %v3861
    %4130 = vmatpush1.bf16.msra.mxu0 %v3860
    %4131 = vmatprep.subr.bf16.mxu0 %v3859
    %4132 = vmatpush1.bf16.msra.mxu0 %v3858
    %4133 = vmatprep.subr.bf16.mxu0 %v3857
    %4134 = vmatpush1.bf16.msra.mxu0 %v3856
    %4135 = vmatprep.subr.bf16.mxu0 %v3855
    %4136 = vmatpush1.bf16.msra.mxu0 %v3854
    %4137 = vmatprep.subr.bf16.mxu0 %v3853
    %4138 = vmatpush1.bf16.msra.mxu0 %v3852
    %4139 = vmatprep.subr.bf16.mxu0 %v3851
    %4140 = vmatpush1.bf16.msra.mxu0 %v3850
    %4141 = vmatprep.subr.bf16.mxu0 %v3849
    %4142 = vmatpush1.bf16.msra.mxu0 %v3848
    %4143 = vmatprep.subr.bf16.mxu0 %v3847
    %4144 = vmatpush1.bf16.msra.mxu0 %v3846
    %4145 = vmatprep.subr.bf16.mxu0 %v3877
    %4146 = vmatpush2.bf16.msra.mxu0 %v3876
    %4147 = vmatprep.subr.bf16.mxu0 %v3875
    %4148 = vmatpush2.bf16.msra.mxu0 %v3874
    %4149 = vmatprep.subr.bf16.mxu0 %v3873
    %4150 = vmatpush2.bf16.msra.mxu0 %v3872
    %4151 = vmatprep.subr.bf16.mxu0 %v3871
    %4152 = vmatpush2.bf16.msra.mxu0 %v3870
    %4153 = vmatprep.subr.bf16.mxu0 %v3869
    %4154 = vmatpush2.bf16.msra.mxu0 %v3868
    %4155 = vmatprep.subr.bf16.mxu0 %v3867
    %4156 = vmatpush2.bf16.msra.mxu0 %v3866
    %4157 = vmatprep.subr.bf16.mxu0 %v3865
    %4158 = vmatpush2.bf16.msra.mxu0 %v3864
    %4159 = vmatprep.subr.bf16.mxu0 %v3863
    %4160 = vmatpush2.bf16.msra.mxu0 %v3862
    %4161 = vmatprep.mubr.bf16.mxu0 %v3223
    %4162 = vmatmul.mubr.bf16.gmra.mxu0 %v3222
    %v4163 = vpop.f32.mrf.mxu0
    %v4164 = vadd.f32 %v4123, %v4163
    %v4165 = vpop.f32.mrf.mxu0
    %v4166 = vadd.f32 %v4125, %v4165
    %v4167 = vpop.f32.mrf.mxu0
    %v4168 = vpop.f32.mrf.mxu0
    %4169 = vdwg.mxu0
    %v4170 = vpack.c.bf16 %v4164, %v4164
    %v4171 = vpack.c.bf16 %v4166, %v4166
    %v4172 = vtanh.bf16.pop %v4170
    %v4173 = vtanh.bf16.pop %v4171
    %s4174 = scalar_lea.vmem [#allocation8], 2048
    %v4175 = vld [vmem:[%s4174] sm:$0xff]
    %v4176 = vld [vmem:[%s4174 + $0x8] sm:$0xff]
    %v4177 = vld [vmem:[%s4174 + $0x10] sm:$0xff]
    %v4178 = vld [vmem:[%s4174 + $0x18] sm:$0xff]
    %v4179 = vld [vmem:[%s4174 + $0x20] sm:$0xff]
    %v4180 = vld [vmem:[%s4174 + $0x28] sm:$0xff]
    %v4181 = vld [vmem:[%s4174 + $0x30] sm:$0xff]
    %v4182 = vld [vmem:[%s4174 + $0x38] sm:$0xff]
    %v4183 = vld [vmem:[%s4174 + $0x40] sm:$0xff]
    %v4184 = vld [vmem:[%s4174 + $0x48] sm:$0xff]
    %v4185 = vld [vmem:[%s4174 + $0x50] sm:$0xff]
    %v4186 = vld [vmem:[%s4174 + $0x58] sm:$0xff]
    %v4187 = vld [vmem:[%s4174 + $0x60] sm:$0xff]
    %v4188 = vld [vmem:[%s4174 + $0x68] sm:$0xff]
    %v4189 = vld [vmem:[%s4174 + $0x70] sm:$0xff]
    %v4190 = vld [vmem:[%s4174 + $0x78] sm:$0xff]
    %v4191 = vld [vmem:[%s4174 + $0x80] sm:$0xff]
    %v4192 = vld [vmem:[%s4174 + $0x88] sm:$0xff]
    %v4193 = vld [vmem:[%s4174 + $0x90] sm:$0xff]
    %v4194 = vld [vmem:[%s4174 + $0x98] sm:$0xff]
    %v4195 = vld [vmem:[%s4174 + $0xa0] sm:$0xff]
    %v4196 = vld [vmem:[%s4174 + $0xa8] sm:$0xff]
    %v4197 = vld [vmem:[%s4174 + $0xb0] sm:$0xff]
    %v4198 = vld [vmem:[%s4174 + $0xb8] sm:$0xff]
    %v4199 = vld [vmem:[%s4174 + $0xc0] sm:$0xff]
    %v4200 = vld [vmem:[%s4174 + $0xc8] sm:$0xff]
    %v4201 = vld [vmem:[%s4174 + $0xd0] sm:$0xff]
    %v4202 = vld [vmem:[%s4174 + $0xd8] sm:$0xff]
    %v4203 = vld [vmem:[%s4174 + $0xe0] sm:$0xff]
    %v4204 = vld [vmem:[%s4174 + $0xe8] sm:$0xff]
    %v4205 = vld [vmem:[%s4174 + $0xf0] sm:$0xff]
    %v4206 = vld [vmem:[%s4174 + $0xf8] sm:$0xff]
    %v4207 = vld [vmem:[%s4174 + $0x100] sm:$0xff]
    %v4208 = vld [vmem:[%s4174 + $0x108] sm:$0xff]
    %v4209 = vld [vmem:[%s4174 + $0x110] sm:$0xff]
    %v4210 = vld [vmem:[%s4174 + $0x118] sm:$0xff]
    %v4211 = vld [vmem:[%s4174 + $0x120] sm:$0xff]
    %v4212 = vld [vmem:[%s4174 + $0x128] sm:$0xff]
    %v4213 = vld [vmem:[%s4174 + $0x130] sm:$0xff]
    %v4214 = vld [vmem:[%s4174 + $0x138] sm:$0xff]
    %v4215 = vld [vmem:[%s4174 + $0x140] sm:$0xff]
    %v4216 = vld [vmem:[%s4174 + $0x148] sm:$0xff]
    %v4217 = vld [vmem:[%s4174 + $0x150] sm:$0xff]
    %v4218 = vld [vmem:[%s4174 + $0x158] sm:$0xff]
    %v4219 = vld [vmem:[%s4174 + $0x160] sm:$0xff]
    %v4220 = vld [vmem:[%s4174 + $0x168] sm:$0xff]
    %v4221 = vld [vmem:[%s4174 + $0x170] sm:$0xff]
    %v4222 = vld [vmem:[%s4174 + $0x178] sm:$0xff]
    %v4223 = vld [vmem:[%s4174 + $0x180] sm:$0xff]
    %v4224 = vld [vmem:[%s4174 + $0x188] sm:$0xff]
    %v4225 = vld [vmem:[%s4174 + $0x190] sm:$0xff]
    %v4226 = vld [vmem:[%s4174 + $0x198] sm:$0xff]
    %v4227 = vld [vmem:[%s4174 + $0x1a0] sm:$0xff]
    %v4228 = vld [vmem:[%s4174 + $0x1a8] sm:$0xff]
    %v4229 = vld [vmem:[%s4174 + $0x1b0] sm:$0xff]
    %v4230 = vld [vmem:[%s4174 + $0x1b8] sm:$0xff]
    %v4231 = vld [vmem:[%s4174 + $0x1c0] sm:$0xff]
    %v4232 = vld [vmem:[%s4174 + $0x1c8] sm:$0xff]
    %v4233 = vld [vmem:[%s4174 + $0x1d0] sm:$0xff]
    %v4234 = vld [vmem:[%s4174 + $0x1d8] sm:$0xff]
    %v4235 = vld [vmem:[%s4174 + $0x1e0] sm:$0xff]
    %v4236 = vld [vmem:[%s4174 + $0x1e8] sm:$0xff]
    %v4237 = vld [vmem:[%s4174 + $0x1f0] sm:$0xff]
    %v4238 = vld [vmem:[%s4174 + $0x1f8] sm:$0xff]
    %v4239 = vld [vmem:[%s4174 + $0x200] sm:$0xff]
    %v4240 = vld [vmem:[%s4174 + $0x208] sm:$0xff]
    %v4241 = vld [vmem:[%s4174 + $0x210] sm:$0xff]
    %v4242 = vld [vmem:[%s4174 + $0x218] sm:$0xff]
    %v4243 = vld [vmem:[%s4174 + $0x220] sm:$0xff]
    %v4244 = vld [vmem:[%s4174 + $0x228] sm:$0xff]
    %v4245 = vld [vmem:[%s4174 + $0x230] sm:$0xff]
    %v4246 = vld [vmem:[%s4174 + $0x238] sm:$0xff]
    %v4247 = vld [vmem:[%s4174 + $0x240] sm:$0xff]
    %v4248 = vld [vmem:[%s4174 + $0x248] sm:$0xff]
    %v4249 = vld [vmem:[%s4174 + $0x250] sm:$0xff]
    %v4250 = vld [vmem:[%s4174 + $0x258] sm:$0xff]
    %v4251 = vld [vmem:[%s4174 + $0x260] sm:$0xff]
    %v4252 = vld [vmem:[%s4174 + $0x268] sm:$0xff]
    %v4253 = vld [vmem:[%s4174 + $0x270] sm:$0xff]
    %v4254 = vld [vmem:[%s4174 + $0x278] sm:$0xff]
    %v4255 = vld [vmem:[%s4174 + $0x280] sm:$0xff]
    %v4256 = vld [vmem:[%s4174 + $0x288] sm:$0xff]
    %v4257 = vld [vmem:[%s4174 + $0x290] sm:$0xff]
    %v4258 = vld [vmem:[%s4174 + $0x298] sm:$0xff]
    %v4259 = vld [vmem:[%s4174 + $0x2a0] sm:$0xff]
    %v4260 = vld [vmem:[%s4174 + $0x2a8] sm:$0xff]
    %v4261 = vld [vmem:[%s4174 + $0x2b0] sm:$0xff]
    %v4262 = vld [vmem:[%s4174 + $0x2b8] sm:$0xff]
    %v4263 = vld [vmem:[%s4174 + $0x2c0] sm:$0xff]
    %v4264 = vld [vmem:[%s4174 + $0x2c8] sm:$0xff]
    %v4265 = vld [vmem:[%s4174 + $0x2d0] sm:$0xff]
    %v4266 = vld [vmem:[%s4174 + $0x2d8] sm:$0xff]
    %v4267 = vld [vmem:[%s4174 + $0x2e0] sm:$0xff]
    %v4268 = vld [vmem:[%s4174 + $0x2e8] sm:$0xff]
    %v4269 = vld [vmem:[%s4174 + $0x2f0] sm:$0xff]
    %v4270 = vld [vmem:[%s4174 + $0x2f8] sm:$0xff]
    %v4271 = vld [vmem:[%s4174 + $0x300] sm:$0xff]
    %v4272 = vld [vmem:[%s4174 + $0x308] sm:$0xff]
    %v4273 = vld [vmem:[%s4174 + $0x310] sm:$0xff]
    %v4274 = vld [vmem:[%s4174 + $0x318] sm:$0xff]
    %v4275 = vld [vmem:[%s4174 + $0x320] sm:$0xff]
    %v4276 = vld [vmem:[%s4174 + $0x328] sm:$0xff]
    %v4277 = vld [vmem:[%s4174 + $0x330] sm:$0xff]
    %v4278 = vld [vmem:[%s4174 + $0x338] sm:$0xff]
    %v4279 = vld [vmem:[%s4174 + $0x340] sm:$0xff]
    %v4280 = vld [vmem:[%s4174 + $0x348] sm:$0xff]
    %v4281 = vld [vmem:[%s4174 + $0x350] sm:$0xff]
    %v4282 = vld [vmem:[%s4174 + $0x358] sm:$0xff]
    %v4283 = vld [vmem:[%s4174 + $0x360] sm:$0xff]
    %v4284 = vld [vmem:[%s4174 + $0x368] sm:$0xff]
    %v4285 = vld [vmem:[%s4174 + $0x370] sm:$0xff]
    %v4286 = vld [vmem:[%s4174 + $0x378] sm:$0xff]
    %v4287 = vld [vmem:[%s4174 + $0x380] sm:$0xff]
    %v4288 = vld [vmem:[%s4174 + $0x388] sm:$0xff]
    %v4289 = vld [vmem:[%s4174 + $0x390] sm:$0xff]
    %v4290 = vld [vmem:[%s4174 + $0x398] sm:$0xff]
    %v4291 = vld [vmem:[%s4174 + $0x3a0] sm:$0xff]
    %v4292 = vld [vmem:[%s4174 + $0x3a8] sm:$0xff]
    %v4293 = vld [vmem:[%s4174 + $0x3b0] sm:$0xff]
    %v4294 = vld [vmem:[%s4174 + $0x3b8] sm:$0xff]
    %v4295 = vld [vmem:[%s4174 + $0x3c0] sm:$0xff]
    %v4296 = vld [vmem:[%s4174 + $0x3c8] sm:$0xff]
    %v4297 = vld [vmem:[%s4174 + $0x3d0] sm:$0xff]
    %v4298 = vld [vmem:[%s4174 + $0x3d8] sm:$0xff]
    %v4299 = vld [vmem:[%s4174 + $0x3e0] sm:$0xff]
    %v4300 = vld [vmem:[%s4174 + $0x3e8] sm:$0xff]
    %v4301 = vld [vmem:[%s4174 + $0x3f0] sm:$0xff]
    %v4302 = vld [vmem:[%s4174 + $0x3f8] sm:$0xff]
    %v4303 = vld [vmem:[%s4174 + $0x400] sm:$0xff]
    %v4304 = vld [vmem:[%s4174 + $0x408] sm:$0xff]
    %v4305 = vld [vmem:[%s4174 + $0x410] sm:$0xff]
    %v4306 = vld [vmem:[%s4174 + $0x418] sm:$0xff]
    %v4307 = vld [vmem:[%s4174 + $0x420] sm:$0xff]
    %v4308 = vld [vmem:[%s4174 + $0x428] sm:$0xff]
    %v4309 = vld [vmem:[%s4174 + $0x430] sm:$0xff]
    %v4310 = vld [vmem:[%s4174 + $0x438] sm:$0xff]
    %v4311 = vld [vmem:[%s4174 + $0x440] sm:$0xff]
    %v4312 = vld [vmem:[%s4174 + $0x448] sm:$0xff]
    %v4313 = vld [vmem:[%s4174 + $0x450] sm:$0xff]
    %v4314 = vld [vmem:[%s4174 + $0x458] sm:$0xff]
    %v4315 = vld [vmem:[%s4174 + $0x460] sm:$0xff]
    %v4316 = vld [vmem:[%s4174 + $0x468] sm:$0xff]
    %v4317 = vld [vmem:[%s4174 + $0x470] sm:$0xff]
    %v4318 = vld [vmem:[%s4174 + $0x478] sm:$0xff]
    %v4319 = vld [vmem:[%s4174 + $0x480] sm:$0xff]
    %v4320 = vld [vmem:[%s4174 + $0x488] sm:$0xff]
    %v4321 = vld [vmem:[%s4174 + $0x490] sm:$0xff]
    %v4322 = vld [vmem:[%s4174 + $0x498] sm:$0xff]
    %v4323 = vld [vmem:[%s4174 + $0x4a0] sm:$0xff]
    %v4324 = vld [vmem:[%s4174 + $0x4a8] sm:$0xff]
    %v4325 = vld [vmem:[%s4174 + $0x4b0] sm:$0xff]
    %v4326 = vld [vmem:[%s4174 + $0x4b8] sm:$0xff]
    %v4327 = vld [vmem:[%s4174 + $0x4c0] sm:$0xff]
    %v4328 = vld [vmem:[%s4174 + $0x4c8] sm:$0xff]
    %v4329 = vld [vmem:[%s4174 + $0x4d0] sm:$0xff]
    %v4330 = vld [vmem:[%s4174 + $0x4d8] sm:$0xff]
    %v4331 = vld [vmem:[%s4174 + $0x4e0] sm:$0xff]
    %v4332 = vld [vmem:[%s4174 + $0x4e8] sm:$0xff]
    %v4333 = vld [vmem:[%s4174 + $0x4f0] sm:$0xff]
    %v4334 = vld [vmem:[%s4174 + $0x4f8] sm:$0xff]
    %v4335 = vld [vmem:[%s4174 + $0x500] sm:$0xff]
    %v4336 = vld [vmem:[%s4174 + $0x508] sm:$0xff]
    %v4337 = vld [vmem:[%s4174 + $0x510] sm:$0xff]
    %v4338 = vld [vmem:[%s4174 + $0x518] sm:$0xff]
    %v4339 = vld [vmem:[%s4174 + $0x520] sm:$0xff]
    %v4340 = vld [vmem:[%s4174 + $0x528] sm:$0xff]
    %v4341 = vld [vmem:[%s4174 + $0x530] sm:$0xff]
    %v4342 = vld [vmem:[%s4174 + $0x538] sm:$0xff]
    %v4343 = vld [vmem:[%s4174 + $0x540] sm:$0xff]
    %v4344 = vld [vmem:[%s4174 + $0x548] sm:$0xff]
    %v4345 = vld [vmem:[%s4174 + $0x550] sm:$0xff]
    %v4346 = vld [vmem:[%s4174 + $0x558] sm:$0xff]
    %v4347 = vld [vmem:[%s4174 + $0x560] sm:$0xff]
    %v4348 = vld [vmem:[%s4174 + $0x568] sm:$0xff]
    %v4349 = vld [vmem:[%s4174 + $0x570] sm:$0xff]
    %v4350 = vld [vmem:[%s4174 + $0x578] sm:$0xff]
    %v4351 = vld [vmem:[%s4174 + $0x580] sm:$0xff]
    %v4352 = vld [vmem:[%s4174 + $0x588] sm:$0xff]
    %v4353 = vld [vmem:[%s4174 + $0x590] sm:$0xff]
    %v4354 = vld [vmem:[%s4174 + $0x598] sm:$0xff]
    %v4355 = vld [vmem:[%s4174 + $0x5a0] sm:$0xff]
    %v4356 = vld [vmem:[%s4174 + $0x5a8] sm:$0xff]
    %v4357 = vld [vmem:[%s4174 + $0x5b0] sm:$0xff]
    %v4358 = vld [vmem:[%s4174 + $0x5b8] sm:$0xff]
    %v4359 = vld [vmem:[%s4174 + $0x5c0] sm:$0xff]
    %v4360 = vld [vmem:[%s4174 + $0x5c8] sm:$0xff]
    %v4361 = vld [vmem:[%s4174 + $0x5d0] sm:$0xff]
    %v4362 = vld [vmem:[%s4174 + $0x5d8] sm:$0xff]
    %v4363 = vld [vmem:[%s4174 + $0x5e0] sm:$0xff]
    %v4364 = vld [vmem:[%s4174 + $0x5e8] sm:$0xff]
    %v4365 = vld [vmem:[%s4174 + $0x5f0] sm:$0xff]
    %v4366 = vld [vmem:[%s4174 + $0x5f8] sm:$0xff]
    %v4367 = vld [vmem:[%s4174 + $0x600] sm:$0xff]
    %v4368 = vld [vmem:[%s4174 + $0x608] sm:$0xff]
    %v4369 = vld [vmem:[%s4174 + $0x610] sm:$0xff]
    %v4370 = vld [vmem:[%s4174 + $0x618] sm:$0xff]
    %v4371 = vld [vmem:[%s4174 + $0x620] sm:$0xff]
    %v4372 = vld [vmem:[%s4174 + $0x628] sm:$0xff]
    %v4373 = vld [vmem:[%s4174 + $0x630] sm:$0xff]
    %v4374 = vld [vmem:[%s4174 + $0x638] sm:$0xff]
    %v4375 = vld [vmem:[%s4174 + $0x640] sm:$0xff]
    %v4376 = vld [vmem:[%s4174 + $0x648] sm:$0xff]
    %v4377 = vld [vmem:[%s4174 + $0x650] sm:$0xff]
    %v4378 = vld [vmem:[%s4174 + $0x658] sm:$0xff]
    %v4379 = vld [vmem:[%s4174 + $0x660] sm:$0xff]
    %v4380 = vld [vmem:[%s4174 + $0x668] sm:$0xff]
    %v4381 = vld [vmem:[%s4174 + $0x670] sm:$0xff]
    %v4382 = vld [vmem:[%s4174 + $0x678] sm:$0xff]
    %v4383 = vld [vmem:[%s4174 + $0x680] sm:$0xff]
    %v4384 = vld [vmem:[%s4174 + $0x688] sm:$0xff]
    %v4385 = vld [vmem:[%s4174 + $0x690] sm:$0xff]
    %v4386 = vld [vmem:[%s4174 + $0x698] sm:$0xff]
    %v4387 = vld [vmem:[%s4174 + $0x6a0] sm:$0xff]
    %v4388 = vld [vmem:[%s4174 + $0x6a8] sm:$0xff]
    %v4389 = vld [vmem:[%s4174 + $0x6b0] sm:$0xff]
    %v4390 = vld [vmem:[%s4174 + $0x6b8] sm:$0xff]
    %v4391 = vld [vmem:[%s4174 + $0x6c0] sm:$0xff]
    %v4392 = vld [vmem:[%s4174 + $0x6c8] sm:$0xff]
    %v4393 = vld [vmem:[%s4174 + $0x6d0] sm:$0xff]
    %v4394 = vld [vmem:[%s4174 + $0x6d8] sm:$0xff]
    %v4395 = vld [vmem:[%s4174 + $0x6e0] sm:$0xff]
    %v4396 = vld [vmem:[%s4174 + $0x6e8] sm:$0xff]
    %v4397 = vld [vmem:[%s4174 + $0x6f0] sm:$0xff]
    %v4398 = vld [vmem:[%s4174 + $0x6f8] sm:$0xff]
    %v4399 = vld [vmem:[%s4174 + $0x700] sm:$0xff]
    %v4400 = vld [vmem:[%s4174 + $0x708] sm:$0xff]
    %v4401 = vld [vmem:[%s4174 + $0x710] sm:$0xff]
    %v4402 = vld [vmem:[%s4174 + $0x718] sm:$0xff]
    %v4403 = vld [vmem:[%s4174 + $0x720] sm:$0xff]
    %v4404 = vld [vmem:[%s4174 + $0x728] sm:$0xff]
    %v4405 = vld [vmem:[%s4174 + $0x730] sm:$0xff]
    %v4406 = vld [vmem:[%s4174 + $0x738] sm:$0xff]
    %v4407 = vld [vmem:[%s4174 + $0x740] sm:$0xff]
    %v4408 = vld [vmem:[%s4174 + $0x748] sm:$0xff]
    %v4409 = vld [vmem:[%s4174 + $0x750] sm:$0xff]
    %v4410 = vld [vmem:[%s4174 + $0x758] sm:$0xff]
    %v4411 = vld [vmem:[%s4174 + $0x760] sm:$0xff]
    %v4412 = vld [vmem:[%s4174 + $0x768] sm:$0xff]
    %v4413 = vld [vmem:[%s4174 + $0x770] sm:$0xff]
    %v4414 = vld [vmem:[%s4174 + $0x778] sm:$0xff]
    %v4415 = vld [vmem:[%s4174 + $0x780] sm:$0xff]
    %v4416 = vld [vmem:[%s4174 + $0x788] sm:$0xff]
    %v4417 = vld [vmem:[%s4174 + $0x790] sm:$0xff]
    %v4418 = vld [vmem:[%s4174 + $0x798] sm:$0xff]
    %v4419 = vld [vmem:[%s4174 + $0x7a0] sm:$0xff]
    %v4420 = vld [vmem:[%s4174 + $0x7a8] sm:$0xff]
    %v4421 = vld [vmem:[%s4174 + $0x7b0] sm:$0xff]
    %v4422 = vld [vmem:[%s4174 + $0x7b8] sm:$0xff]
    %v4423 = vld [vmem:[%s4174 + $0x7c0] sm:$0xff]
    %v4424 = vld [vmem:[%s4174 + $0x7c8] sm:$0xff]
    %v4425 = vld [vmem:[%s4174 + $0x7d0] sm:$0xff]
    %v4426 = vld [vmem:[%s4174 + $0x7d8] sm:$0xff]
    %v4427 = vld [vmem:[%s4174 + $0x7e0] sm:$0xff]
    %v4428 = vld [vmem:[%s4174 + $0x7e8] sm:$0xff]
    %v4429 = vld [vmem:[%s4174 + $0x7f0] sm:$0xff]
    %v4430 = vld [vmem:[%s4174 + $0x7f8] sm:$0xff]
    %s4431 = scalar_lea.vmem [#allocation10], 1
    %v4432 = vld [vmem:[%s4431] ss:$2 sm:$0xff]
    %s4433 = scalar_lea.vmem [#allocation10], 17
    %v4434 = vld [vmem:[%s4433] ss:$2 sm:$0xff]
    %v4437 = vlaneseq
    %v4438 = vshrl.u32 %v4437, 7
    %v4439 = vsub.s32 0, %v4438
    %v4440 = vrot.slane %v4432, %v4439
    %v4441 = vlaneseq
    %v4442 = vshrl.u32 %v4441, 7
    %v4443 = vsub.s32 1, %v4442
    %v4444 = vrot.slane %v4432, %v4443
    %v4445 = vlaneseq
    %v4446 = vshrl.u32 %v4445, 7
    %v4447 = vsub.s32 2, %v4446
    %v4448 = vrot.slane %v4432, %v4447
    %v4449 = vlaneseq
    %v4450 = vshrl.u32 %v4449, 7
    %v4451 = vsub.s32 3, %v4450
    %v4452 = vrot.slane %v4432, %v4451
    %v4453 = vlaneseq
    %v4454 = vshrl.u32 %v4453, 7
    %v4455 = vsub.s32 4, %v4454
    %v4456 = vrot.slane %v4432, %v4455
    %v4457 = vlaneseq
    %v4458 = vshrl.u32 %v4457, 7
    %v4459 = vsub.s32 5, %v4458
    %v4460 = vrot.slane %v4432, %v4459
    %v4461 = vlaneseq
    %v4462 = vshrl.u32 %v4461, 7
    %v4463 = vsub.s32 6, %v4462
    %v4464 = vrot.slane %v4432, %v4463
    %v4465 = vlaneseq
    %v4466 = vshrl.u32 %v4465, 7
    %v4467 = vsub.s32 7, %v4466
    %v4468 = vrot.slane %v4432, %v4467
    %v4469 = vlaneseq
    %v4470 = vshrl.u32 %v4469, 7
    %v4471 = vsub.s32 0, %v4470
    %v4472 = vrot.slane %v4434, %v4471
    %v4473 = vlaneseq
    %v4474 = vshrl.u32 %v4473, 7
    %v4475 = vsub.s32 1, %v4474
    %v4476 = vrot.slane %v4434, %v4475
    %v4477 = vlaneseq
    %v4478 = vshrl.u32 %v4477, 7
    %v4479 = vsub.s32 2, %v4478
    %v4480 = vrot.slane %v4434, %v4479
    %v4481 = vlaneseq
    %v4482 = vshrl.u32 %v4481, 7
    %v4483 = vsub.s32 3, %v4482
    %v4484 = vrot.slane %v4434, %v4483
    %v4485 = vlaneseq
    %v4486 = vshrl.u32 %v4485, 7
    %v4487 = vsub.s32 4, %v4486
    %v4488 = vrot.slane %v4434, %v4487
    %v4489 = vlaneseq
    %v4490 = vshrl.u32 %v4489, 7
    %v4491 = vsub.s32 5, %v4490
    %v4492 = vrot.slane %v4434, %v4491
    %v4493 = vlaneseq
    %v4494 = vshrl.u32 %v4493, 7
    %v4495 = vsub.s32 6, %v4494
    %v4496 = vrot.slane %v4434, %v4495
    %v4497 = vlaneseq
    %v4498 = vshrl.u32 %v4497, 7
    %v4499 = vsub.s32 7, %v4498
    %v4500 = vrot.slane %v4434, %v4499
    %v4773 = vunpack.c.l.b16 %v4175
    %v4774 = vunpack.c.h.b16 %v4175
    %v4775 = vunpack.c.l.b16 %v4176
    %v4776 = vunpack.c.h.b16 %v4176
    %v4777 = vunpack.c.l.b16 %v4177
    %v4778 = vunpack.c.h.b16 %v4177
    %v4779 = vunpack.c.l.b16 %v4178
    %v4780 = vunpack.c.h.b16 %v4178
    %v4781 = vunpack.c.l.b16 %v4179
    %v4782 = vunpack.c.h.b16 %v4179
    %v4783 = vunpack.c.l.b16 %v4180
    %v4784 = vunpack.c.h.b16 %v4180
    %v4785 = vunpack.c.l.b16 %v4181
    %v4786 = vunpack.c.h.b16 %v4181
    %v4787 = vunpack.c.l.b16 %v4182
    %v4788 = vunpack.c.h.b16 %v4182
    %v4789 = vunpack.c.l.b16 %v4183
    %v4790 = vunpack.c.h.b16 %v4183
    %v4791 = vunpack.c.l.b16 %v4184
    %v4792 = vunpack.c.h.b16 %v4184
    %v4793 = vunpack.c.l.b16 %v4185
    %v4794 = vunpack.c.h.b16 %v4185
    %v4795 = vunpack.c.l.b16 %v4186
    %v4796 = vunpack.c.h.b16 %v4186
    %v4797 = vunpack.c.l.b16 %v4187
    %v4798 = vunpack.c.h.b16 %v4187
    %v4799 = vunpack.c.l.b16 %v4188
    %v4800 = vunpack.c.h.b16 %v4188
    %v4801 = vunpack.c.l.b16 %v4189
    %v4802 = vunpack.c.h.b16 %v4189
    %v4803 = vunpack.c.l.b16 %v4190
    %v4804 = vunpack.c.h.b16 %v4190
    %v4805 = vunpack.c.l.b16 %v4191
    %v4806 = vunpack.c.h.b16 %v4191
    %v4807 = vunpack.c.l.b16 %v4192
    %v4808 = vunpack.c.h.b16 %v4192
    %v4809 = vunpack.c.l.b16 %v4193
    %v4810 = vunpack.c.h.b16 %v4193
    %v4811 = vunpack.c.l.b16 %v4194
    %v4812 = vunpack.c.h.b16 %v4194
    %v4813 = vunpack.c.l.b16 %v4195
    %v4814 = vunpack.c.h.b16 %v4195
    %v4815 = vunpack.c.l.b16 %v4196
    %v4816 = vunpack.c.h.b16 %v4196
    %v4817 = vunpack.c.l.b16 %v4197
    %v4818 = vunpack.c.h.b16 %v4197
    %v4819 = vunpack.c.l.b16 %v4198
    %v4820 = vunpack.c.h.b16 %v4198
    %v4821 = vunpack.c.l.b16 %v4199
    %v4822 = vunpack.c.h.b16 %v4199
    %v4823 = vunpack.c.l.b16 %v4200
    %v4824 = vunpack.c.h.b16 %v4200
    %v4825 = vunpack.c.l.b16 %v4201
    %v4826 = vunpack.c.h.b16 %v4201
    %v4827 = vunpack.c.l.b16 %v4202
    %v4828 = vunpack.c.h.b16 %v4202
    %v4829 = vunpack.c.l.b16 %v4203
    %v4830 = vunpack.c.h.b16 %v4203
    %v4831 = vunpack.c.l.b16 %v4204
    %v4832 = vunpack.c.h.b16 %v4204
    %v4833 = vunpack.c.l.b16 %v4205
    %v4834 = vunpack.c.h.b16 %v4205
    %v4835 = vunpack.c.l.b16 %v4206
    %v4836 = vunpack.c.h.b16 %v4206
    %v4837 = vunpack.c.l.b16 %v4207
    %v4838 = vunpack.c.h.b16 %v4207
    %v4839 = vunpack.c.l.b16 %v4208
    %v4840 = vunpack.c.h.b16 %v4208
    %v4841 = vunpack.c.l.b16 %v4209
    %v4842 = vunpack.c.h.b16 %v4209
    %v4843 = vunpack.c.l.b16 %v4210
    %v4844 = vunpack.c.h.b16 %v4210
    %v4845 = vunpack.c.l.b16 %v4211
    %v4846 = vunpack.c.h.b16 %v4211
    %v4847 = vunpack.c.l.b16 %v4212
    %v4848 = vunpack.c.h.b16 %v4212
    %v4849 = vunpack.c.l.b16 %v4213
    %v4850 = vunpack.c.h.b16 %v4213
    %v4851 = vunpack.c.l.b16 %v4214
    %v4852 = vunpack.c.h.b16 %v4214
    %v4853 = vunpack.c.l.b16 %v4215
    %v4854 = vunpack.c.h.b16 %v4215
    %v4855 = vunpack.c.l.b16 %v4216
    %v4856 = vunpack.c.h.b16 %v4216
    %v4857 = vunpack.c.l.b16 %v4217
    %v4858 = vunpack.c.h.b16 %v4217
    %v4859 = vunpack.c.l.b16 %v4218
    %v4860 = vunpack.c.h.b16 %v4218
    %v4861 = vunpack.c.l.b16 %v4219
    %v4862 = vunpack.c.h.b16 %v4219
    %v4863 = vunpack.c.l.b16 %v4220
    %v4864 = vunpack.c.h.b16 %v4220
    %v4865 = vunpack.c.l.b16 %v4221
    %v4866 = vunpack.c.h.b16 %v4221
    %v4867 = vunpack.c.l.b16 %v4222
    %v4868 = vunpack.c.h.b16 %v4222
    %v4869 = vunpack.c.l.b16 %v4223
    %v4870 = vunpack.c.h.b16 %v4223
    %v4871 = vunpack.c.l.b16 %v4224
    %v4872 = vunpack.c.h.b16 %v4224
    %v4873 = vunpack.c.l.b16 %v4225
    %v4874 = vunpack.c.h.b16 %v4225
    %v4875 = vunpack.c.l.b16 %v4226
    %v4876 = vunpack.c.h.b16 %v4226
    %v4877 = vunpack.c.l.b16 %v4227
    %v4878 = vunpack.c.h.b16 %v4227
    %v4879 = vunpack.c.l.b16 %v4228
    %v4880 = vunpack.c.h.b16 %v4228
    %v4881 = vunpack.c.l.b16 %v4229
    %v4882 = vunpack.c.h.b16 %v4229
    %v4883 = vunpack.c.l.b16 %v4230
    %v4884 = vunpack.c.h.b16 %v4230
    %v4885 = vunpack.c.l.b16 %v4231
    %v4886 = vunpack.c.h.b16 %v4231
    %v4887 = vunpack.c.l.b16 %v4232
    %v4888 = vunpack.c.h.b16 %v4232
    %v4889 = vunpack.c.l.b16 %v4233
    %v4890 = vunpack.c.h.b16 %v4233
    %v4891 = vunpack.c.l.b16 %v4234
    %v4892 = vunpack.c.h.b16 %v4234
    %v4893 = vunpack.c.l.b16 %v4235
    %v4894 = vunpack.c.h.b16 %v4235
    %v4895 = vunpack.c.l.b16 %v4236
    %v4896 = vunpack.c.h.b16 %v4236
    %v4897 = vunpack.c.l.b16 %v4237
    %v4898 = vunpack.c.h.b16 %v4237
    %v4899 = vunpack.c.l.b16 %v4238
    %v4900 = vunpack.c.h.b16 %v4238
    %v4901 = vunpack.c.l.b16 %v4239
    %v4902 = vunpack.c.h.b16 %v4239
    %v4903 = vunpack.c.l.b16 %v4240
    %v4904 = vunpack.c.h.b16 %v4240
    %v4905 = vunpack.c.l.b16 %v4241
    %v4906 = vunpack.c.h.b16 %v4241
    %v4907 = vunpack.c.l.b16 %v4242
    %v4908 = vunpack.c.h.b16 %v4242
    %v4909 = vunpack.c.l.b16 %v4243
    %v4910 = vunpack.c.h.b16 %v4243
    %v4911 = vunpack.c.l.b16 %v4244
    %v4912 = vunpack.c.h.b16 %v4244
    %v4913 = vunpack.c.l.b16 %v4245
    %v4914 = vunpack.c.h.b16 %v4245
    %v4915 = vunpack.c.l.b16 %v4246
    %v4916 = vunpack.c.h.b16 %v4246
    %v4917 = vunpack.c.l.b16 %v4247
    %v4918 = vunpack.c.h.b16 %v4247
    %v4919 = vunpack.c.l.b16 %v4248
    %v4920 = vunpack.c.h.b16 %v4248
    %v4921 = vunpack.c.l.b16 %v4249
    %v4922 = vunpack.c.h.b16 %v4249
    %v4923 = vunpack.c.l.b16 %v4250
    %v4924 = vunpack.c.h.b16 %v4250
    %v4925 = vunpack.c.l.b16 %v4251
    %v4926 = vunpack.c.h.b16 %v4251
    %v4927 = vunpack.c.l.b16 %v4252
    %v4928 = vunpack.c.h.b16 %v4252
    %v4929 = vunpack.c.l.b16 %v4253
    %v4930 = vunpack.c.h.b16 %v4253
    %v4931 = vunpack.c.l.b16 %v4254
    %v4932 = vunpack.c.h.b16 %v4254
    %v4933 = vunpack.c.l.b16 %v4255
    %v4934 = vunpack.c.h.b16 %v4255
    %v4935 = vunpack.c.l.b16 %v4256
    %v4936 = vunpack.c.h.b16 %v4256
    %v4937 = vunpack.c.l.b16 %v4257
    %v4938 = vunpack.c.h.b16 %v4257
    %v4939 = vunpack.c.l.b16 %v4258
    %v4940 = vunpack.c.h.b16 %v4258
    %v4941 = vunpack.c.l.b16 %v4259
    %v4942 = vunpack.c.h.b16 %v4259
    %v4943 = vunpack.c.l.b16 %v4260
    %v4944 = vunpack.c.h.b16 %v4260
    %v4945 = vunpack.c.l.b16 %v4261
    %v4946 = vunpack.c.h.b16 %v4261
    %v4947 = vunpack.c.l.b16 %v4262
    %v4948 = vunpack.c.h.b16 %v4262
    %v4949 = vunpack.c.l.b16 %v4263
    %v4950 = vunpack.c.h.b16 %v4263
    %v4951 = vunpack.c.l.b16 %v4264
    %v4952 = vunpack.c.h.b16 %v4264
    %v4953 = vunpack.c.l.b16 %v4265
    %v4954 = vunpack.c.h.b16 %v4265
    %v4955 = vunpack.c.l.b16 %v4266
    %v4956 = vunpack.c.h.b16 %v4266
    %v4957 = vunpack.c.l.b16 %v4267
    %v4958 = vunpack.c.h.b16 %v4267
    %v4959 = vunpack.c.l.b16 %v4268
    %v4960 = vunpack.c.h.b16 %v4268
    %v4961 = vunpack.c.l.b16 %v4269
    %v4962 = vunpack.c.h.b16 %v4269
    %v4963 = vunpack.c.l.b16 %v4270
    %v4964 = vunpack.c.h.b16 %v4270
    %v4965 = vunpack.c.l.b16 %v4271
    %v4966 = vunpack.c.h.b16 %v4271
    %v4967 = vunpack.c.l.b16 %v4272
    %v4968 = vunpack.c.h.b16 %v4272
    %v4969 = vunpack.c.l.b16 %v4273
    %v4970 = vunpack.c.h.b16 %v4273
    %v4971 = vunpack.c.l.b16 %v4274
    %v4972 = vunpack.c.h.b16 %v4274
    %v4973 = vunpack.c.l.b16 %v4275
    %v4974 = vunpack.c.h.b16 %v4275
    %v4975 = vunpack.c.l.b16 %v4276
    %v4976 = vunpack.c.h.b16 %v4276
    %v4977 = vunpack.c.l.b16 %v4277
    %v4978 = vunpack.c.h.b16 %v4277
    %v4979 = vunpack.c.l.b16 %v4278
    %v4980 = vunpack.c.h.b16 %v4278
    %v4981 = vunpack.c.l.b16 %v4279
    %v4982 = vunpack.c.h.b16 %v4279
    %v4983 = vunpack.c.l.b16 %v4280
    %v4984 = vunpack.c.h.b16 %v4280
    %v4985 = vunpack.c.l.b16 %v4281
    %v4986 = vunpack.c.h.b16 %v4281
    %v4987 = vunpack.c.l.b16 %v4282
    %v4988 = vunpack.c.h.b16 %v4282
    %v4989 = vunpack.c.l.b16 %v4283
    %v4990 = vunpack.c.h.b16 %v4283
    %v4991 = vunpack.c.l.b16 %v4284
    %v4992 = vunpack.c.h.b16 %v4284
    %v4993 = vunpack.c.l.b16 %v4285
    %v4994 = vunpack.c.h.b16 %v4285
    %v4995 = vunpack.c.l.b16 %v4286
    %v4996 = vunpack.c.h.b16 %v4286
    %v4997 = vunpack.c.l.b16 %v4287
    %v4998 = vunpack.c.h.b16 %v4287
    %v4999 = vunpack.c.l.b16 %v4288
    %v5000 = vunpack.c.h.b16 %v4288
    %v5001 = vunpack.c.l.b16 %v4289
    %v5002 = vunpack.c.h.b16 %v4289
    %v5003 = vunpack.c.l.b16 %v4290
    %v5004 = vunpack.c.h.b16 %v4290
    %v5005 = vunpack.c.l.b16 %v4291
    %v5006 = vunpack.c.h.b16 %v4291
    %v5007 = vunpack.c.l.b16 %v4292
    %v5008 = vunpack.c.h.b16 %v4292
    %v5009 = vunpack.c.l.b16 %v4293
    %v5010 = vunpack.c.h.b16 %v4293
    %v5011 = vunpack.c.l.b16 %v4294
    %v5012 = vunpack.c.h.b16 %v4294
    %v5013 = vunpack.c.l.b16 %v4295
    %v5014 = vunpack.c.h.b16 %v4295
    %v5015 = vunpack.c.l.b16 %v4296
    %v5016 = vunpack.c.h.b16 %v4296
    %v5017 = vunpack.c.l.b16 %v4297
    %v5018 = vunpack.c.h.b16 %v4297
    %v5019 = vunpack.c.l.b16 %v4298
    %v5020 = vunpack.c.h.b16 %v4298
    %v5021 = vunpack.c.l.b16 %v4299
    %v5022 = vunpack.c.h.b16 %v4299
    %v5023 = vunpack.c.l.b16 %v4300
    %v5024 = vunpack.c.h.b16 %v4300
    %v5025 = vunpack.c.l.b16 %v4301
    %v5026 = vunpack.c.h.b16 %v4301
    %v5027 = vunpack.c.l.b16 %v4302
    %v5028 = vunpack.c.h.b16 %v4302
    %v5029 = vunpack.c.l.b16 %v4303
    %v5030 = vunpack.c.h.b16 %v4303
    %v5031 = vunpack.c.l.b16 %v4304
    %v5032 = vunpack.c.h.b16 %v4304
    %v5033 = vunpack.c.l.b16 %v4305
    %v5034 = vunpack.c.h.b16 %v4305
    %v5035 = vunpack.c.l.b16 %v4306
    %v5036 = vunpack.c.h.b16 %v4306
    %v5037 = vunpack.c.l.b16 %v4307
    %v5038 = vunpack.c.h.b16 %v4307
    %v5039 = vunpack.c.l.b16 %v4308
    %v5040 = vunpack.c.h.b16 %v4308
    %v5041 = vunpack.c.l.b16 %v4309
    %v5042 = vunpack.c.h.b16 %v4309
    %v5043 = vunpack.c.l.b16 %v4310
    %v5044 = vunpack.c.h.b16 %v4310
    %v5045 = vunpack.c.l.b16 %v4311
    %v5046 = vunpack.c.h.b16 %v4311
    %v5047 = vunpack.c.l.b16 %v4312
    %v5048 = vunpack.c.h.b16 %v4312
    %v5049 = vunpack.c.l.b16 %v4313
    %v5050 = vunpack.c.h.b16 %v4313
    %v5051 = vunpack.c.l.b16 %v4314
    %v5052 = vunpack.c.h.b16 %v4314
    %v5053 = vunpack.c.l.b16 %v4315
    %v5054 = vunpack.c.h.b16 %v4315
    %v5055 = vunpack.c.l.b16 %v4316
    %v5056 = vunpack.c.h.b16 %v4316
    %v5057 = vunpack.c.l.b16 %v4317
    %v5058 = vunpack.c.h.b16 %v4317
    %v5059 = vunpack.c.l.b16 %v4318
    %v5060 = vunpack.c.h.b16 %v4318
    %v5061 = vunpack.c.l.b16 %v4319
    %v5062 = vunpack.c.h.b16 %v4319
    %v5063 = vunpack.c.l.b16 %v4320
    %v5064 = vunpack.c.h.b16 %v4320
    %v5065 = vunpack.c.l.b16 %v4321
    %v5066 = vunpack.c.h.b16 %v4321
    %v5067 = vunpack.c.l.b16 %v4322
    %v5068 = vunpack.c.h.b16 %v4322
    %v5069 = vunpack.c.l.b16 %v4323
    %v5070 = vunpack.c.h.b16 %v4323
    %v5071 = vunpack.c.l.b16 %v4324
    %v5072 = vunpack.c.h.b16 %v4324
    %v5073 = vunpack.c.l.b16 %v4325
    %v5074 = vunpack.c.h.b16 %v4325
    %v5075 = vunpack.c.l.b16 %v4326
    %v5076 = vunpack.c.h.b16 %v4326
    %v5077 = vunpack.c.l.b16 %v4327
    %v5078 = vunpack.c.h.b16 %v4327
    %v5079 = vunpack.c.l.b16 %v4328
    %v5080 = vunpack.c.h.b16 %v4328
    %v5081 = vunpack.c.l.b16 %v4329
    %v5082 = vunpack.c.h.b16 %v4329
    %v5083 = vunpack.c.l.b16 %v4330
    %v5084 = vunpack.c.h.b16 %v4330
    %v5085 = vunpack.c.l.b16 %v4331
    %v5086 = vunpack.c.h.b16 %v4331
    %v5087 = vunpack.c.l.b16 %v4332
    %v5088 = vunpack.c.h.b16 %v4332
    %v5089 = vunpack.c.l.b16 %v4333
    %v5090 = vunpack.c.h.b16 %v4333
    %v5091 = vunpack.c.l.b16 %v4334
    %v5092 = vunpack.c.h.b16 %v4334
    %v5093 = vunpack.c.l.b16 %v4335
    %v5094 = vunpack.c.h.b16 %v4335
    %v5095 = vunpack.c.l.b16 %v4336
    %v5096 = vunpack.c.h.b16 %v4336
    %v5097 = vunpack.c.l.b16 %v4337
    %v5098 = vunpack.c.h.b16 %v4337
    %v5099 = vunpack.c.l.b16 %v4338
    %v5100 = vunpack.c.h.b16 %v4338
    %v5101 = vunpack.c.l.b16 %v4339
    %v5102 = vunpack.c.h.b16 %v4339
    %v5103 = vunpack.c.l.b16 %v4340
    %v5104 = vunpack.c.h.b16 %v4340
    %v5105 = vunpack.c.l.b16 %v4341
    %v5106 = vunpack.c.h.b16 %v4341
    %v5107 = vunpack.c.l.b16 %v4342
    %v5108 = vunpack.c.h.b16 %v4342
    %v5109 = vunpack.c.l.b16 %v4343
    %v5110 = vunpack.c.h.b16 %v4343
    %v5111 = vunpack.c.l.b16 %v4344
    %v5112 = vunpack.c.h.b16 %v4344
    %v5113 = vunpack.c.l.b16 %v4345
    %v5114 = vunpack.c.h.b16 %v4345
    %v5115 = vunpack.c.l.b16 %v4346
    %v5116 = vunpack.c.h.b16 %v4346
    %v5117 = vunpack.c.l.b16 %v4347
    %v5118 = vunpack.c.h.b16 %v4347
    %v5119 = vunpack.c.l.b16 %v4348
    %v5120 = vunpack.c.h.b16 %v4348
    %v5121 = vunpack.c.l.b16 %v4349
    %v5122 = vunpack.c.h.b16 %v4349
    %v5123 = vunpack.c.l.b16 %v4350
    %v5124 = vunpack.c.h.b16 %v4350
    %v5125 = vunpack.c.l.b16 %v4351
    %v5126 = vunpack.c.h.b16 %v4351
    %v5127 = vunpack.c.l.b16 %v4352
    %v5128 = vunpack.c.h.b16 %v4352
    %v5129 = vunpack.c.l.b16 %v4353
    %v5130 = vunpack.c.h.b16 %v4353
    %v5131 = vunpack.c.l.b16 %v4354
    %v5132 = vunpack.c.h.b16 %v4354
    %v5133 = vunpack.c.l.b16 %v4355
    %v5134 = vunpack.c.h.b16 %v4355
    %v5135 = vunpack.c.l.b16 %v4356
    %v5136 = vunpack.c.h.b16 %v4356
    %v5137 = vunpack.c.l.b16 %v4357
    %v5138 = vunpack.c.h.b16 %v4357
    %v5139 = vunpack.c.l.b16 %v4358
    %v5140 = vunpack.c.h.b16 %v4358
    %v5141 = vunpack.c.l.b16 %v4359
    %v5142 = vunpack.c.h.b16 %v4359
    %v5143 = vunpack.c.l.b16 %v4360
    %v5144 = vunpack.c.h.b16 %v4360
    %v5145 = vunpack.c.l.b16 %v4361
    %v5146 = vunpack.c.h.b16 %v4361
    %v5147 = vunpack.c.l.b16 %v4362
    %v5148 = vunpack.c.h.b16 %v4362
    %v5149 = vunpack.c.l.b16 %v4363
    %v5150 = vunpack.c.h.b16 %v4363
    %v5151 = vunpack.c.l.b16 %v4364
    %v5152 = vunpack.c.h.b16 %v4364
    %v5153 = vunpack.c.l.b16 %v4365
    %v5154 = vunpack.c.h.b16 %v4365
    %v5155 = vunpack.c.l.b16 %v4366
    %v5156 = vunpack.c.h.b16 %v4366
    %v5157 = vunpack.c.l.b16 %v4367
    %v5158 = vunpack.c.h.b16 %v4367
    %v5159 = vunpack.c.l.b16 %v4368
    %v5160 = vunpack.c.h.b16 %v4368
    %v5161 = vunpack.c.l.b16 %v4369
    %v5162 = vunpack.c.h.b16 %v4369
    %v5163 = vunpack.c.l.b16 %v4370
    %v5164 = vunpack.c.h.b16 %v4370
    %v5165 = vunpack.c.l.b16 %v4371
    %v5166 = vunpack.c.h.b16 %v4371
    %v5167 = vunpack.c.l.b16 %v4372
    %v5168 = vunpack.c.h.b16 %v4372
    %v5169 = vunpack.c.l.b16 %v4373
    %v5170 = vunpack.c.h.b16 %v4373
    %v5171 = vunpack.c.l.b16 %v4374
    %v5172 = vunpack.c.h.b16 %v4374
    %v5173 = vunpack.c.l.b16 %v4375
    %v5174 = vunpack.c.h.b16 %v4375
    %v5175 = vunpack.c.l.b16 %v4376
    %v5176 = vunpack.c.h.b16 %v4376
    %v5177 = vunpack.c.l.b16 %v4377
    %v5178 = vunpack.c.h.b16 %v4377
    %v5179 = vunpack.c.l.b16 %v4378
    %v5180 = vunpack.c.h.b16 %v4378
    %v5181 = vunpack.c.l.b16 %v4379
    %v5182 = vunpack.c.h.b16 %v4379
    %v5183 = vunpack.c.l.b16 %v4380
    %v5184 = vunpack.c.h.b16 %v4380
    %v5185 = vunpack.c.l.b16 %v4381
    %v5186 = vunpack.c.h.b16 %v4381
    %v5187 = vunpack.c.l.b16 %v4382
    %v5188 = vunpack.c.h.b16 %v4382
    %v5189 = vunpack.c.l.b16 %v4383
    %v5190 = vunpack.c.h.b16 %v4383
    %v5191 = vunpack.c.l.b16 %v4384
    %v5192 = vunpack.c.h.b16 %v4384
    %v5193 = vunpack.c.l.b16 %v4385
    %v5194 = vunpack.c.h.b16 %v4385
    %v5195 = vunpack.c.l.b16 %v4386
    %v5196 = vunpack.c.h.b16 %v4386
    %v5197 = vunpack.c.l.b16 %v4387
    %v5198 = vunpack.c.h.b16 %v4387
    %v5199 = vunpack.c.l.b16 %v4388
    %v5200 = vunpack.c.h.b16 %v4388
    %v5201 = vunpack.c.l.b16 %v4389
    %v5202 = vunpack.c.h.b16 %v4389
    %v5203 = vunpack.c.l.b16 %v4390
    %v5204 = vunpack.c.h.b16 %v4390
    %v5205 = vunpack.c.l.b16 %v4391
    %v5206 = vunpack.c.h.b16 %v4391
    %v5207 = vunpack.c.l.b16 %v4392
    %v5208 = vunpack.c.h.b16 %v4392
    %v5209 = vunpack.c.l.b16 %v4393
    %v5210 = vunpack.c.h.b16 %v4393
    %v5211 = vunpack.c.l.b16 %v4394
    %v5212 = vunpack.c.h.b16 %v4394
    %v5213 = vunpack.c.l.b16 %v4395
    %v5214 = vunpack.c.h.b16 %v4395
    %v5215 = vunpack.c.l.b16 %v4396
    %v5216 = vunpack.c.h.b16 %v4396
    %v5217 = vunpack.c.l.b16 %v4397
    %v5218 = vunpack.c.h.b16 %v4397
    %v5219 = vunpack.c.l.b16 %v4398
    %v5220 = vunpack.c.h.b16 %v4398
    %v5221 = vunpack.c.l.b16 %v4399
    %v5222 = vunpack.c.h.b16 %v4399
    %v5223 = vunpack.c.l.b16 %v4400
    %v5224 = vunpack.c.h.b16 %v4400
    %v5225 = vunpack.c.l.b16 %v4401
    %v5226 = vunpack.c.h.b16 %v4401
    %v5227 = vunpack.c.l.b16 %v4402
    %v5228 = vunpack.c.h.b16 %v4402
    %v5229 = vunpack.c.l.b16 %v4403
    %v5230 = vunpack.c.h.b16 %v4403
    %v5231 = vunpack.c.l.b16 %v4404
    %v5232 = vunpack.c.h.b16 %v4404
    %v5233 = vunpack.c.l.b16 %v4405
    %v5234 = vunpack.c.h.b16 %v4405
    %v5235 = vunpack.c.l.b16 %v4406
    %v5236 = vunpack.c.h.b16 %v4406
    %v5237 = vunpack.c.l.b16 %v4407
    %v5238 = vunpack.c.h.b16 %v4407
    %v5239 = vunpack.c.l.b16 %v4408
    %v5240 = vunpack.c.h.b16 %v4408
    %v5241 = vunpack.c.l.b16 %v4409
    %v5242 = vunpack.c.h.b16 %v4409
    %v5243 = vunpack.c.l.b16 %v4410
    %v5244 = vunpack.c.h.b16 %v4410
    %v5245 = vunpack.c.l.b16 %v4411
    %v5246 = vunpack.c.h.b16 %v4411
    %v5247 = vunpack.c.l.b16 %v4412
    %v5248 = vunpack.c.h.b16 %v4412
    %v5249 = vunpack.c.l.b16 %v4413
    %v5250 = vunpack.c.h.b16 %v4413
    %v5251 = vunpack.c.l.b16 %v4414
    %v5252 = vunpack.c.h.b16 %v4414
    %v5253 = vunpack.c.l.b16 %v4415
    %v5254 = vunpack.c.h.b16 %v4415
    %v5255 = vunpack.c.l.b16 %v4416
    %v5256 = vunpack.c.h.b16 %v4416
    %v5257 = vunpack.c.l.b16 %v4417
    %v5258 = vunpack.c.h.b16 %v4417
    %v5259 = vunpack.c.l.b16 %v4418
    %v5260 = vunpack.c.h.b16 %v4418
    %v5261 = vunpack.c.l.b16 %v4419
    %v5262 = vunpack.c.h.b16 %v4419
    %v5263 = vunpack.c.l.b16 %v4420
    %v5264 = vunpack.c.h.b16 %v4420
    %v5265 = vunpack.c.l.b16 %v4421
    %v5266 = vunpack.c.h.b16 %v4421
    %v5267 = vunpack.c.l.b16 %v4422
    %v5268 = vunpack.c.h.b16 %v4422
    %v5269 = vunpack.c.l.b16 %v4423
    %v5270 = vunpack.c.h.b16 %v4423
    %v5271 = vunpack.c.l.b16 %v4424
    %v5272 = vunpack.c.h.b16 %v4424
    %v5273 = vunpack.c.l.b16 %v4425
    %v5274 = vunpack.c.h.b16 %v4425
    %v5275 = vunpack.c.l.b16 %v4426
    %v5276 = vunpack.c.h.b16 %v4426
    %v5277 = vunpack.c.l.b16 %v4427
    %v5278 = vunpack.c.h.b16 %v4427
    %v5279 = vunpack.c.l.b16 %v4428
    %v5280 = vunpack.c.h.b16 %v4428
    %v5281 = vunpack.c.l.b16 %v4429
    %v5282 = vunpack.c.h.b16 %v4429
    %v5283 = vunpack.c.l.b16 %v4430
    %v5284 = vunpack.c.h.b16 %v4430
    %v5285 = vpack.c.b16 %v4789, %v4773
    %v5286 = vpack.c.b16 %v4790, %v4774
    %v5287 = vpack.c.b16 %v4791, %v4775
    %v5288 = vpack.c.b16 %v4792, %v4776
    %v5289 = vpack.c.b16 %v4793, %v4777
    %v5290 = vpack.c.b16 %v4794, %v4778
    %v5291 = vpack.c.b16 %v4795, %v4779
    %v5292 = vpack.c.b16 %v4796, %v4780
    %v5293 = vpack.c.b16 %v4797, %v4781
    %v5294 = vpack.c.b16 %v4798, %v4782
    %v5295 = vpack.c.b16 %v4799, %v4783
    %v5296 = vpack.c.b16 %v4800, %v4784
    %v5297 = vpack.c.b16 %v4801, %v4785
    %v5298 = vpack.c.b16 %v4802, %v4786
    %v5299 = vpack.c.b16 %v4803, %v4787
    %v5300 = vpack.c.b16 %v4804, %v4788
    %v5301 = vpack.c.b16 %v4821, %v4805
    %v5302 = vpack.c.b16 %v4822, %v4806
    %v5303 = vpack.c.b16 %v4823, %v4807
    %v5304 = vpack.c.b16 %v4824, %v4808
    %v5305 = vpack.c.b16 %v4825, %v4809
    %v5306 = vpack.c.b16 %v4826, %v4810
    %v5307 = vpack.c.b16 %v4827, %v4811
    %v5308 = vpack.c.b16 %v4828, %v4812
    %v5309 = vpack.c.b16 %v4829, %v4813
    %v5310 = vpack.c.b16 %v4830, %v4814
    %v5311 = vpack.c.b16 %v4831, %v4815
    %v5312 = vpack.c.b16 %v4832, %v4816
    %v5313 = vpack.c.b16 %v4833, %v4817
    %v5314 = vpack.c.b16 %v4834, %v4818
    %v5315 = vpack.c.b16 %v4835, %v4819
    %v5316 = vpack.c.b16 %v4836, %v4820
    %v5317 = vpack.c.b16 %v4853, %v4837
    %v5318 = vpack.c.b16 %v4854, %v4838
    %v5319 = vpack.c.b16 %v4855, %v4839
    %v5320 = vpack.c.b16 %v4856, %v4840
    %v5321 = vpack.c.b16 %v4857, %v4841
    %v5322 = vpack.c.b16 %v4858, %v4842
    %v5323 = vpack.c.b16 %v4859, %v4843
    %v5324 = vpack.c.b16 %v4860, %v4844
    %v5325 = vpack.c.b16 %v4861, %v4845
    %v5326 = vpack.c.b16 %v4862, %v4846
    %v5327 = vpack.c.b16 %v4863, %v4847
    %v5328 = vpack.c.b16 %v4864, %v4848
    %v5329 = vpack.c.b16 %v4865, %v4849
    %v5330 = vpack.c.b16 %v4866, %v4850
    %v5331 = vpack.c.b16 %v4867, %v4851
    %v5332 = vpack.c.b16 %v4868, %v4852
    %v5333 = vpack.c.b16 %v4885, %v4869
    %v5334 = vpack.c.b16 %v4886, %v4870
    %v5335 = vpack.c.b16 %v4887, %v4871
    %v5336 = vpack.c.b16 %v4888, %v4872
    %v5337 = vpack.c.b16 %v4889, %v4873
    %v5338 = vpack.c.b16 %v4890, %v4874
    %v5339 = vpack.c.b16 %v4891, %v4875
    %v5340 = vpack.c.b16 %v4892, %v4876
    %v5341 = vpack.c.b16 %v4893, %v4877
    %v5342 = vpack.c.b16 %v4894, %v4878
    %v5343 = vpack.c.b16 %v4895, %v4879
    %v5344 = vpack.c.b16 %v4896, %v4880
    %v5345 = vpack.c.b16 %v4897, %v4881
    %v5346 = vpack.c.b16 %v4898, %v4882
    %v5347 = vpack.c.b16 %v4899, %v4883
    %v5348 = vpack.c.b16 %v4900, %v4884
    %v5349 = vpack.c.b16 %v4917, %v4901
    %v5350 = vpack.c.b16 %v4918, %v4902
    %v5351 = vpack.c.b16 %v4919, %v4903
    %v5352 = vpack.c.b16 %v4920, %v4904
    %v5353 = vpack.c.b16 %v4921, %v4905
    %v5354 = vpack.c.b16 %v4922, %v4906
    %v5355 = vpack.c.b16 %v4923, %v4907
    %v5356 = vpack.c.b16 %v4924, %v4908
    %v5357 = vpack.c.b16 %v4925, %v4909
    %v5358 = vpack.c.b16 %v4926, %v4910
    %v5359 = vpack.c.b16 %v4927, %v4911
    %v5360 = vpack.c.b16 %v4928, %v4912
    %v5361 = vpack.c.b16 %v4929, %v4913
    %v5362 = vpack.c.b16 %v4930, %v4914
    %v5363 = vpack.c.b16 %v4931, %v4915
    %v5364 = vpack.c.b16 %v4932, %v4916
    %v5365 = vpack.c.b16 %v4949, %v4933
    %v5366 = vpack.c.b16 %v4950, %v4934
    %v5367 = vpack.c.b16 %v4951, %v4935
    %v5368 = vpack.c.b16 %v4952, %v4936
    %v5369 = vpack.c.b16 %v4953, %v4937
    %v5370 = vpack.c.b16 %v4954, %v4938
    %v5371 = vpack.c.b16 %v4955, %v4939
    %v5372 = vpack.c.b16 %v4956, %v4940
    %v5373 = vpack.c.b16 %v4957, %v4941
    %v5374 = vpack.c.b16 %v4958, %v4942
    %v5375 = vpack.c.b16 %v4959, %v4943
    %v5376 = vpack.c.b16 %v4960, %v4944
    %v5377 = vpack.c.b16 %v4961, %v4945
    %v5378 = vpack.c.b16 %v4962, %v4946
    %v5379 = vpack.c.b16 %v4963, %v4947
    %v5380 = vpack.c.b16 %v4964, %v4948
    %v5381 = vpack.c.b16 %v4981, %v4965
    %v5382 = vpack.c.b16 %v4982, %v4966
    %v5383 = vpack.c.b16 %v4983, %v4967
    %v5384 = vpack.c.b16 %v4984, %v4968
    %v5385 = vpack.c.b16 %v4985, %v4969
    %v5386 = vpack.c.b16 %v4986, %v4970
    %v5387 = vpack.c.b16 %v4987, %v4971
    %v5388 = vpack.c.b16 %v4988, %v4972
    %v5389 = vpack.c.b16 %v4989, %v4973
    %v5390 = vpack.c.b16 %v4990, %v4974
    %v5391 = vpack.c.b16 %v4991, %v4975
    %v5392 = vpack.c.b16 %v4992, %v4976
    %v5393 = vpack.c.b16 %v4993, %v4977
    %v5394 = vpack.c.b16 %v4994, %v4978
    %v5395 = vpack.c.b16 %v4995, %v4979
    %v5396 = vpack.c.b16 %v4996, %v4980
    %v5397 = vpack.c.b16 %v5013, %v4997
    %v5398 = vpack.c.b16 %v5014, %v4998
    %v5399 = vpack.c.b16 %v5015, %v4999
    %v5400 = vpack.c.b16 %v5016, %v5000
    %v5401 = vpack.c.b16 %v5017, %v5001
    %v5402 = vpack.c.b16 %v5018, %v5002
    %v5403 = vpack.c.b16 %v5019, %v5003
    %v5404 = vpack.c.b16 %v5020, %v5004
    %v5405 = vpack.c.b16 %v5021, %v5005
    %v5406 = vpack.c.b16 %v5022, %v5006
    %v5407 = vpack.c.b16 %v5023, %v5007
    %v5408 = vpack.c.b16 %v5024, %v5008
    %v5409 = vpack.c.b16 %v5025, %v5009
    %v5410 = vpack.c.b16 %v5026, %v5010
    %v5411 = vpack.c.b16 %v5027, %v5011
    %v5412 = vpack.c.b16 %v5028, %v5012
    %v5413 = vpack.c.b16 %v5045, %v5029
    %v5414 = vpack.c.b16 %v5046, %v5030
    %v5415 = vpack.c.b16 %v5047, %v5031
    %v5416 = vpack.c.b16 %v5048, %v5032
    %v5417 = vpack.c.b16 %v5049, %v5033
    %v5418 = vpack.c.b16 %v5050, %v5034
    %v5419 = vpack.c.b16 %v5051, %v5035
    %v5420 = vpack.c.b16 %v5052, %v5036
    %v5421 = vpack.c.b16 %v5053, %v5037
    %v5422 = vpack.c.b16 %v5054, %v5038
    %v5423 = vpack.c.b16 %v5055, %v5039
    %v5424 = vpack.c.b16 %v5056, %v5040
    %v5425 = vpack.c.b16 %v5057, %v5041
    %v5426 = vpack.c.b16 %v5058, %v5042
    %v5427 = vpack.c.b16 %v5059, %v5043
    %v5428 = vpack.c.b16 %v5060, %v5044
    %v5429 = vpack.c.b16 %v5077, %v5061
    %v5430 = vpack.c.b16 %v5078, %v5062
    %v5431 = vpack.c.b16 %v5079, %v5063
    %v5432 = vpack.c.b16 %v5080, %v5064
    %v5433 = vpack.c.b16 %v5081, %v5065
    %v5434 = vpack.c.b16 %v5082, %v5066
    %v5435 = vpack.c.b16 %v5083, %v5067
    %v5436 = vpack.c.b16 %v5084, %v5068
    %v5437 = vpack.c.b16 %v5085, %v5069
    %v5438 = vpack.c.b16 %v5086, %v5070
    %v5439 = vpack.c.b16 %v5087, %v5071
    %v5440 = vpack.c.b16 %v5088, %v5072
    %v5441 = vpack.c.b16 %v5089, %v5073
    %v5442 = vpack.c.b16 %v5090, %v5074
    %v5443 = vpack.c.b16 %v5091, %v5075
    %v5444 = vpack.c.b16 %v5092, %v5076
    %v5445 = vpack.c.b16 %v5109, %v5093
    %v5446 = vpack.c.b16 %v5110, %v5094
    %v5447 = vpack.c.b16 %v5111, %v5095
    %v5448 = vpack.c.b16 %v5112, %v5096
    %v5449 = vpack.c.b16 %v5113, %v5097
    %v5450 = vpack.c.b16 %v5114, %v5098
    %v5451 = vpack.c.b16 %v5115, %v5099
    %v5452 = vpack.c.b16 %v5116, %v5100
    %v5453 = vpack.c.b16 %v5117, %v5101
    %v5454 = vpack.c.b16 %v5118, %v5102
    %v5455 = vpack.c.b16 %v5119, %v5103
    %v5456 = vpack.c.b16 %v5120, %v5104
    %v5457 = vpack.c.b16 %v5121, %v5105
    %v5458 = vpack.c.b16 %v5122, %v5106
    %v5459 = vpack.c.b16 %v5123, %v5107
    %v5460 = vpack.c.b16 %v5124, %v5108
    %v5461 = vpack.c.b16 %v5141, %v5125
    %v5462 = vpack.c.b16 %v5142, %v5126
    %v5463 = vpack.c.b16 %v5143, %v5127
    %v5464 = vpack.c.b16 %v5144, %v5128
    %v5465 = vpack.c.b16 %v5145, %v5129
    %v5466 = vpack.c.b16 %v5146, %v5130
    %v5467 = vpack.c.b16 %v5147, %v5131
    %v5468 = vpack.c.b16 %v5148, %v5132
    %v5469 = vpack.c.b16 %v5149, %v5133
    %v5470 = vpack.c.b16 %v5150, %v5134
    %v5471 = vpack.c.b16 %v5151, %v5135
    %v5472 = vpack.c.b16 %v5152, %v5136
    %v5473 = vpack.c.b16 %v5153, %v5137
    %v5474 = vpack.c.b16 %v5154, %v5138
    %v5475 = vpack.c.b16 %v5155, %v5139
    %v5476 = vpack.c.b16 %v5156, %v5140
    %v5477 = vpack.c.b16 %v5173, %v5157
    %v5478 = vpack.c.b16 %v5174, %v5158
    %v5479 = vpack.c.b16 %v5175, %v5159
    %v5480 = vpack.c.b16 %v5176, %v5160
    %v5481 = vpack.c.b16 %v5177, %v5161
    %v5482 = vpack.c.b16 %v5178, %v5162
    %v5483 = vpack.c.b16 %v5179, %v5163
    %v5484 = vpack.c.b16 %v5180, %v5164
    %v5485 = vpack.c.b16 %v5181, %v5165
    %v5486 = vpack.c.b16 %v5182, %v5166
    %v5487 = vpack.c.b16 %v5183, %v5167
    %v5488 = vpack.c.b16 %v5184, %v5168
    %v5489 = vpack.c.b16 %v5185, %v5169
    %v5490 = vpack.c.b16 %v5186, %v5170
    %v5491 = vpack.c.b16 %v5187, %v5171
    %v5492 = vpack.c.b16 %v5188, %v5172
    %v5493 = vpack.c.b16 %v5205, %v5189
    %v5494 = vpack.c.b16 %v5206, %v5190
    %v5495 = vpack.c.b16 %v5207, %v5191
    %v5496 = vpack.c.b16 %v5208, %v5192
    %v5497 = vpack.c.b16 %v5209, %v5193
    %v5498 = vpack.c.b16 %v5210, %v5194
    %v5499 = vpack.c.b16 %v5211, %v5195
    %v5500 = vpack.c.b16 %v5212, %v5196
    %v5501 = vpack.c.b16 %v5213, %v5197
    %v5502 = vpack.c.b16 %v5214, %v5198
    %v5503 = vpack.c.b16 %v5215, %v5199
    %v5504 = vpack.c.b16 %v5216, %v5200
    %v5505 = vpack.c.b16 %v5217, %v5201
    %v5506 = vpack.c.b16 %v5218, %v5202
    %v5507 = vpack.c.b16 %v5219, %v5203
    %v5508 = vpack.c.b16 %v5220, %v5204
    %v5509 = vpack.c.b16 %v5237, %v5221
    %v5510 = vpack.c.b16 %v5238, %v5222
    %v5511 = vpack.c.b16 %v5239, %v5223
    %v5512 = vpack.c.b16 %v5240, %v5224
    %v5513 = vpack.c.b16 %v5241, %v5225
    %v5514 = vpack.c.b16 %v5242, %v5226
    %v5515 = vpack.c.b16 %v5243, %v5227
    %v5516 = vpack.c.b16 %v5244, %v5228
    %v5517 = vpack.c.b16 %v5245, %v5229
    %v5518 = vpack.c.b16 %v5246, %v5230
    %v5519 = vpack.c.b16 %v5247, %v5231
    %v5520 = vpack.c.b16 %v5248, %v5232
    %v5521 = vpack.c.b16 %v5249, %v5233
    %v5522 = vpack.c.b16 %v5250, %v5234
    %v5523 = vpack.c.b16 %v5251, %v5235
    %v5524 = vpack.c.b16 %v5252, %v5236
    %v5525 = vpack.c.b16 %v5269, %v5253
    %v5526 = vpack.c.b16 %v5270, %v5254
    %v5527 = vpack.c.b16 %v5271, %v5255
    %v5528 = vpack.c.b16 %v5272, %v5256
    %v5529 = vpack.c.b16 %v5273, %v5257
    %v5530 = vpack.c.b16 %v5274, %v5258
    %v5531 = vpack.c.b16 %v5275, %v5259
    %v5532 = vpack.c.b16 %v5276, %v5260
    %v5533 = vpack.c.b16 %v5277, %v5261
    %v5534 = vpack.c.b16 %v5278, %v5262
    %v5535 = vpack.c.b16 %v5279, %v5263
    %v5536 = vpack.c.b16 %v5280, %v5264
    %v5537 = vpack.c.b16 %v5281, %v5265
    %v5538 = vpack.c.b16 %v5282, %v5266
    %v5539 = vpack.c.b16 %v5283, %v5267
    %v5540 = vpack.c.b16 %v5284, %v5268
    %5797 = vmatprep.subr.bf16.mxu0 %v5398
    %5798 = vmatpush1.bf16.msra.mxu0 %v5397
    %5799 = vmatprep.subr.bf16.mxu0 %v5382
    %5800 = vmatpush1.bf16.msra.mxu0 %v5381
    %5801 = vmatprep.subr.bf16.mxu0 %v5366
    %5802 = vmatpush1.bf16.msra.mxu0 %v5365
    %5803 = vmatprep.subr.bf16.mxu0 %v5350
    %5804 = vmatpush1.bf16.msra.mxu0 %v5349
    %5805 = vmatprep.subr.bf16.mxu0 %v5334
    %5806 = vmatpush1.bf16.msra.mxu0 %v5333
    %5807 = vmatprep.subr.bf16.mxu0 %v5318
    %5808 = vmatpush1.bf16.msra.mxu0 %v5317
    %5809 = vmatprep.subr.bf16.mxu0 %v5302
    %5810 = vmatpush1.bf16.msra.mxu0 %v5301
    %5811 = vmatprep.subr.bf16.mxu0 %v5286
    %5812 = vmatpush1.bf16.msra.mxu0 %v5285
    %5813 = vmatprep.subr.bf16.mxu0 %v5526
    %5814 = vmatpush2.bf16.msra.mxu0 %v5525
    %5815 = vmatprep.subr.bf16.mxu0 %v5510
    %5816 = vmatpush2.bf16.msra.mxu0 %v5509
    %5817 = vmatprep.subr.bf16.mxu0 %v5494
    %5818 = vmatpush2.bf16.msra.mxu0 %v5493
    %5819 = vmatprep.subr.bf16.mxu0 %v5478
    %5820 = vmatpush2.bf16.msra.mxu0 %v5477
    %5821 = vmatprep.subr.bf16.mxu0 %v5462
    %5822 = vmatpush2.bf16.msra.mxu0 %v5461
    %5823 = vmatprep.subr.bf16.mxu0 %v5446
    %5824 = vmatpush2.bf16.msra.mxu0 %v5445
    %5825 = vmatprep.subr.bf16.mxu0 %v5430
    %5826 = vmatpush2.bf16.msra.mxu0 %v5429
    %5827 = vmatprep.subr.bf16.mxu0 %v5414
    %5828 = vmatpush2.bf16.msra.mxu0 %v5413
    %5829 = vmatprep.mubr.bf16.mxu0 %v4173
    %5830 = vmatmul.mubr.bf16.gmra.mxu0 %v4172
    %v5831 = vpop.f32.mrf.mxu0
    %v5832 = vadd.f32 %v4440, %v5831
    %v5833 = vpop.f32.mrf.mxu0
    %v5834 = vadd.f32 %v4444, %v5833
    %v5835 = vpop.f32.mrf.mxu0
    %v5836 = vpop.f32.mrf.mxu0
    %5837 = vdwg.mxu0
    %5838 = vmatprep.subr.bf16.mxu0 %v5400
    %5839 = vmatpush1.bf16.msra.mxu0 %v5399
    %5840 = vmatprep.subr.bf16.mxu0 %v5384
    %5841 = vmatpush1.bf16.msra.mxu0 %v5383
    %5842 = vmatprep.subr.bf16.mxu0 %v5368
    %5843 = vmatpush1.bf16.msra.mxu0 %v5367
    %5844 = vmatprep.subr.bf16.mxu0 %v5352
    %5845 = vmatpush1.bf16.msra.mxu0 %v5351
    %5846 = vmatprep.subr.bf16.mxu0 %v5336
    %5847 = vmatpush1.bf16.msra.mxu0 %v5335
    %5848 = vmatprep.subr.bf16.mxu0 %v5320
    %5849 = vmatpush1.bf16.msra.mxu0 %v5319
    %5850 = vmatprep.subr.bf16.mxu0 %v5304
    %5851 = vmatpush1.bf16.msra.mxu0 %v5303
    %5852 = vmatprep.subr.bf16.mxu0 %v5288
    %5853 = vmatpush1.bf16.msra.mxu0 %v5287
    %5854 = vmatprep.subr.bf16.mxu0 %v5528
    %5855 = vmatpush2.bf16.msra.mxu0 %v5527
    %5856 = vmatprep.subr.bf16.mxu0 %v5512
    %5857 = vmatpush2.bf16.msra.mxu0 %v5511
    %5858 = vmatprep.subr.bf16.mxu0 %v5496
    %5859 = vmatpush2.bf16.msra.mxu0 %v5495
    %5860 = vmatprep.subr.bf16.mxu0 %v5480
    %5861 = vmatpush2.bf16.msra.mxu0 %v5479
    %5862 = vmatprep.subr.bf16.mxu0 %v5464
    %5863 = vmatpush2.bf16.msra.mxu0 %v5463
    %5864 = vmatprep.subr.bf16.mxu0 %v5448
    %5865 = vmatpush2.bf16.msra.mxu0 %v5447
    %5866 = vmatprep.subr.bf16.mxu0 %v5432
    %5867 = vmatpush2.bf16.msra.mxu0 %v5431
    %5868 = vmatprep.subr.bf16.mxu0 %v5416
    %5869 = vmatpush2.bf16.msra.mxu0 %v5415
    %5870 = vmatprep.mubr.bf16.mxu0 %v4173
    %5871 = vmatmul.mubr.bf16.gmra.mxu0 %v4172
    %v5872 = vpop.f32.mrf.mxu0
    %v5873 = vadd.f32 %v4448, %v5872
    %v5874 = vpop.f32.mrf.mxu0
    %v5875 = vadd.f32 %v4452, %v5874
    %v5876 = vpop.f32.mrf.mxu0
    %v5877 = vpop.f32.mrf.mxu0
    %5878 = vdwg.mxu0
    %5879 = vmatprep.subr.bf16.mxu0 %v5402
    %5880 = vmatpush1.bf16.msra.mxu0 %v5401
    %5881 = vmatprep.subr.bf16.mxu0 %v5386
    %5882 = vmatpush1.bf16.msra.mxu0 %v5385
    %5883 = vmatprep.subr.bf16.mxu0 %v5370
    %5884 = vmatpush1.bf16.msra.mxu0 %v5369
    %5885 = vmatprep.subr.bf16.mxu0 %v5354
    %5886 = vmatpush1.bf16.msra.mxu0 %v5353
    %5887 = vmatprep.subr.bf16.mxu0 %v5338
    %5888 = vmatpush1.bf16.msra.mxu0 %v5337
    %5889 = vmatprep.subr.bf16.mxu0 %v5322
    %5890 = vmatpush1.bf16.msra.mxu0 %v5321
    %5891 = vmatprep.subr.bf16.mxu0 %v5306
    %5892 = vmatpush1.bf16.msra.mxu0 %v5305
    %5893 = vmatprep.subr.bf16.mxu0 %v5290
    %5894 = vmatpush1.bf16.msra.mxu0 %v5289
    %5895 = vmatprep.subr.bf16.mxu0 %v5530
    %5896 = vmatpush2.bf16.msra.mxu0 %v5529
    %5897 = vmatprep.subr.bf16.mxu0 %v5514
    %5898 = vmatpush2.bf16.msra.mxu0 %v5513
    %5899 = vmatprep.subr.bf16.mxu0 %v5498
    %5900 = vmatpush2.bf16.msra.mxu0 %v5497
    %5901 = vmatprep.subr.bf16.mxu0 %v5482
    %5902 = vmatpush2.bf16.msra.mxu0 %v5481
    %5903 = vmatprep.subr.bf16.mxu0 %v5466
    %5904 = vmatpush2.bf16.msra.mxu0 %v5465
    %5905 = vmatprep.subr.bf16.mxu0 %v5450
    %5906 = vmatpush2.bf16.msra.mxu0 %v5449
    %5907 = vmatprep.subr.bf16.mxu0 %v5434
    %5908 = vmatpush2.bf16.msra.mxu0 %v5433
    %5909 = vmatprep.subr.bf16.mxu0 %v5418
    %5910 = vmatpush2.bf16.msra.mxu0 %v5417
    %5911 = vmatprep.mubr.bf16.mxu0 %v4173
    %5912 = vmatmul.mubr.bf16.gmra.mxu0 %v4172
    %v5913 = vpop.f32.mrf.mxu0
    %v5914 = vadd.f32 %v4456, %v5913
    %v5915 = vpop.f32.mrf.mxu0
    %v5916 = vadd.f32 %v4460, %v5915
    %v5917 = vpop.f32.mrf.mxu0
    %v5918 = vpop.f32.mrf.mxu0
    %5919 = vdwg.mxu0
    %5920 = vmatprep.subr.bf16.mxu0 %v5404
    %5921 = vmatpush1.bf16.msra.mxu0 %v5403
    %5922 = vmatprep.subr.bf16.mxu0 %v5388
    %5923 = vmatpush1.bf16.msra.mxu0 %v5387
    %5924 = vmatprep.subr.bf16.mxu0 %v5372
    %5925 = vmatpush1.bf16.msra.mxu0 %v5371
    %5926 = vmatprep.subr.bf16.mxu0 %v5356
    %5927 = vmatpush1.bf16.msra.mxu0 %v5355
    %5928 = vmatprep.subr.bf16.mxu0 %v5340
    %5929 = vmatpush1.bf16.msra.mxu0 %v5339
    %5930 = vmatprep.subr.bf16.mxu0 %v5324
    %5931 = vmatpush1.bf16.msra.mxu0 %v5323
    %5932 = vmatprep.subr.bf16.mxu0 %v5308
    %5933 = vmatpush1.bf16.msra.mxu0 %v5307
    %5934 = vmatprep.subr.bf16.mxu0 %v5292
    %5935 = vmatpush1.bf16.msra.mxu0 %v5291
    %5936 = vmatprep.subr.bf16.mxu0 %v5532
    %5937 = vmatpush2.bf16.msra.mxu0 %v5531
    %5938 = vmatprep.subr.bf16.mxu0 %v5516
    %5939 = vmatpush2.bf16.msra.mxu0 %v5515
    %5940 = vmatprep.subr.bf16.mxu0 %v5500
    %5941 = vmatpush2.bf16.msra.mxu0 %v5499
    %5942 = vmatprep.subr.bf16.mxu0 %v5484
    %5943 = vmatpush2.bf16.msra.mxu0 %v5483
    %5944 = vmatprep.subr.bf16.mxu0 %v5468
    %5945 = vmatpush2.bf16.msra.mxu0 %v5467
    %5946 = vmatprep.subr.bf16.mxu0 %v5452
    %5947 = vmatpush2.bf16.msra.mxu0 %v5451
    %5948 = vmatprep.subr.bf16.mxu0 %v5436
    %5949 = vmatpush2.bf16.msra.mxu0 %v5435
    %5950 = vmatprep.subr.bf16.mxu0 %v5420
    %5951 = vmatpush2.bf16.msra.mxu0 %v5419
    %5952 = vmatprep.mubr.bf16.mxu0 %v4173
    %5953 = vmatmul.mubr.bf16.gmra.mxu0 %v4172
    %v5954 = vpop.f32.mrf.mxu0
    %v5955 = vadd.f32 %v4464, %v5954
    %v5956 = vpop.f32.mrf.mxu0
    %v5957 = vadd.f32 %v4468, %v5956
    %v5958 = vpop.f32.mrf.mxu0
    %v5959 = vpop.f32.mrf.mxu0
    %5960 = vdwg.mxu0
    %5961 = vmatprep.subr.bf16.mxu0 %v5406
    %5962 = vmatpush1.bf16.msra.mxu0 %v5405
    %5963 = vmatprep.subr.bf16.mxu0 %v5390
    %5964 = vmatpush1.bf16.msra.mxu0 %v5389
    %5965 = vmatprep.subr.bf16.mxu0 %v5374
    %5966 = vmatpush1.bf16.msra.mxu0 %v5373
    %5967 = vmatprep.subr.bf16.mxu0 %v5358
    %5968 = vmatpush1.bf16.msra.mxu0 %v5357
    %5969 = vmatprep.subr.bf16.mxu0 %v5342
    %5970 = vmatpush1.bf16.msra.mxu0 %v5341
    %5971 = vmatprep.subr.bf16.mxu0 %v5326
    %5972 = vmatpush1.bf16.msra.mxu0 %v5325
    %5973 = vmatprep.subr.bf16.mxu0 %v5310
    %5974 = vmatpush1.bf16.msra.mxu0 %v5309
    %5975 = vmatprep.subr.bf16.mxu0 %v5294
    %5976 = vmatpush1.bf16.msra.mxu0 %v5293
    %5977 = vmatprep.subr.bf16.mxu0 %v5534
    %5978 = vmatpush2.bf16.msra.mxu0 %v5533
    %5979 = vmatprep.subr.bf16.mxu0 %v5518
    %5980 = vmatpush2.bf16.msra.mxu0 %v5517
    %5981 = vmatprep.subr.bf16.mxu0 %v5502
    %5982 = vmatpush2.bf16.msra.mxu0 %v5501
    %5983 = vmatprep.subr.bf16.mxu0 %v5486
    %5984 = vmatpush2.bf16.msra.mxu0 %v5485
    %5985 = vmatprep.subr.bf16.mxu0 %v5470
    %5986 = vmatpush2.bf16.msra.mxu0 %v5469
    %5987 = vmatprep.subr.bf16.mxu0 %v5454
    %5988 = vmatpush2.bf16.msra.mxu0 %v5453
    %5989 = vmatprep.subr.bf16.mxu0 %v5438
    %5990 = vmatpush2.bf16.msra.mxu0 %v5437
    %5991 = vmatprep.subr.bf16.mxu0 %v5422
    %5992 = vmatpush2.bf16.msra.mxu0 %v5421
    %5993 = vmatprep.mubr.bf16.mxu0 %v4173
    %5994 = vmatmul.mubr.bf16.gmra.mxu0 %v4172
    %v5995 = vpop.f32.mrf.mxu0
    %v5996 = vadd.f32 %v4472, %v5995
    %v5997 = vpop.f32.mrf.mxu0
    %v5998 = vadd.f32 %v4476, %v5997
    %v5999 = vpop.f32.mrf.mxu0
    %v6000 = vpop.f32.mrf.mxu0
    %6001 = vdwg.mxu0
    %6002 = vmatprep.subr.bf16.mxu0 %v5408
    %6003 = vmatpush1.bf16.msra.mxu0 %v5407
    %6004 = vmatprep.subr.bf16.mxu0 %v5392
    %6005 = vmatpush1.bf16.msra.mxu0 %v5391
    %6006 = vmatprep.subr.bf16.mxu0 %v5376
    %6007 = vmatpush1.bf16.msra.mxu0 %v5375
    %6008 = vmatprep.subr.bf16.mxu0 %v5360
    %6009 = vmatpush1.bf16.msra.mxu0 %v5359
    %6010 = vmatprep.subr.bf16.mxu0 %v5344
    %6011 = vmatpush1.bf16.msra.mxu0 %v5343
    %6012 = vmatprep.subr.bf16.mxu0 %v5328
    %6013 = vmatpush1.bf16.msra.mxu0 %v5327
    %6014 = vmatprep.subr.bf16.mxu0 %v5312
    %6015 = vmatpush1.bf16.msra.mxu0 %v5311
    %6016 = vmatprep.subr.bf16.mxu0 %v5296
    %6017 = vmatpush1.bf16.msra.mxu0 %v5295
    %6018 = vmatprep.subr.bf16.mxu0 %v5536
    %6019 = vmatpush2.bf16.msra.mxu0 %v5535
    %6020 = vmatprep.subr.bf16.mxu0 %v5520
    %6021 = vmatpush2.bf16.msra.mxu0 %v5519
    %6022 = vmatprep.subr.bf16.mxu0 %v5504
    %6023 = vmatpush2.bf16.msra.mxu0 %v5503
    %6024 = vmatprep.subr.bf16.mxu0 %v5488
    %6025 = vmatpush2.bf16.msra.mxu0 %v5487
    %6026 = vmatprep.subr.bf16.mxu0 %v5472
    %6027 = vmatpush2.bf16.msra.mxu0 %v5471
    %6028 = vmatprep.subr.bf16.mxu0 %v5456
    %6029 = vmatpush2.bf16.msra.mxu0 %v5455
    %6030 = vmatprep.subr.bf16.mxu0 %v5440
    %6031 = vmatpush2.bf16.msra.mxu0 %v5439
    %6032 = vmatprep.subr.bf16.mxu0 %v5424
    %6033 = vmatpush2.bf16.msra.mxu0 %v5423
    %6034 = vmatprep.mubr.bf16.mxu0 %v4173
    %6035 = vmatmul.mubr.bf16.gmra.mxu0 %v4172
    %v6036 = vpop.f32.mrf.mxu0
    %v6037 = vadd.f32 %v4480, %v6036
    %v6038 = vpop.f32.mrf.mxu0
    %v6039 = vadd.f32 %v4484, %v6038
    %v6040 = vpop.f32.mrf.mxu0
    %v6041 = vpop.f32.mrf.mxu0
    %6042 = vdwg.mxu0
    %6043 = vmatprep.subr.bf16.mxu0 %v5410
    %6044 = vmatpush1.bf16.msra.mxu0 %v5409
    %6045 = vmatprep.subr.bf16.mxu0 %v5394
    %6046 = vmatpush1.bf16.msra.mxu0 %v5393
    %6047 = vmatprep.subr.bf16.mxu0 %v5378
    %6048 = vmatpush1.bf16.msra.mxu0 %v5377
    %6049 = vmatprep.subr.bf16.mxu0 %v5362
    %6050 = vmatpush1.bf16.msra.mxu0 %v5361
    %6051 = vmatprep.subr.bf16.mxu0 %v5346
    %6052 = vmatpush1.bf16.msra.mxu0 %v5345
    %6053 = vmatprep.subr.bf16.mxu0 %v5330
    %6054 = vmatpush1.bf16.msra.mxu0 %v5329
    %6055 = vmatprep.subr.bf16.mxu0 %v5314
    %6056 = vmatpush1.bf16.msra.mxu0 %v5313
    %6057 = vmatprep.subr.bf16.mxu0 %v5298
    %6058 = vmatpush1.bf16.msra.mxu0 %v5297
    %6059 = vmatprep.subr.bf16.mxu0 %v5538
    %6060 = vmatpush2.bf16.msra.mxu0 %v5537
    %6061 = vmatprep.subr.bf16.mxu0 %v5522
    %6062 = vmatpush2.bf16.msra.mxu0 %v5521
    %6063 = vmatprep.subr.bf16.mxu0 %v5506
    %6064 = vmatpush2.bf16.msra.mxu0 %v5505
    %6065 = vmatprep.subr.bf16.mxu0 %v5490
    %6066 = vmatpush2.bf16.msra.mxu0 %v5489
    %6067 = vmatprep.subr.bf16.mxu0 %v5474
    %6068 = vmatpush2.bf16.msra.mxu0 %v5473
    %6069 = vmatprep.subr.bf16.mxu0 %v5458
    %6070 = vmatpush2.bf16.msra.mxu0 %v5457
    %6071 = vmatprep.subr.bf16.mxu0 %v5442
    %6072 = vmatpush2.bf16.msra.mxu0 %v5441
    %6073 = vmatprep.subr.bf16.mxu0 %v5426
    %6074 = vmatpush2.bf16.msra.mxu0 %v5425
    %6075 = vmatprep.mubr.bf16.mxu0 %v4173
    %6076 = vmatmul.mubr.bf16.gmra.mxu0 %v4172
    %v6077 = vpop.f32.mrf.mxu0
    %v6078 = vadd.f32 %v4488, %v6077
    %v6079 = vpop.f32.mrf.mxu0
    %v6080 = vadd.f32 %v4492, %v6079
    %v6081 = vpop.f32.mrf.mxu0
    %v6082 = vpop.f32.mrf.mxu0
    %6083 = vdwg.mxu0
    %6084 = vmatprep.subr.bf16.mxu0 %v5412
    %6085 = vmatpush1.bf16.msra.mxu0 %v5411
    %6086 = vmatprep.subr.bf16.mxu0 %v5396
    %6087 = vmatpush1.bf16.msra.mxu0 %v5395
    %6088 = vmatprep.subr.bf16.mxu0 %v5380
    %6089 = vmatpush1.bf16.msra.mxu0 %v5379
    %6090 = vmatprep.subr.bf16.mxu0 %v5364
    %6091 = vmatpush1.bf16.msra.mxu0 %v5363
    %6092 = vmatprep.subr.bf16.mxu0 %v5348
    %6093 = vmatpush1.bf16.msra.mxu0 %v5347
    %6094 = vmatprep.subr.bf16.mxu0 %v5332
    %6095 = vmatpush1.bf16.msra.mxu0 %v5331
    %6096 = vmatprep.subr.bf16.mxu0 %v5316
    %6097 = vmatpush1.bf16.msra.mxu0 %v5315
    %6098 = vmatprep.subr.bf16.mxu0 %v5300
    %6099 = vmatpush1.bf16.msra.mxu0 %v5299
    %6100 = vmatprep.subr.bf16.mxu0 %v5540
    %6101 = vmatpush2.bf16.msra.mxu0 %v5539
    %6102 = vmatprep.subr.bf16.mxu0 %v5524
    %6103 = vmatpush2.bf16.msra.mxu0 %v5523
    %6104 = vmatprep.subr.bf16.mxu0 %v5508
    %6105 = vmatpush2.bf16.msra.mxu0 %v5507
    %6106 = vmatprep.subr.bf16.mxu0 %v5492
    %6107 = vmatpush2.bf16.msra.mxu0 %v5491
    %6108 = vmatprep.subr.bf16.mxu0 %v5476
    %6109 = vmatpush2.bf16.msra.mxu0 %v5475
    %6110 = vmatprep.subr.bf16.mxu0 %v5460
    %6111 = vmatpush2.bf16.msra.mxu0 %v5459
    %6112 = vmatprep.subr.bf16.mxu0 %v5444
    %6113 = vmatpush2.bf16.msra.mxu0 %v5443
    %6114 = vmatprep.subr.bf16.mxu0 %v5428
    %6115 = vmatpush2.bf16.msra.mxu0 %v5427
    %6116 = vmatprep.mubr.bf16.mxu0 %v4173
    %6117 = vmatmul.mubr.bf16.gmra.mxu0 %v4172
    %v6118 = vpop.f32.mrf.mxu0
    %v6119 = vadd.f32 %v4496, %v6118
    %v6120 = vpop.f32.mrf.mxu0
    %v6121 = vadd.f32 %v4500, %v6120
    %v6122 = vpop.f32.mrf.mxu0
    %v6123 = vpop.f32.mrf.mxu0
    %6124 = vdwg.mxu0
    %v6125 = vtanh.pop %v5832
    %v6126 = vtanh.pop %v5834
    %v6127 = vtanh.pop %v5873
    %v6128 = vtanh.pop %v5875
    %v6129 = vtanh.pop %v5914
    %v6130 = vtanh.pop %v5916
    %v6131 = vtanh.pop %v5955
    %v6132 = vtanh.pop %v5957
    %v6133 = vmul.f32 %v6125, 1.442695
    %v6134 = vpow.pop %v6133
    %v6135 = vmul.f32 %v6126, 1.442695
    %v6136 = vpow.pop %v6135
    %v6137 = vmul.f32 %v6127, 1.442695
    %v6138 = vpow.pop %v6137
    %v6139 = vmul.f32 %v6128, 1.442695
    %v6140 = vpow.pop %v6139
    %v6141 = vmul.f32 %v6129, 1.442695
    %v6142 = vpow.pop %v6141
    %v6143 = vmul.f32 %v6130, 1.442695
    %v6144 = vpow.pop %v6143
    %v6145 = vmul.f32 %v6131, 1.442695
    %v6146 = vpow.pop %v6145
    %v6147 = vmul.f32 %v6132, 1.442695
    %v6148 = vpow.pop %v6147
    %v6157 = vcombine.low %v6134, %v6136
    %v6158 = vcombine.low %v6138, %v6140
    %v6160 = vunpack.c.l.s4 1983009808
    %v6161 = vunpack.c.0.s8 %v6160
    %v6162 = vlaneseq
    %v6163 = vshrl.u32 %v6162, 7
    %v6164 = vsub.s32 %v6161, %v6163
    %v6165 = vrot.slane %v6157, %v6164
    %v6167 = vunpack.c.l.s4 1983009808
    %v6168 = vunpack.c.0.s8 %v6167
    %v6169 = vlaneseq
    %v6170 = vshrl.u32 %v6169, 7
    %v6171 = vsub.s32 %v6168, %v6170
    %v6172 = vrot.slane %v6158, %v6171
    %v6173 = vcombine.low %v6165, %v6172
    %v6174 = vcombine.low %v6142, %v6144
    %v6175 = vcombine.low %v6146, %v6148
    %v6177 = vunpack.c.l.s4 1983009808
    %v6178 = vunpack.c.0.s8 %v6177
    %v6179 = vlaneseq
    %v6180 = vshrl.u32 %v6179, 7
    %v6181 = vsub.s32 %v6178, %v6180
    %v6182 = vrot.slane %v6174, %v6181
    %v6184 = vunpack.c.l.s4 1983009808
    %v6185 = vunpack.c.0.s8 %v6184
    %v6186 = vlaneseq
    %v6187 = vshrl.u32 %v6186, 7
    %v6188 = vsub.s32 %v6185, %v6187
    %v6189 = vrot.slane %v6175, %v6188
    %v6190 = vcombine.low %v6182, %v6189
    %v6193 = vmul.f32 %v3151, %v6173
    %v6194 = vmul.f32 %v3152, %v6190
    %v6203 = vcombine.low %v5996, %v5998
    %v6204 = vcombine.low %v6037, %v6039
    %v6206 = vunpack.c.l.s4 1983009808
    %v6207 = vunpack.c.0.s8 %v6206
    %v6208 = vlaneseq
    %v6209 = vshrl.u32 %v6208, 7
    %v6210 = vsub.s32 %v6207, %v6209
    %v6211 = vrot.slane %v6203, %v6210
    %v6213 = vunpack.c.l.s4 1983009808
    %v6214 = vunpack.c.0.s8 %v6213
    %v6215 = vlaneseq
    %v6216 = vshrl.u32 %v6215, 7
    %v6217 = vsub.s32 %v6214, %v6216
    %v6218 = vrot.slane %v6204, %v6217
    %v6219 = vcombine.low %v6211, %v6218
    %v6220 = vcombine.low %v6078, %v6080
    %v6221 = vcombine.low %v6119, %v6121
    %v6223 = vunpack.c.l.s4 1983009808
    %v6224 = vunpack.c.0.s8 %v6223
    %v6225 = vlaneseq
    %v6226 = vshrl.u32 %v6225, 7
    %v6227 = vsub.s32 %v6224, %v6226
    %v6228 = vrot.slane %v6220, %v6227
    %v6230 = vunpack.c.l.s4 1983009808
    %v6231 = vunpack.c.0.s8 %v6230
    %v6232 = vlaneseq
    %v6233 = vshrl.u32 %v6232, 7
    %v6234 = vsub.s32 %v6231, %v6233
    %v6235 = vrot.slane %v6221, %v6234
    %v6236 = vcombine.low %v6228, %v6235
    %v6239 = vadd.f32 %v6193, %v6219
    %v6240 = vadd.f32 %v6194, %v6236
    %v6241 = vsel %vm3153, %v6125, 0.0
    %v6242 = vsel %vm3153, %v6126, 0.0
    %v6243 = vadd.f32 %v6241, %v6242
    %v6244 = vsel %vm3153, %v6127, 0.0
    %v6245 = vadd.f32 %v6243, %v6244
    %v6246 = vsel %vm3153, %v6128, 0.0
    %v6247 = vadd.f32 %v6245, %v6246
    %v6248 = vsel %vm3153, %v6129, 0.0
    %v6249 = vadd.f32 %v6247, %v6248
    %v6250 = vsel %vm3153, %v6130, 0.0
    %v6251 = vadd.f32 %v6249, %v6250
    %v6252 = vsel %vm3153, %v6131, 0.0
    %v6253 = vadd.f32 %v6251, %v6252
    %v6254 = vsel %vm3153, %v6132, 0.0
    %v6255 = vadd.f32 %v6253, %v6254
    %6256 = vadd.xlane.f32.xlu0 %v6255
    %v6257 = vpop.xlane.xlu0 %6256
    %v6258 = vadd.f32 %v3171, %v6257
    %6259 = vst [vmem:[#allocation11] sm:$0xff] %v6239
    %6260 = vst [vmem:[#allocation11 + $0x8] sm:$0xff] %v6240
    %6261 = vst [vmem:[#allocation12] sm:$0x3] %v6258
    // Predicated region
    $region42: #{tpu_custom_call.1} parent=1 // pred_check
      _
    $region43: #{tpu_custom_call.1} parent=1 // pred_check_branch
      %6263 = sbr.rel (0) target = $region45
    $region44: #{tpu_custom_call.1} parent=1 // pred_region
      %s6265 = ssub.s32 256, 256
      %6266 = vsyncadd [#allocation4], %s6265
      %s6268 = sshll.u32 [#allocation11], 4
      %s6269 = int_to_ptr.vmem [resolvable:$true] %s6268
      %6271 = dma.vmem_to_hbm [thread:$0]  %s6269, 256, %s5, [#allocation4]
    $region45: #{tpu_custom_call.1} parent=1 // pred_fallthru
      _
    // Predicated region
    $region46: #{tpu_custom_call.1} parent=1 // pred_check
      _
    $region47: #{tpu_custom_call.1} parent=1 // pred_check_branch
      %6273 = sbr.rel (0) target = $region49
    $region48: #{tpu_custom_call.1} parent=1 // pred_region
      %s6275 = ssub.s32 32, 32
      %6276 = vsyncadd [#allocation13], %s6275
      %s6278 = sshll.u32 [#allocation12], 4
      %s6279 = int_to_ptr.vmem [resolvable:$true] %s6278
      %6281 = dma.vmem_to_hbm [thread:$0]  %s6279, 32, %s6, [#allocation13]
    $region49: #{tpu_custom_call.1} parent=1 // pred_fallthru
      _
    // Predicated region
    $region50: #{tpu_custom_call.1} parent=1 // pred_check
      _
    $region51: #{tpu_custom_call.1} parent=1 // pred_check_branch
      %6283 = sbr.rel (0) target = $region53
    $region52: #{tpu_custom_call.1} parent=1 // pred_region
      %6284 = dma.done [#allocation4], 256
    $region53: #{tpu_custom_call.1} parent=1 // pred_fallthru
      _
    // Predicated region
    $region54: #{tpu_custom_call.1} parent=1 // pred_check
      _
    $region55: #{tpu_custom_call.1} parent=1 // pred_check_branch
      %6286 = sbr.rel (0) target = $region57
    $region56: #{tpu_custom_call.1} parent=1 // pred_region
      %6287 = dma.done [#allocation13], 32
    $region57: #{tpu_custom_call.1} parent=1 // pred_fallthru
      _
    %6288 = vsyncpa [#allocation3], 1
    %6289 = vsyncpa [#allocation6], 1
    %6290 = vsyncpa [#allocation9], 1
    %6291 = vsyncpa [#allocation4], 1
    %6292 = vsyncpa [#allocation13], 1

</llo_original>
